<compile_context>
chip_gen: v7x
topology: tpu7x:2x2x1
jax: 0.10.0
libtpu: 0.0.40
codegen_flags: <defaults>
</compile_context>

<pallas_src>
import functools
import jax
import jax.numpy as jnp
from jax import lax
from jax.experimental import pallas as pl
from jax.experimental.pallas import tpu as pltpu

BN_EPS = 1e-5
HALO = 16                          # halo-fetch granularity (rows); 16 keeps bf16 tiling legal
CONV_ROW_TARGET = 2048             # target TH*W flattened matmul rows per conv tile
CONV_TILE_VMEM = 24 * 1024 * 1024  # per-tile working-set budget (fits v7x 64 MiB VMEM w/ dbl-buffering)
PW_TILE_BYTES = 4 * 1024 * 1024    # pointwise-pass block target (~2-4 MiB)
VMEM_LIMIT = 48 * 1024 * 1024      # explicit scoped-VMEM cap (< v7x 64 MiB physical)


# ------------------------------------------------------------------
# tile pickers
# ------------------------------------------------------------------
def _conv_tile_bytes(th, W, Cin, Cout, in_itemsize):
    io = 2 * (th * W * Cin * in_itemsize           # main input block (double-buffered)
              + 2 * HALO * W * Cin * in_itemsize   # up/down halo blocks
              + th * W * Cout * 2                  # bf16 raw output block
              + 2 * Cout * 4)                      # stats block
    tmp = ((th + 2) * (W + 2) * Cin * 2            # padded window (bf16)
           + th * W * 9 * Cin * 2                  # worst case: im2col patch (bf16)
           + th * W * Cout * 4)                    # f32 accumulator
    return io + tmp


def _pick_conv_tile_h(H, W, Cin, Cout, in_itemsize):
    assert H % 16 == 0 and H >= 16, "kernel assumes H is a multiple of 16"
    best = 16
    for th in range(16, H + 1, 16):
        if H % th:
            continue
        if th * W > CONV_ROW_TARGET and th != 16:
            continue
        if _conv_tile_bytes(th, W, Cin, Cout, in_itemsize) > CONV_TILE_VMEM:
            continue
        best = max(best, th)
    return best


def _pick_pw_tile_h(H, W, C):
    best = 16
    for th in range(16, H + 1, 16):
        if H % th == 0 and th * W * C * 2 <= PW_TILE_BYTES:
            best = max(best, th)
    return best


# ------------------------------------------------------------------
# Kernel 1: tiled 3x3 conv (pad=1) -> raw bf16 output + partial BN statistics
# ------------------------------------------------------------------
def _conv3x3_kernel(x_ref, xup_ref, xdn_ref, w_ref, sc_ref, sh_ref,
                    raw_ref, stats_ref, *, TH, W, Cin, Cout,
                    fuse_input_act, use_im2col):
    i = pl.program_id(1)
    nb = pl.num_programs(1)

    def prep(t):                                   # (rows, W, Cin) -> bf16 MXU operand
        t = t.astype(jnp.float32)
        if fuse_input_act:                         # fold previous layer's BN+ReLU in
            t = jnp.maximum(t * sc_ref[...].reshape(1, 1, Cin)
                            + sh_ref[...].reshape(1, 1, Cin), 0.0)
        return t.astype(jnp.bfloat16)

    main = prep(x_ref[0])                          # (TH, W, Cin)
    up = prep(xup_ref[0, HALO - 1:HALO])           # row just above this tile
    dn = prep(xdn_ref[0, 0:1])                     # row just below this tile

    zrow = jnp.zeros_like(up)
    top = jnp.where(i == 0, zrow, up)              # zero pad at image top
    bot = jnp.where(i == nb - 1, zrow, dn)         # zero pad at image bottom
    win = jnp.concatenate([top, main, bot], axis=0)            # (TH+2, W, Cin)
    zcol = jnp.zeros((TH + 2, 1, Cin), jnp.bfloat16)
    win = jnp.concatenate([zcol, win, zcol], axis=1)           # (TH+2, W+2, Cin)

    if use_im2col:
        # one MXU contraction with K = 9*Cin  (w_ref: (9*Cin, Cout))
        patch = jnp.concatenate(
            [win[kh:kh + TH, kw:kw + W, :] for kh in range(3) for kw in range(3)],
            axis=-1).reshape(TH * W, 9 * Cin)
        acc = jnp.dot(patch, w_ref[...], preferred_element_type=jnp.float32)
    else:
        # 9 shifted-view matmuls into one f32 acc (w_ref: (9, Cin, Cout)); avoids
        # materializing the 9x im2col patch when K is far below the MXU depth.
        acc = jnp.zeros((TH * W, Cout), jnp.float32)
        for kh in range(3):
            for kw in range(3):
                sl = win[kh:kh + TH, kw:kw + W, :].reshape(TH * W, Cin)
                acc = acc + jnp.dot(sl, w_ref[kh * 3 + kw],
                                    preferred_element_type=jnp.float32)

    # bf16 raw activation (halves write traffic); f32 partial BN statistics.
    # TODO(synk): store the raw block lane-dense as (TH, W*Cout) once the
    # (TH*W, Cout)->(TH, W*Cout) lane-relayout reshape is verified to lower.
    raw_ref[0] = acc.reshape(TH, W, Cout).astype(jnp.bfloat16)
    stats_ref[0] = jnp.concatenate(
        [jnp.sum(acc, axis=0, keepdims=True),
         jnp.sum(acc * acc, axis=0, keepdims=True)], axis=0)   # (2, Cout)


def conv3x3_bn_stats(x, w_hwio, scale_in, shift_in, *, fuse_input_act):
    """x: (N, H, W, Cin).  Returns raw conv output (N, H, W, Cout) in bf16 and
    per-tile partial BN stats (N*nb, 2, Cout) = [sum, sum-of-squares] in f32."""
    N, H, W, Cin = x.shape
    Cout = w_hwio.shape[-1]
    use_im2col = (9 * Cin >= 128)          # only pay for the patch when K is MXU-sized
    wk = (w_hwio.reshape(9 * Cin, Cout) if use_im2col
          else w_hwio.reshape(9, Cin, Cout)).astype(jnp.bfloat16)

    TH = _pick_conv_tile_h(H, W, Cin, Cout, x.dtype.itemsize)
    nb = H // TH
    hb = TH // HALO
    last_hblk = H // HALO - 1

    kern = functools.partial(_conv3x3_kernel, TH=TH, W=W, Cin=Cin, Cout=Cout,
                             fuse_input_act=fuse_input_act, use_im2col=use_im2col)

    flops = 2 * N * H * W * 9 * Cin * Cout
    bytes_acc = (x.size * x.dtype.itemsize
                 + N * nb * 2 * HALO * W * Cin * x.dtype.itemsize
                 + N * H * W * Cout * 2
                 + N * nb * 2 * Cout * 4
                 + wk.size * 2)

    w_spec = (pl.BlockSpec((9 * Cin, Cout), lambda n, i: (0, 0)) if use_im2col
              else pl.BlockSpec((9, Cin, Cout), lambda n, i: (0, 0, 0)))

    raw, stats = pl.pallas_call(
        kern,
        grid=(N, nb),
        in_specs=[
            pl.BlockSpec((1, TH, W, Cin), lambda n, i: (n, i, 0, 0)),
            pl.BlockSpec((1, HALO, W, Cin),
                         lambda n, i: (n, jnp.maximum(i * hb - 1, 0), 0, 0)),
            pl.BlockSpec((1, HALO, W, Cin),
                         lambda n, i: (n, jnp.minimum(i * hb + hb, last_hblk), 0, 0)),
            w_spec,
            pl.BlockSpec((1, Cin), lambda n, i: (0, 0)),
            pl.BlockSpec((1, Cin), lambda n, i: (0, 0)),
        ],
        out_specs=[
            pl.BlockSpec((1, TH, W, Cout), lambda n, i: (n, i, 0, 0)),
            pl.BlockSpec((1, 2, Cout), lambda n, i: (n * nb + i, 0, 0)),
        ],
        out_shape=[
            jax.ShapeDtypeStruct((N, H, W, Cout), jnp.bfloat16),
            jax.ShapeDtypeStruct((N * nb, 2, Cout), jnp.float32),
        ],
        compiler_params=pltpu.CompilerParams(
            dimension_semantics=("parallel", "parallel"),
            vmem_limit_bytes=VMEM_LIMIT),
        cost_estimate=pl.CostEstimate(flops=flops, transcendentals=0,
                                      bytes_accessed=bytes_acc),
    )(x, x, x, wk, scale_in, shift_in)
    return raw, stats


def _bn_affine(stats, count, gamma, beta):
    """Finish the global BN reduction (tiny per-channel math in glue)."""
    tot = jnp.sum(stats, axis=0)                   # (2, C)
    mean = tot[0] / count
    var = tot[1] / count - mean * mean             # biased variance (training BN)
    scale = gamma * lax.rsqrt(var + BN_EPS)
    shift = beta - mean * scale
    return scale.reshape(1, -1), shift.reshape(1, -1)


# ------------------------------------------------------------------
# Kernel 2: lane-dense (W*C)-packed pooled partial sums of relu(bn2(raw2))
# ------------------------------------------------------------------
def _bn_relu_pool_kernel(raw_ref, sc_ref, sh_ref, pool_ref):
    y = jnp.maximum(raw_ref[0].astype(jnp.float32) * sc_ref[0] + sh_ref[0], 0.0)
    pool_ref[0] = jnp.sum(y, axis=0, keepdims=True)            # per-tile pooled partial


def bn_relu_pool(raw_p, sc_t, sh_t, *, TH):
    N, H, L = raw_p.shape
    nb = H // TH
    return pl.pallas_call(
        _bn_relu_pool_kernel,
        grid=(N, nb),
        in_specs=[
            pl.BlockSpec((1, TH, L), lambda n, i: (n, i, 0)),
            pl.BlockSpec((1, 1, L), lambda n, i: (0, 0, 0)),
            pl.BlockSpec((1, 1, L), lambda n, i: (0, 0, 0)),
        ],
        out_specs=pl.BlockSpec((1, 1, L), lambda n, i: (n * nb + i, 0, 0)),
        out_shape=jax.ShapeDtypeStruct((N * nb, 1, L), jnp.float32),
        compiler_params=pltpu.CompilerParams(
            dimension_semantics=("parallel", "parallel"),
            vmem_limit_bytes=VMEM_LIMIT),
    )(raw_p, sc_t, sh_t)


# ------------------------------------------------------------------
# conv_block forward (Pallas + thin XLA glue)
# ------------------------------------------------------------------
def conv_block_forward(x_nchw, params):
    N, in_c, H, W = x_nchw.shape
    C = params["w1"].shape[-1]

    # NCHW -> NHWC only at the boundary; intermediates stay NHWC / lane-packed.
    x = jnp.transpose(x_nchw, (0, 2, 3, 1))                    # (N, H, W, in_c)

    # conv1: raw bf16 output + partial BN stats (pass 1 of the two-pass batch BN)
    dummy = jnp.zeros((1, in_c), jnp.float32)
    raw1, st1 = conv3x3_bn_stats(x, params["w1"], dummy, dummy, fuse_input_act=False)
    sc1, sh1 = _bn_affine(st1, N * H * W, params["g1"], params["bt1"])

    # conv2 with BN1+ReLU folded into its input path (normalized activation
    # never round-trips HBM)
    raw2, st2 = conv3x3_bn_stats(raw1, params["w2"], sc1, sh1, fuse_input_act=True)
    sc2, sh2 = _bn_affine(st2, N * H * W, params["g2"], params["bt2"])

    # squeeze: tiled partial sums of relu(bn2(raw2)) over a lane-dense packed view
    raw2_p = raw2.reshape(N, H, W * C)                         # free row-major reshape
    sc2_t = jnp.tile(sc2.reshape(-1), W).reshape(1, 1, W * C)
    sh2_t = jnp.tile(sh2.reshape(-1), W).reshape(1, 1, W * C)
    TH_pw = _pick_pw_tile_h(H, W, C)
    pool = bn_relu_pool(raw2_p, sc2_t, sh2_t, TH=TH_pw)
    pooled = pool.reshape(N, -1, W, C).sum(axis=(1, 2)) / float(H * W)   # (N, C)

    # excitation: two tiny FCs + sigmoid in plain XLA (a dedicated pallas_call
    # here is pure launch overhead on the serial pool -> finalize path)
    h = jnp.maximum(pooled @ params["fc1_w"] + params["fc1_b"], 0.0)
    s = jax.nn.sigmoid(h @ params["fc2_w"] + params["fc2_b"])            # (N, C)

    # finalize: BN2 + ReLU + SE channel scale + NHWC->NCHW as ONE fused XLA pass
    # (single bf16 read of raw2, single f32 NCHW write) -- same bytes as an
    # in-kernel fused transpose, ~2x fewer than a Pallas NHWC pass + XLA transpose.
    # TODO(synk): move into a Pallas kernel with a pltpu.einshape-fused transpose
    # once that lane relayout is verified to lower on all target chips.
    y = jnp.maximum(raw2.astype(jnp.float32) * sc2.reshape(1, 1, 1, C)
                    + sh2.reshape(1, 1, 1, C), 0.0)
    y = y * s[:, None, None, :]
    return jnp.transpose(y, (0, 3, 1, 2))                      # NCHW


# ------------------------------------------------------------------
# Pure-JAX reference (same math) for a sanity check
# ------------------------------------------------------------------
def _ref_forward(x_nchw, params):
    dn = ("NHWC", "HWIO", "NHWC")

    def cbr(x, w, g, b):
        y = lax.conv_general_dilated(x, w, (1, 1), "SAME", dimension_numbers=dn)
        m = jnp.mean(y, axis=(0, 1, 2))
        v = jnp.mean((y - m) ** 2, axis=(0, 1, 2))
        return jnp.maximum((y - m) * lax.rsqrt(v + BN_EPS) * g + b, 0.0)

    x = jnp.transpose(x_nchw, (0, 2, 3, 1))
    x = cbr(x, params["w1"], params["g1"], params["bt1"])
    x = cbr(x, params["w2"], params["g2"], params["bt2"])
    p = jnp.mean(x, axis=(1, 2))
    h = jnp.maximum(p @ params["fc1_w"] + params["fc1_b"], 0.0)
    s = jax.nn.sigmoid(h @ params["fc2_w"] + params["fc2_b"])
    x = x * s[:, None, None, :]
    return jnp.transpose(x, (0, 3, 1, 2))


# ------------------------------------------------------------------
def make_params(key, in_c, out_c, ratio=8):
    ks = jax.random.split(key, 4)
    hid = out_c // ratio
    # PyTorch-shaped params, transposed to the kernel layout in glue.
    w1_oihw = jax.random.normal(ks[0], (out_c, in_c, 3, 3), jnp.float32) * 0.1
    w2_oihw = jax.random.normal(ks[1], (out_c, out_c, 3, 3), jnp.float32) * 0.1
    fc1_oi = jax.random.normal(ks[2], (hid, out_c), jnp.float32) * 0.1
    fc2_oi = jax.random.normal(ks[3], (out_c, hid), jnp.float32) * 0.1
    return {
        "w1": jnp.transpose(w1_oihw, (2, 3, 1, 0)),   # OIHW -> HWIO
        "g1": jnp.ones((out_c,), jnp.float32),        # fresh BatchNorm defaults
        "bt1": jnp.zeros((out_c,), jnp.float32),
        "w2": jnp.transpose(w2_oihw, (2, 3, 1, 0)),
        "g2": jnp.ones((out_c,), jnp.float32),
        "bt2": jnp.zeros((out_c,), jnp.float32),
        "fc1_w": fc1_oi.T,                            # (out,in) -> (in,out)
        "fc1_b": jnp.zeros((hid,), jnp.float32),
        "fc2_w": fc2_oi.T,
        "fc2_b": jnp.zeros((out_c,), jnp.float32),
    }


if __name__ == "__main__":
    key = jax.random.PRNGKey(0)
    kx, kp = jax.random.split(key)
    N, in_c, out_c, HW = 2, 4, 32, 16
    x = jax.random.normal(kx, (N, in_c, HW, HW), jnp.float32)   # NCHW like PyTorch
    params = make_params(kp, in_c, out_c)

    fwd = jax.jit(conv_block_forward)
    out = jax.block_until_ready(fwd(x, params))
    ref = jax.block_until_ready(_ref_forward(x, params))

    assert out.shape == (N, out_c, HW, HW)
    # bf16 MXU operands + bf16 intermediate activations (f32 accumulation and
    # f32 BN statistics) => small, bounded numeric delta vs. the f32 reference.
    assert jnp.allclose(out, ref, rtol=3e-2, atol=3e-2), "mismatch vs JAX reference"
    print("KERNEL_OK")
</pallas_src>

<mosaic_0001>
module attributes {stable_mosaic.version = 11 : i64} {
  func.func @_conv3x3_kernel(%arg0: i32, %arg1: i32, %arg2: memref<1x16x16x4xf32, #tpu.memory_space<vmem>>, %arg3: memref<1x16x16x4xf32, #tpu.memory_space<vmem>>, %arg4: memref<1x16x16x4xf32, #tpu.memory_space<vmem>>, %arg5: memref<9x4x32xbf16, #tpu.memory_space<vmem>>, %arg6: memref<1x4xf32, #tpu.memory_space<vmem>>, %arg7: memref<1x4xf32, #tpu.memory_space<vmem>>, %arg8: memref<1x16x16x32xbf16, #tpu.memory_space<vmem>>, %arg9: memref<1x2x32xf32, #tpu.memory_space<vmem>>) attributes {dimension_semantics = [#tpu.dimension_semantics<parallel>, #tpu.dimension_semantics<parallel>], iteration_bounds = array<i64: 2, 1>, scalar_prefetch = 0 : i64, scratch_operands = 0 : i64, tpu.core_type = #tpu.core_type<tc>, window_params = [{transform_indices = @transform_0, window_bounds = array<i64: 1, 16, 16, 4>}, {transform_indices = @transform_1, window_bounds = array<i64: 1, 16, 16, 4>}, {transform_indices = @transform_2, window_bounds = array<i64: 1, 16, 16, 4>}, {pipeline_mode = #tpu.pipeline_mode<synchronous>, transform_indices = @transform_3, window_bounds = array<i64: 9, 4, 32>}, {pipeline_mode = #tpu.pipeline_mode<synchronous>, transform_indices = @transform_4, window_bounds = array<i64: 1, 4>}, {pipeline_mode = #tpu.pipeline_mode<synchronous>, transform_indices = @transform_5, window_bounds = array<i64: 1, 4>}, {transform_indices = @transform_6, window_bounds = array<i64: 1, 16, 16, 32>}, {transform_indices = @transform_7, window_bounds = array<i64: 1, 2, 32>}]} {
    %c0 = arith.constant 0 : index
    %c0_0 = arith.constant 0 : index
    %c0_1 = arith.constant 0 : index
    %c0_2 = arith.constant 0 : index
    %0 = vector.load %arg2[%c0, %c0_0, %c0_1, %c0_2] : memref<1x16x16x4xf32, #tpu.memory_space<vmem>>, vector<1x16x16x4xf32>
    %1 = vector.shape_cast %0 : vector<1x16x16x4xf32> to vector<16x16x4xf32>
    %2 = arith.truncf %1 : vector<16x16x4xf32> to vector<16x16x4xbf16>
    %c0_3 = arith.constant 0 : index
    %c15 = arith.constant 15 : index
    %c0_4 = arith.constant 0 : index
    %c0_5 = arith.constant 0 : index
    %3 = vector.load %arg3[%c0_3, %c15, %c0_4, %c0_5] : memref<1x16x16x4xf32, #tpu.memory_space<vmem>>, vector<1x1x16x4xf32>
    %4 = vector.shape_cast %3 : vector<1x1x16x4xf32> to vector<1x16x4xf32>
    %5 = arith.truncf %4 : vector<1x16x4xf32> to vector<1x16x4xbf16>
    %c0_6 = arith.constant 0 : index
    %c0_7 = arith.constant 0 : index
    %c0_8 = arith.constant 0 : index
    %c0_9 = arith.constant 0 : index
    %6 = vector.load %arg4[%c0_6, %c0_7, %c0_8, %c0_9] : memref<1x16x16x4xf32, #tpu.memory_space<vmem>>, vector<1x1x16x4xf32>
    %7 = vector.shape_cast %6 : vector<1x1x16x4xf32> to vector<1x16x4xf32>
    %8 = arith.truncf %7 : vector<1x16x4xf32> to vector<1x16x4xbf16>
    %cst = arith.constant 0.000000e+00 : bf16
    %9 = vector.broadcast %cst : bf16 to vector<1x16x4xbf16>
    %c0_i32 = arith.constant 0 : i32
    %10 = arith.cmpi eq, %arg1, %c0_i32 : i32
    %11 = arith.select %10, %9, %5 : vector<1x16x4xbf16>
    %c0_i32_10 = arith.constant 0 : i32
    %12 = arith.cmpi eq, %arg1, %c0_i32_10 : i32
    %13 = arith.select %12, %9, %8 : vector<1x16x4xbf16>
    %14 = tpu.concatenate %11, %2, %13 in 0 : vector<1x16x4xbf16>, vector<16x16x4xbf16>, vector<1x16x4xbf16> -> vector<18x16x4xbf16>
    %cst_11 = arith.constant 0.000000e+00 : bf16
    %15 = vector.broadcast %cst_11 : bf16 to vector<18x1x4xbf16>
    %16 = tpu.concatenate %15, %14, %15 in 1 : vector<18x1x4xbf16>, vector<18x16x4xbf16>, vector<18x1x4xbf16> -> vector<18x18x4xbf16>
    %cst_12 = arith.constant 0.000000e+00 : f32
    %17 = vector.broadcast %cst_12 : f32 to vector<256x32xf32>
    %18 = vector.extract_strided_slice %16 {offsets = [0, 0, 0], sizes = [16, 16, 4], strides = [1, 1, 1]} : vector<18x18x4xbf16> to vector<16x16x4xbf16>
    %19 = vector.shape_cast %18 : vector<16x16x4xbf16> to vector<256x4xbf16>
    %c0_13 = arith.constant 0 : index
    %c0_14 = arith.constant 0 : index
    %c0_15 = arith.constant 0 : index
    %20 = vector.load %arg5[%c0_13, %c0_14, %c0_15] : memref<9x4x32xbf16, #tpu.memory_space<vmem>>, vector<1x4x32xbf16>
    %21 = vector.shape_cast %20 : vector<1x4x32xbf16> to vector<4x32xbf16>
    %cst_16 = arith.constant dense<0.000000e+00> : vector<256x32xf32>
    %22 = tpu.matmul %19, %21, %cst_16 {dimension_numbers = #tpu.dot_dimension_numbers<[1], [0], [0], [1], [0, 0, 1, 1], [], []>} : vector<256x4xbf16>, vector<4x32xbf16>, vector<256x32xf32> -> vector<256x32xf32>
    %23 = arith.addf %17, %22 : vector<256x32xf32>
    %24 = vector.extract_strided_slice %16 {offsets = [0, 1, 0], sizes = [16, 16, 4], strides = [1, 1, 1]} : vector<18x18x4xbf16> to vector<16x16x4xbf16>
    %25 = vector.shape_cast %24 : vector<16x16x4xbf16> to vector<256x4xbf16>
    %c1 = arith.constant 1 : index
    %c0_17 = arith.constant 0 : index
    %c0_18 = arith.constant 0 : index
    %26 = vector.load %arg5[%c1, %c0_17, %c0_18] : memref<9x4x32xbf16, #tpu.memory_space<vmem>>, vector<1x4x32xbf16>
    %27 = vector.shape_cast %26 : vector<1x4x32xbf16> to vector<4x32xbf16>
    %cst_19 = arith.constant dense<0.000000e+00> : vector<256x32xf32>
    %28 = tpu.matmul %25, %27, %cst_19 {dimension_numbers = #tpu.dot_dimension_numbers<[1], [0], [0], [1], [0, 0, 1, 1], [], []>} : vector<256x4xbf16>, vector<4x32xbf16>, vector<256x32xf32> -> vector<256x32xf32>
    %29 = arith.addf %23, %28 : vector<256x32xf32>
    %30 = vector.extract_strided_slice %16 {offsets = [0, 2, 0], sizes = [16, 16, 4], strides = [1, 1, 1]} : vector<18x18x4xbf16> to vector<16x16x4xbf16>
    %31 = vector.shape_cast %30 : vector<16x16x4xbf16> to vector<256x4xbf16>
    %c2 = arith.constant 2 : index
    %c0_20 = arith.constant 0 : index
    %c0_21 = arith.constant 0 : index
    %32 = vector.load %arg5[%c2, %c0_20, %c0_21] : memref<9x4x32xbf16, #tpu.memory_space<vmem>>, vector<1x4x32xbf16>
    %33 = vector.shape_cast %32 : vector<1x4x32xbf16> to vector<4x32xbf16>
    %cst_22 = arith.constant dense<0.000000e+00> : vector<256x32xf32>
    %34 = tpu.matmul %31, %33, %cst_22 {dimension_numbers = #tpu.dot_dimension_numbers<[1], [0], [0], [1], [0, 0, 1, 1], [], []>} : vector<256x4xbf16>, vector<4x32xbf16>, vector<256x32xf32> -> vector<256x32xf32>
    %35 = arith.addf %29, %34 : vector<256x32xf32>
    %36 = vector.extract_strided_slice %16 {offsets = [1, 0, 0], sizes = [16, 16, 4], strides = [1, 1, 1]} : vector<18x18x4xbf16> to vector<16x16x4xbf16>
    %37 = vector.shape_cast %36 : vector<16x16x4xbf16> to vector<256x4xbf16>
    %c3 = arith.constant 3 : index
    %c0_23 = arith.constant 0 : index
    %c0_24 = arith.constant 0 : index
    %38 = vector.load %arg5[%c3, %c0_23, %c0_24] : memref<9x4x32xbf16, #tpu.memory_space<vmem>>, vector<1x4x32xbf16>
    %39 = vector.shape_cast %38 : vector<1x4x32xbf16> to vector<4x32xbf16>
    %cst_25 = arith.constant dense<0.000000e+00> : vector<256x32xf32>
    %40 = tpu.matmul %37, %39, %cst_25 {dimension_numbers = #tpu.dot_dimension_numbers<[1], [0], [0], [1], [0, 0, 1, 1], [], []>} : vector<256x4xbf16>, vector<4x32xbf16>, vector<256x32xf32> -> vector<256x32xf32>
    %41 = arith.addf %35, %40 : vector<256x32xf32>
    %42 = vector.extract_strided_slice %16 {offsets = [1, 1, 0], sizes = [16, 16, 4], strides = [1, 1, 1]} : vector<18x18x4xbf16> to vector<16x16x4xbf16>
    %43 = vector.shape_cast %42 : vector<16x16x4xbf16> to vector<256x4xbf16>
    %c4 = arith.constant 4 : index
    %c0_26 = arith.constant 0 : index
    %c0_27 = arith.constant 0 : index
    %44 = vector.load %arg5[%c4, %c0_26, %c0_27] : memref<9x4x32xbf16, #tpu.memory_space<vmem>>, vector<1x4x32xbf16>
    %45 = vector.shape_cast %44 : vector<1x4x32xbf16> to vector<4x32xbf16>
    %cst_28 = arith.constant dense<0.000000e+00> : vector<256x32xf32>
    %46 = tpu.matmul %43, %45, %cst_28 {dimension_numbers = #tpu.dot_dimension_numbers<[1], [0], [0], [1], [0, 0, 1, 1], [], []>} : vector<256x4xbf16>, vector<4x32xbf16>, vector<256x32xf32> -> vector<256x32xf32>
    %47 = arith.addf %41, %46 : vector<256x32xf32>
    %48 = vector.extract_strided_slice %16 {offsets = [1, 2, 0], sizes = [16, 16, 4], strides = [1, 1, 1]} : vector<18x18x4xbf16> to vector<16x16x4xbf16>
    %49 = vector.shape_cast %48 : vector<16x16x4xbf16> to vector<256x4xbf16>
    %c5 = arith.constant 5 : index
    %c0_29 = arith.constant 0 : index
    %c0_30 = arith.constant 0 : index
    %50 = vector.load %arg5[%c5, %c0_29, %c0_30] : memref<9x4x32xbf16, #tpu.memory_space<vmem>>, vector<1x4x32xbf16>
    %51 = vector.shape_cast %50 : vector<1x4x32xbf16> to vector<4x32xbf16>
    %cst_31 = arith.constant dense<0.000000e+00> : vector<256x32xf32>
    %52 = tpu.matmul %49, %51, %cst_31 {dimension_numbers = #tpu.dot_dimension_numbers<[1], [0], [0], [1], [0, 0, 1, 1], [], []>} : vector<256x4xbf16>, vector<4x32xbf16>, vector<256x32xf32> -> vector<256x32xf32>
    %53 = arith.addf %47, %52 : vector<256x32xf32>
    %54 = vector.extract_strided_slice %16 {offsets = [2, 0, 0], sizes = [16, 16, 4], strides = [1, 1, 1]} : vector<18x18x4xbf16> to vector<16x16x4xbf16>
    %55 = vector.shape_cast %54 : vector<16x16x4xbf16> to vector<256x4xbf16>
    %c6 = arith.constant 6 : index
    %c0_32 = arith.constant 0 : index
    %c0_33 = arith.constant 0 : index
    %56 = vector.load %arg5[%c6, %c0_32, %c0_33] : memref<9x4x32xbf16, #tpu.memory_space<vmem>>, vector<1x4x32xbf16>
    %57 = vector.shape_cast %56 : vector<1x4x32xbf16> to vector<4x32xbf16>
    %cst_34 = arith.constant dense<0.000000e+00> : vector<256x32xf32>
    %58 = tpu.matmul %55, %57, %cst_34 {dimension_numbers = #tpu.dot_dimension_numbers<[1], [0], [0], [1], [0, 0, 1, 1], [], []>} : vector<256x4xbf16>, vector<4x32xbf16>, vector<256x32xf32> -> vector<256x32xf32>
    %59 = arith.addf %53, %58 : vector<256x32xf32>
    %60 = vector.extract_strided_slice %16 {offsets = [2, 1, 0], sizes = [16, 16, 4], strides = [1, 1, 1]} : vector<18x18x4xbf16> to vector<16x16x4xbf16>
    %61 = vector.shape_cast %60 : vector<16x16x4xbf16> to vector<256x4xbf16>
    %c7 = arith.constant 7 : index
    %c0_35 = arith.constant 0 : index
    %c0_36 = arith.constant 0 : index
    %62 = vector.load %arg5[%c7, %c0_35, %c0_36] : memref<9x4x32xbf16, #tpu.memory_space<vmem>>, vector<1x4x32xbf16>
    %63 = vector.shape_cast %62 : vector<1x4x32xbf16> to vector<4x32xbf16>
    %cst_37 = arith.constant dense<0.000000e+00> : vector<256x32xf32>
    %64 = tpu.matmul %61, %63, %cst_37 {dimension_numbers = #tpu.dot_dimension_numbers<[1], [0], [0], [1], [0, 0, 1, 1], [], []>} : vector<256x4xbf16>, vector<4x32xbf16>, vector<256x32xf32> -> vector<256x32xf32>
    %65 = arith.addf %59, %64 : vector<256x32xf32>
    %66 = vector.extract_strided_slice %16 {offsets = [2, 2, 0], sizes = [16, 16, 4], strides = [1, 1, 1]} : vector<18x18x4xbf16> to vector<16x16x4xbf16>
    %67 = vector.shape_cast %66 : vector<16x16x4xbf16> to vector<256x4xbf16>
    %c8 = arith.constant 8 : index
    %c0_38 = arith.constant 0 : index
    %c0_39 = arith.constant 0 : index
    %68 = vector.load %arg5[%c8, %c0_38, %c0_39] : memref<9x4x32xbf16, #tpu.memory_space<vmem>>, vector<1x4x32xbf16>
    %69 = vector.shape_cast %68 : vector<1x4x32xbf16> to vector<4x32xbf16>
    %cst_40 = arith.constant dense<0.000000e+00> : vector<256x32xf32>
    %70 = tpu.matmul %67, %69, %cst_40 {dimension_numbers = #tpu.dot_dimension_numbers<[1], [0], [0], [1], [0, 0, 1, 1], [], []>} : vector<256x4xbf16>, vector<4x32xbf16>, vector<256x32xf32> -> vector<256x32xf32>
    %71 = arith.addf %65, %70 : vector<256x32xf32>
    %72 = vector.shape_cast %71 : vector<256x32xf32> to vector<16x16x32xf32>
    %73 = arith.truncf %72 : vector<16x16x32xf32> to vector<16x16x32xbf16>
    %c0_41 = arith.constant 0 : index
    %c0_42 = arith.constant 0 : index
    %c0_43 = arith.constant 0 : index
    %c0_44 = arith.constant 0 : index
    %74 = vector.load %arg8[%c0_41, %c0_42, %c0_43, %c0_44] : memref<1x16x16x32xbf16, #tpu.memory_space<vmem>>, vector<1x16x16x32xbf16>
    %75 = vector.shape_cast %74 : vector<1x16x16x32xbf16> to vector<16x16x32xbf16>
    %76 = vector.shape_cast %73 : vector<16x16x32xbf16> to vector<1x16x16x32xbf16>
    tpu.vector_store %arg8[%c0_41, %c0_42, %c0_43, %c0_44], %76 {strides = array<i32>} : memref<1x16x16x32xbf16, #tpu.memory_space<vmem>>, vector<1x16x16x32xbf16>,
    %cst_45 = arith.constant dense<0.000000e+00> : vector<32xf32>
    %77 = vector.multi_reduction <add>, %71, %cst_45 [0] : vector<256x32xf32> to vector<32xf32>
    %78 = vector.shape_cast %77 : vector<32xf32> to vector<1x32xf32>
    %79 = arith.mulf %71, %71 : vector<256x32xf32>
    %cst_46 = arith.constant dense<0.000000e+00> : vector<32xf32>
    %80 = vector.multi_reduction <add>, %79, %cst_46 [0] : vector<256x32xf32> to vector<32xf32>
    %81 = vector.shape_cast %80 : vector<32xf32> to vector<1x32xf32>
    %82 = tpu.concatenate %78, %81 in 0 : vector<1x32xf32>, vector<1x32xf32> -> vector<2x32xf32>
    %c0_47 = arith.constant 0 : index
    %c0_48 = arith.constant 0 : index
    %c0_49 = arith.constant 0 : index
    %83 = vector.load %arg9[%c0_47, %c0_48, %c0_49] : memref<1x2x32xf32, #tpu.memory_space<vmem>>, vector<1x2x32xf32>
    %84 = vector.shape_cast %83 : vector<1x2x32xf32> to vector<2x32xf32>
    %85 = vector.shape_cast %82 : vector<2x32xf32> to vector<1x2x32xf32>
    tpu.vector_store %arg9[%c0_47, %c0_48, %c0_49], %85 {strides = array<i32>} : memref<1x2x32xf32, #tpu.memory_space<vmem>>, vector<1x2x32xf32>,
    return
  }
  func.func @transform_0(%arg0: i32, %arg1: i32) -> (i32, i32, i32, i32) {
    %c0_i32 = arith.constant 0 : i32
    %c0_i32_0 = arith.constant 0 : i32
    %c0_i32_1 = arith.constant 0 : i32
    return %arg0, %arg1, %c0_i32, %c0_i32_0 : i32, i32, i32, i32
  }
  func.func @transform_1(%arg0: i32, %arg1: i32) -> (i32, i32, i32, i32) {
    %c1_i32 = arith.constant 1 : i32
    %0 = arith.muli %arg1, %c1_i32 : i32
    %c1_i32_0 = arith.constant 1 : i32
    %1 = arith.subi %0, %c1_i32_0 : i32
    %c0_i32 = arith.constant 0 : i32
    %2 = arith.maxsi %1, %c0_i32 : i32
    %c0_i32_1 = arith.constant 0 : i32
    %c0_i32_2 = arith.constant 0 : i32
    %c0_i32_3 = arith.constant 0 : i32
    return %arg0, %2, %c0_i32_1, %c0_i32_2 : i32, i32, i32, i32
  }
  func.func @transform_2(%arg0: i32, %arg1: i32) -> (i32, i32, i32, i32) {
    %c1_i32 = arith.constant 1 : i32
    %0 = arith.muli %arg1, %c1_i32 : i32
    %c1_i32_0 = arith.constant 1 : i32
    %1 = arith.addi %0, %c1_i32_0 : i32
    %c0_i32 = arith.constant 0 : i32
    %2 = arith.minsi %1, %c0_i32 : i32
    %c0_i32_1 = arith.constant 0 : i32
    %c0_i32_2 = arith.constant 0 : i32
    %c0_i32_3 = arith.constant 0 : i32
    return %arg0, %2, %c0_i32_1, %c0_i32_2 : i32, i32, i32, i32
  }
  func.func @transform_3(%arg0: i32, %arg1: i32) -> (i32, i32, i32) {
    %c0_i32 = arith.constant 0 : i32
    %c0_i32_0 = arith.constant 0 : i32
    %c0_i32_1 = arith.constant 0 : i32
    %c0_i32_2 = arith.constant 0 : i32
    return %c0_i32, %c0_i32_0, %c0_i32_1 : i32, i32, i32
  }
  func.func @transform_4(%arg0: i32, %arg1: i32) -> (i32, i32) {
    %c0_i32 = arith.constant 0 : i32
    %c0_i32_0 = arith.constant 0 : i32
    %c0_i32_1 = arith.constant 0 : i32
    return %c0_i32, %c0_i32_0 : i32, i32
  }
  func.func @transform_5(%arg0: i32, %arg1: i32) -> (i32, i32) {
    %c0_i32 = arith.constant 0 : i32
    %c0_i32_0 = arith.constant 0 : i32
    %c0_i32_1 = arith.constant 0 : i32
    return %c0_i32, %c0_i32_0 : i32, i32
  }
  func.func @transform_6(%arg0: i32, %arg1: i32) -> (i32, i32, i32, i32) {
    %c0_i32 = arith.constant 0 : i32
    %c0_i32_0 = arith.constant 0 : i32
    %c0_i32_1 = arith.constant 0 : i32
    return %arg0, %arg1, %c0_i32, %c0_i32_0 : i32, i32, i32, i32
  }
  func.func @transform_7(%arg0: i32, %arg1: i32) -> (i32, i32, i32) {
    %c1_i32 = arith.constant 1 : i32
    %0 = arith.muli %arg0, %c1_i32 : i32
    %1 = arith.addi %0, %arg1 : i32
    %c0_i32 = arith.constant 0 : i32
    %c0_i32_0 = arith.constant 0 : i32
    %c0_i32_1 = arith.constant 0 : i32
    return %1, %c0_i32, %c0_i32_0 : i32, i32, i32
  }
}

module attributes {stable_mosaic.version = 11 : i64} {
  func.func @_conv3x3_kernel(%arg0: i32, %arg1: i32, %arg2: memref<1x16x16x32xbf16, #tpu.memory_space<vmem>>, %arg3: memref<1x16x16x32xbf16, #tpu.memory_space<vmem>>, %arg4: memref<1x16x16x32xbf16, #tpu.memory_space<vmem>>, %arg5: memref<288x32xbf16, #tpu.memory_space<vmem>>, %arg6: memref<1x32xf32, #tpu.memory_space<vmem>>, %arg7: memref<1x32xf32, #tpu.memory_space<vmem>>, %arg8: memref<1x16x16x32xbf16, #tpu.memory_space<vmem>>, %arg9: memref<1x2x32xf32, #tpu.memory_space<vmem>>) attributes {dimension_semantics = [#tpu.dimension_semantics<parallel>, #tpu.dimension_semantics<parallel>], iteration_bounds = array<i64: 2, 1>, scalar_prefetch = 0 : i64, scratch_operands = 0 : i64, tpu.core_type = #tpu.core_type<tc>, window_params = [{transform_indices = @transform_0, window_bounds = array<i64: 1, 16, 16, 32>}, {transform_indices = @transform_1, window_bounds = array<i64: 1, 16, 16, 32>}, {transform_indices = @transform_2, window_bounds = array<i64: 1, 16, 16, 32>}, {pipeline_mode = #tpu.pipeline_mode<synchronous>, transform_indices = @transform_3, window_bounds = array<i64: 288, 32>}, {pipeline_mode = #tpu.pipeline_mode<synchronous>, transform_indices = @transform_4, window_bounds = array<i64: 1, 32>}, {pipeline_mode = #tpu.pipeline_mode<synchronous>, transform_indices = @transform_5, window_bounds = array<i64: 1, 32>}, {transform_indices = @transform_6, window_bounds = array<i64: 1, 16, 16, 32>}, {transform_indices = @transform_7, window_bounds = array<i64: 1, 2, 32>}]} {
    %c0 = arith.constant 0 : index
    %c0_0 = arith.constant 0 : index
    %c0_1 = arith.constant 0 : index
    %c0_2 = arith.constant 0 : index
    %0 = vector.load %arg2[%c0, %c0_0, %c0_1, %c0_2] : memref<1x16x16x32xbf16, #tpu.memory_space<vmem>>, vector<1x16x16x32xbf16>
    %1 = vector.shape_cast %0 : vector<1x16x16x32xbf16> to vector<16x16x32xbf16>
    %2 = arith.extf %1 : vector<16x16x32xbf16> to vector<16x16x32xf32>
    %c0_3 = arith.constant 0 : index
    %c0_4 = arith.constant 0 : index
    %3 = vector.load %arg6[%c0_3, %c0_4] : memref<1x32xf32, #tpu.memory_space<vmem>>, vector<1x32xf32>
    %4 = vector.shape_cast %3 : vector<1x32xf32> to vector<1x1x32xf32>
    %5 = vector.broadcast %4 : vector<1x1x32xf32> to vector<16x16x32xf32>
    %6 = arith.mulf %2, %5 : vector<16x16x32xf32>
    %c0_5 = arith.constant 0 : index
    %c0_6 = arith.constant 0 : index
    %7 = vector.load %arg7[%c0_5, %c0_6] : memref<1x32xf32, #tpu.memory_space<vmem>>, vector<1x32xf32>
    %8 = vector.shape_cast %7 : vector<1x32xf32> to vector<1x1x32xf32>
    %9 = vector.broadcast %8 : vector<1x1x32xf32> to vector<16x16x32xf32>
    %10 = arith.addf %6, %9 : vector<16x16x32xf32>
    %cst = arith.constant 0.000000e+00 : f32
    %11 = vector.broadcast %cst : f32 to vector<16x16x32xf32>
    %12 = arith.maximumf %10, %11 : vector<16x16x32xf32>
    %13 = arith.truncf %12 : vector<16x16x32xf32> to vector<16x16x32xbf16>
    %c0_7 = arith.constant 0 : index
    %c15 = arith.constant 15 : index
    %c0_8 = arith.constant 0 : index
    %c0_9 = arith.constant 0 : index
    %14 = vector.load %arg3[%c0_7, %c15, %c0_8, %c0_9] : memref<1x16x16x32xbf16, #tpu.memory_space<vmem>>, vector<1x1x16x32xbf16>
    %15 = vector.shape_cast %14 : vector<1x1x16x32xbf16> to vector<1x16x32xbf16>
    %16 = arith.extf %15 : vector<1x16x32xbf16> to vector<1x16x32xf32>
    %c0_10 = arith.constant 0 : index
    %c0_11 = arith.constant 0 : index
    %17 = vector.load %arg6[%c0_10, %c0_11] : memref<1x32xf32, #tpu.memory_space<vmem>>, vector<1x32xf32>
    %18 = vector.shape_cast %17 : vector<1x32xf32> to vector<1x1x32xf32>
    %19 = vector.broadcast %18 : vector<1x1x32xf32> to vector<1x16x32xf32>
    %20 = arith.mulf %16, %19 : vector<1x16x32xf32>
    %c0_12 = arith.constant 0 : index
    %c0_13 = arith.constant 0 : index
    %21 = vector.load %arg7[%c0_12, %c0_13] : memref<1x32xf32, #tpu.memory_space<vmem>>, vector<1x32xf32>
    %22 = vector.shape_cast %21 : vector<1x32xf32> to vector<1x1x32xf32>
    %23 = vector.broadcast %22 : vector<1x1x32xf32> to vector<1x16x32xf32>
    %24 = arith.addf %20, %23 : vector<1x16x32xf32>
    %cst_14 = arith.constant 0.000000e+00 : f32
    %25 = vector.broadcast %cst_14 : f32 to vector<1x16x32xf32>
    %26 = arith.maximumf %24, %25 : vector<1x16x32xf32>
    %27 = arith.truncf %26 : vector<1x16x32xf32> to vector<1x16x32xbf16>
    %c0_15 = arith.constant 0 : index
    %c0_16 = arith.constant 0 : index
    %c0_17 = arith.constant 0 : index
    %c0_18 = arith.constant 0 : index
    %28 = vector.load %arg4[%c0_15, %c0_16, %c0_17, %c0_18] : memref<1x16x16x32xbf16, #tpu.memory_space<vmem>>, vector<1x1x16x32xbf16>
    %29 = vector.shape_cast %28 : vector<1x1x16x32xbf16> to vector<1x16x32xbf16>
    %30 = arith.extf %29 : vector<1x16x32xbf16> to vector<1x16x32xf32>
    %c0_19 = arith.constant 0 : index
    %c0_20 = arith.constant 0 : index
    %31 = vector.load %arg6[%c0_19, %c0_20] : memref<1x32xf32, #tpu.memory_space<vmem>>, vector<1x32xf32>
    %32 = vector.shape_cast %31 : vector<1x32xf32> to vector<1x1x32xf32>
    %33 = vector.broadcast %32 : vector<1x1x32xf32> to vector<1x16x32xf32>
    %34 = arith.mulf %30, %33 : vector<1x16x32xf32>
    %c0_21 = arith.constant 0 : index
    %c0_22 = arith.constant 0 : index
    %35 = vector.load %arg7[%c0_21, %c0_22] : memref<1x32xf32, #tpu.memory_space<vmem>>, vector<1x32xf32>
    %36 = vector.shape_cast %35 : vector<1x32xf32> to vector<1x1x32xf32>
    %37 = vector.broadcast %36 : vector<1x1x32xf32> to vector<1x16x32xf32>
    %38 = arith.addf %34, %37 : vector<1x16x32xf32>
    %cst_23 = arith.constant 0.000000e+00 : f32
    %39 = vector.broadcast %cst_23 : f32 to vector<1x16x32xf32>
    %40 = arith.maximumf %38, %39 : vector<1x16x32xf32>
    %41 = arith.truncf %40 : vector<1x16x32xf32> to vector<1x16x32xbf16>
    %cst_24 = arith.constant 0.000000e+00 : bf16
    %42 = vector.broadcast %cst_24 : bf16 to vector<1x16x32xbf16>
    %c0_i32 = arith.constant 0 : i32
    %43 = arith.cmpi eq, %arg1, %c0_i32 : i32
    %44 = arith.select %43, %42, %27 : vector<1x16x32xbf16>
    %c0_i32_25 = arith.constant 0 : i32
    %45 = arith.cmpi eq, %arg1, %c0_i32_25 : i32
    %46 = arith.select %45, %42, %41 : vector<1x16x32xbf16>
    %47 = tpu.concatenate %44, %13, %46 in 0 : vector<1x16x32xbf16>, vector<16x16x32xbf16>, vector<1x16x32xbf16> -> vector<18x16x32xbf16>
    %cst_26 = arith.constant 0.000000e+00 : bf16
    %48 = vector.broadcast %cst_26 : bf16 to vector<18x1x32xbf16>
    %49 = tpu.concatenate %48, %47, %48 in 1 : vector<18x1x32xbf16>, vector<18x16x32xbf16>, vector<18x1x32xbf16> -> vector<18x18x32xbf16>
    %50 = vector.extract_strided_slice %49 {offsets = [0, 0, 0], sizes = [16, 16, 32], strides = [1, 1, 1]} : vector<18x18x32xbf16> to vector<16x16x32xbf16>
    %51 = vector.extract_strided_slice %49 {offsets = [0, 1, 0], sizes = [16, 16, 32], strides = [1, 1, 1]} : vector<18x18x32xbf16> to vector<16x16x32xbf16>
    %52 = vector.extract_strided_slice %49 {offsets = [0, 2, 0], sizes = [16, 16, 32], strides = [1, 1, 1]} : vector<18x18x32xbf16> to vector<16x16x32xbf16>
    %53 = vector.extract_strided_slice %49 {offsets = [1, 0, 0], sizes = [16, 16, 32], strides = [1, 1, 1]} : vector<18x18x32xbf16> to vector<16x16x32xbf16>
    %54 = vector.extract_strided_slice %49 {offsets = [1, 1, 0], sizes = [16, 16, 32], strides = [1, 1, 1]} : vector<18x18x32xbf16> to vector<16x16x32xbf16>
    %55 = vector.extract_strided_slice %49 {offsets = [1, 2, 0], sizes = [16, 16, 32], strides = [1, 1, 1]} : vector<18x18x32xbf16> to vector<16x16x32xbf16>
    %56 = vector.extract_strided_slice %49 {offsets = [2, 0, 0], sizes = [16, 16, 32], strides = [1, 1, 1]} : vector<18x18x32xbf16> to vector<16x16x32xbf16>
    %57 = vector.extract_strided_slice %49 {offsets = [2, 1, 0], sizes = [16, 16, 32], strides = [1, 1, 1]} : vector<18x18x32xbf16> to vector<16x16x32xbf16>
    %58 = vector.extract_strided_slice %49 {offsets = [2, 2, 0], sizes = [16, 16, 32], strides = [1, 1, 1]} : vector<18x18x32xbf16> to vector<16x16x32xbf16>
    %59 = tpu.concatenate %50, %51, %52, %53, %54, %55, %56, %57, %58 in 2 : vector<16x16x32xbf16>, vector<16x16x32xbf16>, vector<16x16x32xbf16>, vector<16x16x32xbf16>, vector<16x16x32xbf16>, vector<16x16x32xbf16>, vector<16x16x32xbf16>, vector<16x16x32xbf16>, vector<16x16x32xbf16> -> vector<16x16x288xbf16>
    %60 = vector.shape_cast %59 : vector<16x16x288xbf16> to vector<256x288xbf16>
    %c0_27 = arith.constant 0 : index
    %c0_28 = arith.constant 0 : index
    %61 = vector.load %arg5[%c0_27, %c0_28] : memref<288x32xbf16, #tpu.memory_space<vmem>>, vector<288x32xbf16>
    %cst_29 = arith.constant dense<0.000000e+00> : vector<256x32xf32>
    %62 = tpu.matmul %60, %61, %cst_29 {dimension_numbers = #tpu.dot_dimension_numbers<[1], [0], [0], [1], [0, 0, 1, 1], [], []>} : vector<256x288xbf16>, vector<288x32xbf16>, vector<256x32xf32> -> vector<256x32xf32>
    %63 = vector.shape_cast %62 : vector<256x32xf32> to vector<16x16x32xf32>
    %64 = arith.truncf %63 : vector<16x16x32xf32> to vector<16x16x32xbf16>
    %c0_30 = arith.constant 0 : index
    %c0_31 = arith.constant 0 : index
    %c0_32 = arith.constant 0 : index
    %c0_33 = arith.constant 0 : index
    %65 = vector.load %arg8[%c0_30, %c0_31, %c0_32, %c0_33] : memref<1x16x16x32xbf16, #tpu.memory_space<vmem>>, vector<1x16x16x32xbf16>
    %66 = vector.shape_cast %65 : vector<1x16x16x32xbf16> to vector<16x16x32xbf16>
    %67 = vector.shape_cast %64 : vector<16x16x32xbf16> to vector<1x16x16x32xbf16>
    tpu.vector_store %arg8[%c0_30, %c0_31, %c0_32, %c0_33], %67 {strides = array<i32>} : memref<1x16x16x32xbf16, #tpu.memory_space<vmem>>, vector<1x16x16x32xbf16>,
    %cst_34 = arith.constant dense<0.000000e+00> : vector<32xf32>
    %68 = vector.multi_reduction <add>, %62, %cst_34 [0] : vector<256x32xf32> to vector<32xf32>
    %69 = vector.shape_cast %68 : vector<32xf32> to vector<1x32xf32>
    %70 = arith.mulf %62, %62 : vector<256x32xf32>
    %cst_35 = arith.constant dense<0.000000e+00> : vector<32xf32>
    %71 = vector.multi_reduction <add>, %70, %cst_35 [0] : vector<256x32xf32> to vector<32xf32>
    %72 = vector.shape_cast %71 : vector<32xf32> to vector<1x32xf32>
    %73 = tpu.concatenate %69, %72 in 0 : vector<1x32xf32>, vector<1x32xf32> -> vector<2x32xf32>
    %c0_36 = arith.constant 0 : index
    %c0_37 = arith.constant 0 : index
    %c0_38 = arith.constant 0 : index
    %74 = vector.load %arg9[%c0_36, %c0_37, %c0_38] : memref<1x2x32xf32, #tpu.memory_space<vmem>>, vector<1x2x32xf32>
    %75 = vector.shape_cast %74 : vector<1x2x32xf32> to vector<2x32xf32>
    %76 = vector.shape_cast %73 : vector<2x32xf32> to vector<1x2x32xf32>
    tpu.vector_store %arg9[%c0_36, %c0_37, %c0_38], %76 {strides = array<i32>} : memref<1x2x32xf32, #tpu.memory_space<vmem>>, vector<1x2x32xf32>,
    return
  }
  func.func @transform_0(%arg0: i32, %arg1: i32) -> (i32, i32, i32, i32) {
    %c0_i32 = arith.constant 0 : i32
    %c0_i32_0 = arith.constant 0 : i32
    %c0_i32_1 = arith.constant 0 : i32
    return %arg0, %arg1, %c0_i32, %c0_i32_0 : i32, i32, i32, i32
  }
  func.func @transform_1(%arg0: i32, %arg1: i32) -> (i32, i32, i32, i32) {
    %c1_i32 = arith.constant 1 : i32
    %0 = arith.muli %arg1, %c1_i32 : i32
    %c1_i32_0 = arith.constant 1 : i32
    %1 = arith.subi %0, %c1_i32_0 : i32
    %c0_i32 = arith.constant 0 : i32
    %2 = arith.maxsi %1, %c0_i32 : i32
    %c0_i32_1 = arith.constant 0 : i32
    %c0_i32_2 = arith.constant 0 : i32
    %c0_i32_3 = arith.constant 0 : i32
    return %arg0, %2, %c0_i32_1, %c0_i32_2 : i32, i32, i32, i32
  }
  func.func @transform_2(%arg0: i32, %arg1: i32) -> (i32, i32, i32, i32) {
    %c1_i32 = arith.constant 1 : i32
    %0 = arith.muli %arg1, %c1_i32 : i32
    %c1_i32_0 = arith.constant 1 : i32
    %1 = arith.addi %0, %c1_i32_0 : i32
    %c0_i32 = arith.constant 0 : i32
    %2 = arith.minsi %1, %c0_i32 : i32
    %c0_i32_1 = arith.constant 0 : i32
    %c0_i32_2 = arith.constant 0 : i32
    %c0_i32_3 = arith.constant 0 : i32
    return %arg0, %2, %c0_i32_1, %c0_i32_2 : i32, i32, i32, i32
  }
  func.func @transform_3(%arg0: i32, %arg1: i32) -> (i32, i32) {
    %c0_i32 = arith.constant 0 : i32
    %c0_i32_0 = arith.constant 0 : i32
    %c0_i32_1 = arith.constant 0 : i32
    return %c0_i32, %c0_i32_0 : i32, i32
  }
  func.func @transform_4(%arg0: i32, %arg1: i32) -> (i32, i32) {
    %c0_i32 = arith.constant 0 : i32
    %c0_i32_0 = arith.constant 0 : i32
    %c0_i32_1 = arith.constant 0 : i32
    return %c0_i32, %c0_i32_0 : i32, i32
  }
  func.func @transform_5(%arg0: i32, %arg1: i32) -> (i32, i32) {
    %c0_i32 = arith.constant 0 : i32
    %c0_i32_0 = arith.constant 0 : i32
    %c0_i32_1 = arith.constant 0 : i32
    return %c0_i32, %c0_i32_0 : i32, i32
  }
  func.func @transform_6(%arg0: i32, %arg1: i32) -> (i32, i32, i32, i32) {
    %c0_i32 = arith.constant 0 : i32
    %c0_i32_0 = arith.constant 0 : i32
    %c0_i32_1 = arith.constant 0 : i32
    return %arg0, %arg1, %c0_i32, %c0_i32_0 : i32, i32, i32, i32
  }
  func.func @transform_7(%arg0: i32, %arg1: i32) -> (i32, i32, i32) {
    %c1_i32 = arith.constant 1 : i32
    %0 = arith.muli %arg0, %c1_i32 : i32
    %1 = arith.addi %0, %arg1 : i32
    %c0_i32 = arith.constant 0 : i32
    %c0_i32_0 = arith.constant 0 : i32
    %c0_i32_1 = arith.constant 0 : i32
    return %1, %c0_i32, %c0_i32_0 : i32, i32, i32
  }
}

module attributes {stable_mosaic.version = 11 : i64} {
  func.func @_bn_relu_pool_kernel(%arg0: i32, %arg1: i32, %arg2: memref<1x16x512xbf16, #tpu.memory_space<vmem>>, %arg3: memref<1x1x512xf32, #tpu.memory_space<vmem>>, %arg4: memref<1x1x512xf32, #tpu.memory_space<vmem>>, %arg5: memref<1x1x512xf32, #tpu.memory_space<vmem>>) attributes {dimension_semantics = [#tpu.dimension_semantics<parallel>, #tpu.dimension_semantics<parallel>], iteration_bounds = array<i64: 2, 1>, scalar_prefetch = 0 : i64, scratch_operands = 0 : i64, tpu.core_type = #tpu.core_type<tc>, window_params = [{transform_indices = @transform_0, window_bounds = array<i64: 1, 16, 512>}, {pipeline_mode = #tpu.pipeline_mode<synchronous>, transform_indices = @transform_1, window_bounds = array<i64: 1, 1, 512>}, {pipeline_mode = #tpu.pipeline_mode<synchronous>, transform_indices = @transform_2, window_bounds = array<i64: 1, 1, 512>}, {transform_indices = @transform_3, window_bounds = array<i64: 1, 1, 512>}]} {
    %c0 = arith.constant 0 : index
    %c0_0 = arith.constant 0 : index
    %c0_1 = arith.constant 0 : index
    %0 = vector.load %arg2[%c0, %c0_0, %c0_1] : memref<1x16x512xbf16, #tpu.memory_space<vmem>>, vector<1x16x512xbf16>
    %1 = vector.shape_cast %0 : vector<1x16x512xbf16> to vector<16x512xbf16>
    %2 = arith.extf %1 : vector<16x512xbf16> to vector<16x512xf32>
    %c0_2 = arith.constant 0 : index
    %c0_3 = arith.constant 0 : index
    %c0_4 = arith.constant 0 : index
    %3 = vector.load %arg3[%c0_2, %c0_3, %c0_4] : memref<1x1x512xf32, #tpu.memory_space<vmem>>, vector<1x1x512xf32>
    %4 = vector.shape_cast %3 : vector<1x1x512xf32> to vector<1x512xf32>
    %5 = vector.broadcast %4 : vector<1x512xf32> to vector<16x512xf32>
    %6 = arith.mulf %2, %5 : vector<16x512xf32>
    %c0_5 = arith.constant 0 : index
    %c0_6 = arith.constant 0 : index
    %c0_7 = arith.constant 0 : index
    %7 = vector.load %arg4[%c0_5, %c0_6, %c0_7] : memref<1x1x512xf32, #tpu.memory_space<vmem>>, vector<1x1x512xf32>
    %8 = vector.shape_cast %7 : vector<1x1x512xf32> to vector<1x512xf32>
    %9 = vector.broadcast %8 : vector<1x512xf32> to vector<16x512xf32>
    %10 = arith.addf %6, %9 : vector<16x512xf32>
    %cst = arith.constant 0.000000e+00 : f32
    %11 = vector.broadcast %cst : f32 to vector<16x512xf32>
    %12 = arith.maximumf %10, %11 : vector<16x512xf32>
    %cst_8 = arith.constant dense<0.000000e+00> : vector<512xf32>
    %13 = vector.multi_reduction <add>, %12, %cst_8 [0] : vector<16x512xf32> to vector<512xf32>
    %14 = vector.shape_cast %13 : vector<512xf32> to vector<1x512xf32>
    %c0_9 = arith.constant 0 : index
    %c0_10 = arith.constant 0 : index
    %c0_11 = arith.constant 0 : index
    %15 = vector.load %arg5[%c0_9, %c0_10, %c0_11] : memref<1x1x512xf32, #tpu.memory_space<vmem>>, vector<1x1x512xf32>
    %16 = vector.shape_cast %15 : vector<1x1x512xf32> to vector<1x512xf32>
    %17 = vector.shape_cast %14 : vector<1x512xf32> to vector<1x1x512xf32>
    tpu.vector_store %arg5[%c0_9, %c0_10, %c0_11], %17 {strides = array<i32>} : memref<1x1x512xf32, #tpu.memory_space<vmem>>, vector<1x1x512xf32>,
    return
  }
  func.func @transform_0(%arg0: i32, %arg1: i32) -> (i32, i32, i32) {
    %c0_i32 = arith.constant 0 : i32
    %c0_i32_0 = arith.constant 0 : i32
    return %arg0, %arg1, %c0_i32 : i32, i32, i32
  }
  func.func @transform_1(%arg0: i32, %arg1: i32) -> (i32, i32, i32) {
    %c0_i32 = arith.constant 0 : i32
    %c0_i32_0 = arith.constant 0 : i32
    %c0_i32_1 = arith.constant 0 : i32
    %c0_i32_2 = arith.constant 0 : i32
    return %c0_i32, %c0_i32_0, %c0_i32_1 : i32, i32, i32
  }
  func.func @transform_2(%arg0: i32, %arg1: i32) -> (i32, i32, i32) {
    %c0_i32 = arith.constant 0 : i32
    %c0_i32_0 = arith.constant 0 : i32
    %c0_i32_1 = arith.constant 0 : i32
    %c0_i32_2 = arith.constant 0 : i32
    return %c0_i32, %c0_i32_0, %c0_i32_1 : i32, i32, i32
  }
  func.func @transform_3(%arg0: i32, %arg1: i32) -> (i32, i32, i32) {
    %c1_i32 = arith.constant 1 : i32
    %0 = arith.muli %arg0, %c1_i32 : i32
    %1 = arith.addi %0, %arg1 : i32
    %c0_i32 = arith.constant 0 : i32
    %c0_i32_0 = arith.constant 0 : i32
    %c0_i32_1 = arith.constant 0 : i32
    return %1, %c0_i32, %c0_i32_0 : i32, i32, i32
  }
}

</mosaic_0001>

<llo_original>
// kernel: tile.10
$region0: #{tile.10}
  #allocation0 [shape = 's32[1]{0}', space=sflag, size = 0x4, scoped, tag = 'scoped memory for tile.10']
  %s0 = inlined_call_operand.vmem [shape: f32[32], index: 0, kind: input, shape index: {}]
  %s1 = inlined_call_operand.vmem [shape: f32[16,32], index: 1, kind: output, shape index: {}]
  // Predicated region
  $region2: #{tile.10} parent=0 // pred_check
    _
  $region3: #{tile.10} parent=0 // pred_check_branch
    %3 = sbr.rel (0) target = $region5
  $region4: #{tile.10} parent=0 // pred_region
    _
  $region5: #{tile.10} parent=0 // pred_fallthru
    _
  %v4 = vld [vmem:[%s0] ss:$0 sm:$0xff]
  %5 = vst [vmem:[%s1] sm:$0xff] %v4
  %s6 = scalar_lea.vmem %s1, 8
  %7 = vst [vmem:[%s6] sm:$0xff] %v4

// kernel: tile.11
$region0: #{tile.11}
  %s0 = inlined_call_operand.vmem [shape: f32[16,32], index: 0, kind: input, shape index: {}]
  %s1 = inlined_call_operand.vmem [shape: f32[1,1,512], index: 1, kind: output, shape index: {}]
  $region1: #{tile.11} parent=0
    #allocation0 [shape = 'u8[16384]{0}', space=vmem, size = 0x4000, scoped, tag = 'scoped mem for output reshape']
    %v2 = vld [vmem:[%s0] ss:$4 sm:$0xf]
    %vm3 = vcmask 261120
    %4 = vst.msk [vmem:[#allocation0] ss:$8 sm:$0xf] %vm3, %v2
    %s5 = scalar_lea.vmem %s0, 3
    %v6 = vld [vmem:[%s5] ss:$4 sm:$0xf]
    %7 = vrot.lane.b32.xlu0 %v6, 96
    %v8 = vpop.permute.xlu0 %7
    %vm9 = vcmask 1048320
    %10 = vst.msk [vmem:[#allocation0] ss:$8 sm:$0xf] %vm9, %v8
    %s11 = scalar_lea.vmem %s0, 2
    %v12 = vld [vmem:[%s11] ss:$4 sm:$0xf]
    %13 = vrot.lane.b32.xlu0 %v12, 64
    %v14 = vpop.permute.xlu0 %13
    %vm15 = vcmask 785920
    %16 = vst.msk [vmem:[#allocation0] ss:$8 sm:$0xf] %vm15, %v14
    %s17 = scalar_lea.vmem %s0, 1
    %v18 = vld [vmem:[%s17] ss:$4 sm:$0xf]
    %19 = vrot.lane.b32.xlu0 %v18, 32
    %v20 = vpop.permute.xlu0 %19
    %vm21 = vcmask 523520
    %22 = vst.msk [vmem:[#allocation0] ss:$8 sm:$0xf] %vm21, %v20
    %s24 = sshllo.u32 0, 1
    %v26 = vld [vmem:[#allocation0] sm:%s24]
    %s27 = sshllo.u32 0, 1
    %28 = vst [vmem:[%s1] sm:%s27] %v26
    %s29 = scalar_lea.vmem [#allocation0], 8
    %v30 = vld [vmem:[%s29] sm:%s24]
    %s31 = sshllo.u32 0, 1
    %s32 = scalar_lea.vmem %s1, 1
    %33 = vst [vmem:[%s32] sm:%s31] %v30
    %s34 = scalar_lea.vmem [#allocation0], 16
    %v35 = vld [vmem:[%s34] sm:%s24]
    %s36 = sshllo.u32 0, 1
    %s37 = smul.addr 1, 2
    %s38 = scalar_lea.vmem %s1, %s37
    %39 = vst [vmem:[%s38] sm:%s36] %v35
    %s40 = scalar_lea.vmem [#allocation0], 24
    %v41 = vld [vmem:[%s40] sm:%s24]
    %s42 = sshllo.u32 0, 1
    %s43 = smul.addr 1, 3
    %s44 = scalar_lea.vmem %s1, %s43
    %45 = vst [vmem:[%s44] sm:%s42] %v41

// kernel: conv_block_forward.5
$region0: #{conv_block_forward.5}
  #allocation0 [shape = 'u32[]', space=smem, size = 0x4, offset = 0x4, fixed_abs, tag = 'smem constant byte address 0x4 - core index']
  #allocation1 [shape = 'u32[144,128]{1,0:T(1,128)}', space=vmem, size = 0x12000, scoped, tag = 'internal scratch']
  %s0 = inlined_call_operand.vmem [shape: bf16[2,16,512], index: 0, kind: input, shape index: {}]
  %s1 = inlined_call_operand.vmem [shape: f32[1,1,512], index: 1, kind: input, shape index: {}]
  %s2 = inlined_call_operand.vmem [shape: f32[1,1,512], index: 2, kind: input, shape index: {}]
  %s3 = inlined_call_operand.vmem [shape: f32[2,1,512], index: 3, kind: output, shape index: {}]
  %s4 = sld [smem:[#allocation0]]
  $region45: #{conv_block_forward.5} parent=0
    _
  %s6 = ssub.s32 1, %s4
  %s7 = scalar_select 0, %s6, %s4
  loop: start=0, step=1, limit=4
  $region2: #{conv_block_forward.5} parent=0 // loop_pre_header
    _
  $region3: #{conv_block_forward.5} parent=0 // loop_header
    %s9 = sphi 0, %s13
    %p10 = scmp.ge.s32.totalorder %s9, 4
    %s16 = sphi 0, %s28
    %s17 = sphi 0, %s24
    %s18 = sphi 0, %s16
    %s19 = sphi 0, %s17
    %s20 = sphi 0, %s18
    %s21 = sphi 0, %s19
    %s33 = sphi 0, %s35
    %s36 = sphi 0, %s33
    %s37 = sphi 0, %s36
    %s53 = sphi 0, %s37
    %s57 = sphi 0, %s57
    %s59 = sphi 0, %s57
    %s60 = sphi 0, %s59
    %s74 = sphi 0, %s60
    %s78 = sphi 0, %s78
    %s80 = sphi 0, %s78
    %s81 = sphi 0, %s80
    %s95 = sphi 0, %s81
    %s103 = sphi 0, %s105
    %s106 = sphi 0, %s103
    %s107 = sphi 0, %s106
    %s123 = sphi 0, %s107
  $region4: #{conv_block_forward.5} parent=0 // loop_header_branch
    %12 = sbr.rel (%p10) target = $region8
  $region5: #{conv_block_forward.5} parent=0 // loop_body
    %s14 = ssub.s32 %s9, 1
    %s15 = ssub.s32 %s9, 2
    %s22 = sadd.s32 1, %s17
    %p23 = scmp.ge.s32.totalorder %s22, 1
    %s24 = scalar_select %p23, 0, %s22
    %s25 = sadd.s32 1, %s16
    %s26 = scalar_select %p23, %s25, %s16
    %p27 = scmp.ge.s32.totalorder %s26, 2
    %s28 = scalar_select %p27, 0, %s26
    %s29 = ssub.s32 %s16, %s28
    %s30 = ssub.s32 %s17, %s24
    %s31 = sor.u32 %s29, %s30
    %p32 = scmp.eq.s32.totalorder %s31, 0
    %s34 = sadd.s32 %s33, 1
    %s35 = scalar_select %p32, %s33, %s34
    %p38 = pneg %p32
    %p39 = scmp.eq.s32.totalorder %s9, 1
    %p40 = por %p38, %p39
    %p41 = scmp.ne.s32.totalorder %s33, %s36
    %p42 = scmp.eq.s32.totalorder %s9, 0
    %p43 = por %p41, %p42
    %p44 = scmp.ne.s32.totalorder %s33, %s36
    %p45 = scmp.eq.s32.totalorder %s14, 1
    %p46 = por %p44, %p45
    %p47 = scmp.ne.s32.totalorder %s36, %s37
    %p48 = scmp.eq.s32.totalorder %s14, 0
    %p49 = por %p47, %p48
    %p50 = scmp.ne.s32.totalorder %s36, %s37
    %p51 = scmp.eq.s32.totalorder %s15, 1
    %p52 = por %p50, %p51
    %p54 = scmp.ne.s32.totalorder %s37, %s53
    %p55 = scmp.eq.s32.totalorder %s15, 0
    %p56 = por %p54, %p55
    %s58 = sadd.s32 %s57, 1
    %p61 = scmp.eq.s32.totalorder %s9, 1
    %p62 = scmp.ne.s32.totalorder %s57, %s59
    %p63 = scmp.eq.s32.totalorder %s9, 0
    %p64 = por %p62, %p63
    %p65 = scmp.ne.s32.totalorder %s57, %s59
    %p66 = scmp.eq.s32.totalorder %s14, 1
    %p67 = por %p65, %p66
    %p68 = scmp.ne.s32.totalorder %s59, %s60
    %p69 = scmp.eq.s32.totalorder %s14, 0
    %p70 = por %p68, %p69
    %p71 = scmp.ne.s32.totalorder %s59, %s60
    %p72 = scmp.eq.s32.totalorder %s15, 1
    %p73 = por %p71, %p72
    %p75 = scmp.ne.s32.totalorder %s60, %s74
    %p76 = scmp.eq.s32.totalorder %s15, 0
    %p77 = por %p75, %p76
    %s79 = sadd.s32 %s78, 1
    %p82 = scmp.eq.s32.totalorder %s9, 1
    %p83 = scmp.ne.s32.totalorder %s78, %s80
    %p84 = scmp.eq.s32.totalorder %s9, 0
    %p85 = por %p83, %p84
    %p86 = scmp.ne.s32.totalorder %s78, %s80
    %p87 = scmp.eq.s32.totalorder %s14, 1
    %p88 = por %p86, %p87
    %p89 = scmp.ne.s32.totalorder %s80, %s81
    %p90 = scmp.eq.s32.totalorder %s14, 0
    %p91 = por %p89, %p90
    %p92 = scmp.ne.s32.totalorder %s80, %s81
    %p93 = scmp.eq.s32.totalorder %s15, 1
    %p94 = por %p92, %p93
    %p96 = scmp.ne.s32.totalorder %s81, %s95
    %p97 = scmp.eq.s32.totalorder %s15, 0
    %p98 = por %p96, %p97
    %s99 = sadd.s32 %s16, %s17
    %s100 = sadd.s32 %s28, %s24
    %s101 = ssub.s32 %s99, %s100
    %p102 = scmp.eq.s32.totalorder %s101, 0
    %s104 = sadd.s32 %s103, 1
    %s105 = scalar_select %p102, %s103, %s104
    %p108 = pneg %p102
    %p109 = scmp.eq.s32.totalorder %s9, 1
    %p110 = por %p108, %p109
    %p111 = scmp.ne.s32.totalorder %s103, %s106
    %p112 = scmp.eq.s32.totalorder %s9, 0
    %p113 = por %p111, %p112
    %p114 = scmp.ne.s32.totalorder %s103, %s106
    %p115 = scmp.eq.s32.totalorder %s14, 1
    %p116 = por %p114, %p115
    %p117 = scmp.ne.s32.totalorder %s106, %s107
    %p118 = scmp.eq.s32.totalorder %s14, 0
    %p119 = por %p117, %p118
    %p120 = scmp.ne.s32.totalorder %s106, %s107
    %p121 = scmp.eq.s32.totalorder %s15, 1
    %p122 = por %p120, %p121
    %p124 = scmp.ne.s32.totalorder %s107, %s123
    %p125 = scmp.eq.s32.totalorder %s15, 0
    %p126 = por %p124, %p125
    %p127 = scmp.le.s32.totalorder 1, %s9
    %p128 = scmp.lt.s32.totalorder %s9, 3
    %p129 = pnand %p127, %p128
    %p130 = pneg %p129
    // Predicated region
    $region9: #{conv_block_forward.5} parent=5 // pred_check
      _
    $region10: #{conv_block_forward.5} parent=5 // pred_check_branch
      %132 = sbr.rel (%p129) target = $region12
    $region11: #{conv_block_forward.5} parent=5 // pred_region
      %s133 = ssub.s32 %s9, 1
      // Predicated region
      $region13: #{conv_block_forward.5} parent=11 // pred_check
        %p134 = pneg %p70
      $region14: #{conv_block_forward.5} parent=11 // pred_check_branch
        %136 = sbr.rel (%p134) target = $region16
      $region15: #{conv_block_forward.5} parent=11 // pred_region
        _
      $region16: #{conv_block_forward.5} parent=11 // pred_fallthru
        _
      // Predicated region
      $region17: #{conv_block_forward.5} parent=11 // pred_check
        %p137 = pneg %p91
      $region18: #{conv_block_forward.5} parent=11 // pred_check_branch
        %139 = sbr.rel (%p137) target = $region20
      $region19: #{conv_block_forward.5} parent=11 // pred_region
        _
      $region20: #{conv_block_forward.5} parent=11 // pred_fallthru
        _
    $region12: #{conv_block_forward.5} parent=5 // pred_fallthru
      _
    %p140 = scmp.lt.s32.totalorder %s9, 2
    // Predicated region
    $region21: #{conv_block_forward.5} parent=5 // pred_check
      %p141 = pneg %p140
    $region22: #{conv_block_forward.5} parent=5 // pred_check_branch
      %143 = sbr.rel (%p141) target = $region24
    $region23: #{conv_block_forward.5} parent=5 // pred_region
      // Predicated region
      $region25: #{conv_block_forward.5} parent=23 // pred_check
        %p144 = pneg %p43
      $region26: #{conv_block_forward.5} parent=23 // pred_check_branch
        %146 = sbr.rel (%p144) target = $region28
      $region27: #{conv_block_forward.5} parent=23 // pred_region
        %s147 = smul.u32 2, %s17
        %p148 = scmp.lt.s32.totalorder %s16, 1
        %s149 = scalar_select %p148, %s16, 1
        %p150 = scmp.lt.s32.totalorder %s147, 1
        %s151 = scalar_select %p150, %s147, 1
        %s152 = smul.addr %s151, 4
        %s153 = smul.addr %s149, 8
        %s154 = sadd.s32 %s152, %s153
        %s155 = smul.addr %s154, 4
        %s156 = scalar_lea.vmem %s0, %s155
        %s157 = smul.u32 2, %s17
      $region28: #{conv_block_forward.5} parent=23 // pred_fallthru
        _
    $region24: #{conv_block_forward.5} parent=5 // pred_fallthru
      _
    %p158 = scmp.le.s32.totalorder 1, %s9
    %p159 = scmp.lt.s32.totalorder %s9, 3
    %p160 = pnand %p158, %p159
    %p161 = pneg %p160
    // Predicated region
    $region29: #{conv_block_forward.5} parent=5 // pred_check
      _
    $region30: #{conv_block_forward.5} parent=5 // pred_check_branch
      %163 = sbr.rel (%p160) target = $region32
    $region31: #{conv_block_forward.5} parent=5 // pred_region
      %s164 = ssub.s32 %s9, 1
      %s165 = smul.u32 2, %s19
      %p166 = scmp.lt.s32.totalorder %s18, 1
      %s167 = scalar_select %p166, %s18, 1
      %p168 = scmp.lt.s32.totalorder %s165, 1
      %s169 = scalar_select %p168, %s165, 1
      %s170 = smul.addr %s169, 4
      %s171 = smul.addr %s167, 8
      %s172 = sadd.s32 %s170, %s171
      %s173 = smul.addr %s172, 4
      %s174 = scalar_lea.vmem %s0, %s173
      %p175 = pneg %p49
      %p176 = pneg %p46
      %p177 = pneg %p70
      %p178 = pneg %p67
      %p179 = pneg %p91
      %p180 = pneg %p88
      %p181 = pneg %p119
      %p182 = pneg %p116
      %s183 = sadd.s32 %s18, %s19
      %p184 = scmp.lt.s32.totalorder %s183, 1
      %s185 = scalar_select %p184, %s183, 1
      %s186 = smul.addr %s185, 4
      %s187 = scalar_lea.vmem %s3, %s186
      %s188 = smul.u32 2, %s19
      %p189 = scmp.lt.s32.totalorder %s18, 1
      %s190 = scalar_select %p189, %s18, 1
      %p191 = scmp.lt.s32.totalorder %s188, 1
      %s192 = scalar_select %p191, %s188, 1
      %s193 = smul.addr %s192, 4
      %s194 = smul.addr %s190, 8
      %s195 = sadd.s32 %s193, %s194
      %s196 = smul.addr %s195, 4
      %s197 = scalar_lea.vmem %s0, %s196
      %s198 = smul.u32 2, %s19
      %s199 = sadd.s32 %s18, %s19
      %p200 = scmp.lt.s32.totalorder %s199, 1
      %s201 = scalar_select %p200, %s199, 1
      %s202 = smul.addr %s201, 4
      %s203 = scalar_lea.vmem %s3, %s202
      %s204 = sadd.s32 %s18, %s19
      %v205 = vld [vmem:[%s197] sm:$0xff]
      %v206 = vld [vmem:[%s197 + $0x8] sm:$0xff]
      %v207 = vld [vmem:[%s197 + $0x10] sm:$0xff]
      %v208 = vld [vmem:[%s197 + $0x18] sm:$0xff]
      %v209 = vunpack.c.l.bf16 %v205
      %v210 = vunpack.c.h.bf16 %v205
      %v211 = vunpack.c.l.bf16 %v206
      %v212 = vunpack.c.h.bf16 %v206
      %v213 = vunpack.c.l.bf16 %v207
      %v214 = vunpack.c.h.bf16 %v207
      %v215 = vunpack.c.l.bf16 %v208
      %v216 = vunpack.c.h.bf16 %v208
      %v217 = vld [vmem:[%s1] sm:$0xf]
      %v219 = vlaneseq
      %v220 = vshrl.u32 %v219, 7
      %v221 = vsub.s32 0, %v220
      %v222 = vrot.slane %v217, %v221
      %v223 = vlaneseq
      %v224 = vshrl.u32 %v223, 7
      %v225 = vsub.s32 1, %v224
      %v226 = vrot.slane %v217, %v225
      %v227 = vlaneseq
      %v228 = vshrl.u32 %v227, 7
      %v229 = vsub.s32 2, %v228
      %v230 = vrot.slane %v217, %v229
      %v231 = vlaneseq
      %v232 = vshrl.u32 %v231, 7
      %v233 = vsub.s32 3, %v232
      %v234 = vrot.slane %v217, %v233
      %v239 = vmul.f32 %v209, %v222
      %v240 = vmul.f32 %v210, %v226
      %v241 = vmul.f32 %v211, %v230
      %v242 = vmul.f32 %v212, %v234
      %v243 = vmul.f32 %v213, %v222
      %v244 = vmul.f32 %v214, %v226
      %v245 = vmul.f32 %v215, %v230
      %v246 = vmul.f32 %v216, %v234
      %v247 = vld [vmem:[%s2] sm:$0xf]
      %v249 = vlaneseq
      %v250 = vshrl.u32 %v249, 7
      %v251 = vsub.s32 0, %v250
      %v252 = vrot.slane %v247, %v251
      %v253 = vlaneseq
      %v254 = vshrl.u32 %v253, 7
      %v255 = vsub.s32 1, %v254
      %v256 = vrot.slane %v247, %v255
      %v257 = vlaneseq
      %v258 = vshrl.u32 %v257, 7
      %v259 = vsub.s32 2, %v258
      %v260 = vrot.slane %v247, %v259
      %v261 = vlaneseq
      %v262 = vshrl.u32 %v261, 7
      %v263 = vsub.s32 3, %v262
      %v264 = vrot.slane %v247, %v263
      %v269 = vadd.f32 %v239, %v252
      %v270 = vadd.f32 %v240, %v256
      %v271 = vadd.f32 %v241, %v260
      %v272 = vadd.f32 %v242, %v264
      %v273 = vadd.f32 %v243, %v252
      %v274 = vadd.f32 %v244, %v256
      %v275 = vadd.f32 %v245, %v260
      %v276 = vadd.f32 %v246, %v264
      %v277 = vmax.f32 %v269, 0.0
      %v278 = vmax.f32 %v270, 0.0
      %v279 = vmax.f32 %v271, 0.0
      %v280 = vmax.f32 %v272, 0.0
      %v281 = vmax.f32 %v273, 0.0
      %v282 = vmax.f32 %v274, 0.0
      %v283 = vmax.f32 %v275, 0.0
      %v284 = vmax.f32 %v276, 0.0
      %v285 = vadd.f32 %v277, %v281
      %v286 = vrot.slane %v285, 4
      %v287 = vadd.f32 %v285, %v286
      %v288 = vrot.slane %v287, 2
      %v289 = vadd.f32 %v287, %v288
      %v290 = vrot.slane %v289, 1
      %v291 = vadd.f32 %v289, %v290
      %v292 = vadd.f32 %v278, %v282
      %v293 = vrot.slane %v292, 4
      %v294 = vadd.f32 %v292, %v293
      %v295 = vrot.slane %v294, 2
      %v296 = vadd.f32 %v294, %v295
      %v297 = vrot.slane %v296, 1
      %v298 = vadd.f32 %v296, %v297
      %v299 = vadd.f32 %v279, %v283
      %v300 = vrot.slane %v299, 4
      %v301 = vadd.f32 %v299, %v300
      %v302 = vrot.slane %v301, 2
      %v303 = vadd.f32 %v301, %v302
      %v304 = vrot.slane %v303, 1
      %v305 = vadd.f32 %v303, %v304
      %v306 = vadd.f32 %v280, %v284
      %v307 = vrot.slane %v306, 4
      %v308 = vadd.f32 %v306, %v307
      %v309 = vrot.slane %v308, 2
      %v310 = vadd.f32 %v308, %v309
      %v311 = vrot.slane %v310, 1
      %v312 = vadd.f32 %v310, %v311
      %v317 = vcombine.low %v291, %v298
      %v318 = vcombine.low %v305, %v312
      %v320 = vunpack.c.l.s4 1966171168
      %v321 = vunpack.c.0.s8 %v320
      %v322 = vlaneseq
      %v323 = vshrl.u32 %v322, 7
      %v324 = vsub.s32 %v321, %v323
      %v325 = vrot.slane %v317, %v324
      %v327 = vunpack.c.l.s4 1966171168
      %v328 = vunpack.c.0.s8 %v327
      %v329 = vlaneseq
      %v330 = vshrl.u32 %v329, 7
      %v331 = vsub.s32 %v328, %v330
      %v332 = vrot.slane %v318, %v331
      %v333 = vcombine.low %v325, %v332
      %v335 = vunpack.c.l.s4 1966171168
      %v336 = vunpack.c.0.s8 %v335
      %v337 = vlaneseq
      %v338 = vshrl.u32 %v337, 7
      %v339 = vsub.s32 %v336, %v338
      %v340 = vrot.slane %v333, %v339
      %v342 = vlaneseq
      %vm343 = vcmp.ge.s32.totalorder %v342, 0
      %vm344 = vcmp.lt.s32.totalorder %v342, 512
      %vm345 = vmand %vm343, %vm344
      %346 = vst.msk [vmem:[%s203] sm:$0xf] %vm345, %v340
      %s347 = sadd.s32 %s18, %s19
      %p348 = scmp.lt.s32.totalorder %s347, 1
      %s349 = scalar_select %p348, %s347, 1
      %s350 = smul.addr %s349, 4
      %s351 = scalar_lea.vmem %s3, %s350
      // Predicated region
      $region33: #{conv_block_forward.5} parent=31 // pred_check
        %p352 = pneg %p116
      $region34: #{conv_block_forward.5} parent=31 // pred_check_branch
        %354 = sbr.rel (%p352) target = $region36
      $region35: #{conv_block_forward.5} parent=31 // pred_region
        %s355 = sadd.s32 %s18, %s19
      $region36: #{conv_block_forward.5} parent=31 // pred_fallthru
        _
    $region32: #{conv_block_forward.5} parent=5 // pred_fallthru
      _
    %p356 = scmp.le.s32.totalorder 2, %s9
    // Predicated region
    $region37: #{conv_block_forward.5} parent=5 // pred_check
      %p357 = pneg %p356
    $region38: #{conv_block_forward.5} parent=5 // pred_check_branch
      %359 = sbr.rel (%p357) target = $region40
    $region39: #{conv_block_forward.5} parent=5 // pred_region
      %s360 = ssub.s32 %s9, 2
      // Predicated region
      $region41: #{conv_block_forward.5} parent=39 // pred_check
        %p361 = pneg %p122
      $region42: #{conv_block_forward.5} parent=39 // pred_check_branch
        %363 = sbr.rel (%p361) target = $region44
      $region43: #{conv_block_forward.5} parent=39 // pred_region
        %s364 = sadd.s32 %s20, %s21
        %p365 = scmp.lt.s32.totalorder %s364, 1
        %s366 = scalar_select %p365, %s364, 1
        %s367 = smul.addr %s366, 4
        %s368 = scalar_lea.vmem %s3, %s367
      $region44: #{conv_block_forward.5} parent=39 // pred_fallthru
        _
    $region40: #{conv_block_forward.5} parent=5 // pred_fallthru
      _
  $region6: #{conv_block_forward.5} parent=0 // loop_footer
    %s13 = sadd.s32 1, %s9
  $region7: #{conv_block_forward.5} parent=0 // loop_footer_branch
    %8 = sbr.rel target = $region3
  $region8: #{conv_block_forward.5} parent=0 // loop_exit
    _

// kernel: conv_block_forward.3
$region0: #{conv_block_forward.3}
  #allocation0 [shape = 'u32[]', space=smem, size = 0x4, offset = 0x4, fixed_abs, tag = 'smem constant byte address 0x4 - core index']
  #allocation1 [shape = 'u32[144,128]{1,0:T(1,128)}', space=vmem, size = 0x12000, scoped, tag = 'internal scratch']
  %s0 = inlined_call_operand.vmem [shape: f32[2,16,16,4], index: 0, kind: input, shape index: {}, may-alias: {0,1,2}]
  %s1 = inlined_call_operand.vmem [shape: f32[2,16,16,4], index: 1, kind: input, shape index: {}, may-alias: {0,1,2}]
  %s2 = inlined_call_operand.vmem [shape: f32[2,16,16,4], index: 2, kind: input, shape index: {}, may-alias: {0,1,2}]
  %s3 = inlined_call_operand.vmem [shape: bf16[9,4,32], index: 3, kind: input, shape index: {}]
  %s4 = inlined_call_operand.vmem [shape: f32[1,4], index: 4, kind: input, shape index: {}, may-alias: {4,5}]
  %s5 = inlined_call_operand.vmem [shape: f32[1,4], index: 5, kind: input, shape index: {}, may-alias: {4,5}]
  %s6 = inlined_call_operand.vmem [shape: bf16[2,16,16,32], index: 6, kind: output, shape index: {0}]
  %s7 = inlined_call_operand.vmem [shape: f32[2,2,32], index: 7, kind: output, shape index: {1}]
  %8 = xla_tuple %s6, %s7
  %s9 = sld [smem:[#allocation0]]
  $region65: #{conv_block_forward.3} parent=0
    _
  %s11 = ssub.s32 1, %s9
  %s12 = scalar_select 0, %s11, %s9
  loop: start=0, step=1, limit=4
  $region2: #{conv_block_forward.3} parent=0 // loop_pre_header
    _
  $region3: #{conv_block_forward.3} parent=0 // loop_header
    %s14 = sphi 0, %s18
    %p15 = scmp.ge.s32.totalorder %s14, 4
    %s21 = sphi 0, %s33
    %s22 = sphi 0, %s29
    %s23 = sphi 0, %s21
    %s24 = sphi 0, %s22
    %s25 = sphi 0, %s23
    %s26 = sphi 0, %s24
    %s38 = sphi 0, %s40
    %s41 = sphi 0, %s38
    %s42 = sphi 0, %s41
    %s58 = sphi 0, %s42
    %s72 = sphi 0, %s74
    %s75 = sphi 0, %s72
    %s76 = sphi 0, %s75
    %s92 = sphi 0, %s76
    %s106 = sphi 0, %s108
    %s109 = sphi 0, %s106
    %s110 = sphi 0, %s109
    %s126 = sphi 0, %s110
    %s130 = sphi 0, %s130
    %s132 = sphi 0, %s130
    %s133 = sphi 0, %s132
    %s147 = sphi 0, %s133
    %s151 = sphi 0, %s151
    %s153 = sphi 0, %s151
    %s154 = sphi 0, %s153
    %s168 = sphi 0, %s154
    %s172 = sphi 0, %s172
    %s174 = sphi 0, %s172
    %s175 = sphi 0, %s174
    %s189 = sphi 0, %s175
    %s197 = sphi 0, %s199
    %s200 = sphi 0, %s197
    %s201 = sphi 0, %s200
    %s217 = sphi 0, %s201
    %s225 = sphi 0, %s227
    %s228 = sphi 0, %s225
    %s229 = sphi 0, %s228
    %s245 = sphi 0, %s229
  $region4: #{conv_block_forward.3} parent=0 // loop_header_branch
    %17 = sbr.rel (%p15) target = $region8
  $region5: #{conv_block_forward.3} parent=0 // loop_body
    %s19 = ssub.s32 %s14, 1
    %s20 = ssub.s32 %s14, 2
    %s27 = sadd.s32 1, %s22
    %p28 = scmp.ge.s32.totalorder %s27, 1
    %s29 = scalar_select %p28, 0, %s27
    %s30 = sadd.s32 1, %s21
    %s31 = scalar_select %p28, %s30, %s21
    %p32 = scmp.ge.s32.totalorder %s31, 2
    %s33 = scalar_select %p32, 0, %s31
    %s34 = ssub.s32 %s21, %s33
    %s35 = ssub.s32 %s22, %s29
    %s36 = sor.u32 %s34, %s35
    %p37 = scmp.eq.s32.totalorder %s36, 0
    %s39 = sadd.s32 %s38, 1
    %s40 = scalar_select %p37, %s38, %s39
    %p43 = pneg %p37
    %p44 = scmp.eq.s32.totalorder %s14, 1
    %p45 = por %p43, %p44
    %p46 = scmp.ne.s32.totalorder %s38, %s41
    %p47 = scmp.eq.s32.totalorder %s14, 0
    %p48 = por %p46, %p47
    %p49 = scmp.ne.s32.totalorder %s38, %s41
    %p50 = scmp.eq.s32.totalorder %s19, 1
    %p51 = por %p49, %p50
    %p52 = scmp.ne.s32.totalorder %s41, %s42
    %p53 = scmp.eq.s32.totalorder %s19, 0
    %p54 = por %p52, %p53
    %p55 = scmp.ne.s32.totalorder %s41, %s42
    %p56 = scmp.eq.s32.totalorder %s20, 1
    %p57 = por %p55, %p56
    %p59 = scmp.ne.s32.totalorder %s42, %s58
    %p60 = scmp.eq.s32.totalorder %s20, 0
    %p61 = por %p59, %p60
    %s62 = ssub.s32 %s22, 1
    %p63 = scmp.gt.s32.totalorder %s62, 0
    %s64 = scalar_select %p63, %s62, 0
    %s65 = ssub.s32 %s29, 1
    %p66 = scmp.gt.s32.totalorder %s65, 0
    %s67 = scalar_select %p66, %s65, 0
    %s68 = ssub.s32 %s21, %s33
    %s69 = ssub.s32 %s64, %s67
    %s70 = sor.u32 %s68, %s69
    %p71 = scmp.eq.s32.totalorder %s70, 0
    %s73 = sadd.s32 %s72, 1
    %s74 = scalar_select %p71, %s72, %s73
    %p77 = pneg %p71
    %p78 = scmp.eq.s32.totalorder %s14, 1
    %p79 = por %p77, %p78
    %p80 = scmp.ne.s32.totalorder %s72, %s75
    %p81 = scmp.eq.s32.totalorder %s14, 0
    %p82 = por %p80, %p81
    %p83 = scmp.ne.s32.totalorder %s72, %s75
    %p84 = scmp.eq.s32.totalorder %s19, 1
    %p85 = por %p83, %p84
    %p86 = scmp.ne.s32.totalorder %s75, %s76
    %p87 = scmp.eq.s32.totalorder %s19, 0
    %p88 = por %p86, %p87
    %p89 = scmp.ne.s32.totalorder %s75, %s76
    %p90 = scmp.eq.s32.totalorder %s20, 1
    %p91 = por %p89, %p90
    %p93 = scmp.ne.s32.totalorder %s76, %s92
    %p94 = scmp.eq.s32.totalorder %s20, 0
    %p95 = por %p93, %p94
    %s96 = sadd.s32 %s22, 1
    %p97 = scmp.lt.s32.totalorder %s96, 0
    %s98 = scalar_select %p97, %s96, 0
    %s99 = sadd.s32 %s29, 1
    %p100 = scmp.lt.s32.totalorder %s99, 0
    %s101 = scalar_select %p100, %s99, 0
    %s102 = ssub.s32 %s21, %s33
    %s103 = ssub.s32 %s98, %s101
    %s104 = sor.u32 %s102, %s103
    %p105 = scmp.eq.s32.totalorder %s104, 0
    %s107 = sadd.s32 %s106, 1
    %s108 = scalar_select %p105, %s106, %s107
    %p111 = pneg %p105
    %p112 = scmp.eq.s32.totalorder %s14, 1
    %p113 = por %p111, %p112
    %p114 = scmp.ne.s32.totalorder %s106, %s109
    %p115 = scmp.eq.s32.totalorder %s14, 0
    %p116 = por %p114, %p115
    %p117 = scmp.ne.s32.totalorder %s106, %s109
    %p118 = scmp.eq.s32.totalorder %s19, 1
    %p119 = por %p117, %p118
    %p120 = scmp.ne.s32.totalorder %s109, %s110
    %p121 = scmp.eq.s32.totalorder %s19, 0
    %p122 = por %p120, %p121
    %p123 = scmp.ne.s32.totalorder %s109, %s110
    %p124 = scmp.eq.s32.totalorder %s20, 1
    %p125 = por %p123, %p124
    %p127 = scmp.ne.s32.totalorder %s110, %s126
    %p128 = scmp.eq.s32.totalorder %s20, 0
    %p129 = por %p127, %p128
    %s131 = sadd.s32 %s130, 1
    %p134 = scmp.eq.s32.totalorder %s14, 1
    %p135 = scmp.ne.s32.totalorder %s130, %s132
    %p136 = scmp.eq.s32.totalorder %s14, 0
    %p137 = por %p135, %p136
    %p138 = scmp.ne.s32.totalorder %s130, %s132
    %p139 = scmp.eq.s32.totalorder %s19, 1
    %p140 = por %p138, %p139
    %p141 = scmp.ne.s32.totalorder %s132, %s133
    %p142 = scmp.eq.s32.totalorder %s19, 0
    %p143 = por %p141, %p142
    %p144 = scmp.ne.s32.totalorder %s132, %s133
    %p145 = scmp.eq.s32.totalorder %s20, 1
    %p146 = por %p144, %p145
    %p148 = scmp.ne.s32.totalorder %s133, %s147
    %p149 = scmp.eq.s32.totalorder %s20, 0
    %p150 = por %p148, %p149
    %s152 = sadd.s32 %s151, 1
    %p155 = scmp.eq.s32.totalorder %s14, 1
    %p156 = scmp.ne.s32.totalorder %s151, %s153
    %p157 = scmp.eq.s32.totalorder %s14, 0
    %p158 = por %p156, %p157
    %p159 = scmp.ne.s32.totalorder %s151, %s153
    %p160 = scmp.eq.s32.totalorder %s19, 1
    %p161 = por %p159, %p160
    %p162 = scmp.ne.s32.totalorder %s153, %s154
    %p163 = scmp.eq.s32.totalorder %s19, 0
    %p164 = por %p162, %p163
    %p165 = scmp.ne.s32.totalorder %s153, %s154
    %p166 = scmp.eq.s32.totalorder %s20, 1
    %p167 = por %p165, %p166
    %p169 = scmp.ne.s32.totalorder %s154, %s168
    %p170 = scmp.eq.s32.totalorder %s20, 0
    %p171 = por %p169, %p170
    %s173 = sadd.s32 %s172, 1
    %p176 = scmp.eq.s32.totalorder %s14, 1
    %p177 = scmp.ne.s32.totalorder %s172, %s174
    %p178 = scmp.eq.s32.totalorder %s14, 0
    %p179 = por %p177, %p178
    %p180 = scmp.ne.s32.totalorder %s172, %s174
    %p181 = scmp.eq.s32.totalorder %s19, 1
    %p182 = por %p180, %p181
    %p183 = scmp.ne.s32.totalorder %s174, %s175
    %p184 = scmp.eq.s32.totalorder %s19, 0
    %p185 = por %p183, %p184
    %p186 = scmp.ne.s32.totalorder %s174, %s175
    %p187 = scmp.eq.s32.totalorder %s20, 1
    %p188 = por %p186, %p187
    %p190 = scmp.ne.s32.totalorder %s175, %s189
    %p191 = scmp.eq.s32.totalorder %s20, 0
    %p192 = por %p190, %p191
    %s193 = ssub.s32 %s21, %s33
    %s194 = ssub.s32 %s22, %s29
    %s195 = sor.u32 %s193, %s194
    %p196 = scmp.eq.s32.totalorder %s195, 0
    %s198 = sadd.s32 %s197, 1
    %s199 = scalar_select %p196, %s197, %s198
    %p202 = pneg %p196
    %p203 = scmp.eq.s32.totalorder %s14, 1
    %p204 = por %p202, %p203
    %p205 = scmp.ne.s32.totalorder %s197, %s200
    %p206 = scmp.eq.s32.totalorder %s14, 0
    %p207 = por %p205, %p206
    %p208 = scmp.ne.s32.totalorder %s197, %s200
    %p209 = scmp.eq.s32.totalorder %s19, 1
    %p210 = por %p208, %p209
    %p211 = scmp.ne.s32.totalorder %s200, %s201
    %p212 = scmp.eq.s32.totalorder %s19, 0
    %p213 = por %p211, %p212
    %p214 = scmp.ne.s32.totalorder %s200, %s201
    %p215 = scmp.eq.s32.totalorder %s20, 1
    %p216 = por %p214, %p215
    %p218 = scmp.ne.s32.totalorder %s201, %s217
    %p219 = scmp.eq.s32.totalorder %s20, 0
    %p220 = por %p218, %p219
    %s221 = sadd.s32 %s21, %s22
    %s222 = sadd.s32 %s33, %s29
    %s223 = ssub.s32 %s221, %s222
    %p224 = scmp.eq.s32.totalorder %s223, 0
    %s226 = sadd.s32 %s225, 1
    %s227 = scalar_select %p224, %s225, %s226
    %p230 = pneg %p224
    %p231 = scmp.eq.s32.totalorder %s14, 1
    %p232 = por %p230, %p231
    %p233 = scmp.ne.s32.totalorder %s225, %s228
    %p234 = scmp.eq.s32.totalorder %s14, 0
    %p235 = por %p233, %p234
    %p236 = scmp.ne.s32.totalorder %s225, %s228
    %p237 = scmp.eq.s32.totalorder %s19, 1
    %p238 = por %p236, %p237
    %p239 = scmp.ne.s32.totalorder %s228, %s229
    %p240 = scmp.eq.s32.totalorder %s19, 0
    %p241 = por %p239, %p240
    %p242 = scmp.ne.s32.totalorder %s228, %s229
    %p243 = scmp.eq.s32.totalorder %s20, 1
    %p244 = por %p242, %p243
    %p246 = scmp.ne.s32.totalorder %s229, %s245
    %p247 = scmp.eq.s32.totalorder %s20, 0
    %p248 = por %p246, %p247
    %p249 = scmp.le.s32.totalorder 1, %s14
    %p250 = scmp.lt.s32.totalorder %s14, 3
    %p251 = pnand %p249, %p250
    %p252 = pneg %p251
    // Predicated region
    $region9: #{conv_block_forward.3} parent=5 // pred_check
      _
    $region10: #{conv_block_forward.3} parent=5 // pred_check_branch
      %254 = sbr.rel (%p251) target = $region12
    $region11: #{conv_block_forward.3} parent=5 // pred_region
      %s255 = ssub.s32 %s14, 1
      // Predicated region
      $region13: #{conv_block_forward.3} parent=11 // pred_check
        %p256 = pneg %p143
      $region14: #{conv_block_forward.3} parent=11 // pred_check_branch
        %258 = sbr.rel (%p256) target = $region16
      $region15: #{conv_block_forward.3} parent=11 // pred_region
        _
      $region16: #{conv_block_forward.3} parent=11 // pred_fallthru
        _
      // Predicated region
      $region17: #{conv_block_forward.3} parent=11 // pred_check
        %p259 = pneg %p164
      $region18: #{conv_block_forward.3} parent=11 // pred_check_branch
        %261 = sbr.rel (%p259) target = $region20
      $region19: #{conv_block_forward.3} parent=11 // pred_region
        _
      $region20: #{conv_block_forward.3} parent=11 // pred_fallthru
        _
      // Predicated region
      $region21: #{conv_block_forward.3} parent=11 // pred_check
        %p262 = pneg %p185
      $region22: #{conv_block_forward.3} parent=11 // pred_check_branch
        %264 = sbr.rel (%p262) target = $region24
      $region23: #{conv_block_forward.3} parent=11 // pred_region
        _
      $region24: #{conv_block_forward.3} parent=11 // pred_fallthru
        _
    $region12: #{conv_block_forward.3} parent=5 // pred_fallthru
      _
    %p265 = scmp.lt.s32.totalorder %s14, 2
    // Predicated region
    $region25: #{conv_block_forward.3} parent=5 // pred_check
      %p266 = pneg %p265
    $region26: #{conv_block_forward.3} parent=5 // pred_check_branch
      %268 = sbr.rel (%p266) target = $region28
    $region27: #{conv_block_forward.3} parent=5 // pred_region
      // Predicated region
      $region29: #{conv_block_forward.3} parent=27 // pred_check
        %p269 = pneg %p48
      $region30: #{conv_block_forward.3} parent=27 // pred_check_branch
        %271 = sbr.rel (%p269) target = $region32
      $region31: #{conv_block_forward.3} parent=27 // pred_region
        %s272 = smul.u32 16, %s22
        %p273 = scmp.lt.s32.totalorder %s21, 1
        %s274 = scalar_select %p273, %s21, 1
        %p275 = scmp.lt.s32.totalorder %s272, 15
        %s276 = scalar_select %p275, %s272, 15
        %s277 = smul.addr %s276, 2
        %s278 = smul.addr %s274, 32
        %s279 = sadd.s32 %s277, %s278
        %s280 = smul.addr %s279, 8
        %s281 = scalar_lea.vmem %s0, %s280
        %s282 = smul.u32 16, %s22
      $region32: #{conv_block_forward.3} parent=27 // pred_fallthru
        _
      // Predicated region
      $region33: #{conv_block_forward.3} parent=27 // pred_check
        %p283 = pneg %p82
      $region34: #{conv_block_forward.3} parent=27 // pred_check_branch
        %285 = sbr.rel (%p283) target = $region36
      $region35: #{conv_block_forward.3} parent=27 // pred_region
        %s286 = ssub.s32 %s22, 1
        %p287 = scmp.gt.s32.totalorder %s286, 0
        %s288 = scalar_select %p287, %s286, 0
        %s289 = smul.u32 16, %s288
        %p290 = scmp.lt.s32.totalorder %s21, 1
        %s291 = scalar_select %p290, %s21, 1
        %p292 = scmp.lt.s32.totalorder %s289, 15
        %s293 = scalar_select %p292, %s289, 15
        %s294 = smul.addr %s293, 2
        %s295 = smul.addr %s291, 32
        %s296 = sadd.s32 %s294, %s295
        %s297 = smul.addr %s296, 8
        %s298 = scalar_lea.vmem %s1, %s297
        %s299 = ssub.s32 %s22, 1
        %p300 = scmp.gt.s32.totalorder %s299, 0
        %s301 = scalar_select %p300, %s299, 0
        %s302 = smul.u32 16, %s301
      $region36: #{conv_block_forward.3} parent=27 // pred_fallthru
        _
      // Predicated region
      $region37: #{conv_block_forward.3} parent=27 // pred_check
        %p303 = pneg %p116
      $region38: #{conv_block_forward.3} parent=27 // pred_check_branch
        %305 = sbr.rel (%p303) target = $region40
      $region39: #{conv_block_forward.3} parent=27 // pred_region
        %s306 = sadd.s32 %s22, 1
        %p307 = scmp.lt.s32.totalorder %s306, 0
        %s308 = scalar_select %p307, %s306, 0
        %s309 = smul.u32 16, %s308
        %p310 = scmp.lt.s32.totalorder %s21, 1
        %s311 = scalar_select %p310, %s21, 1
        %p312 = scmp.lt.s32.totalorder %s309, 15
        %s313 = scalar_select %p312, %s309, 15
        %s314 = smul.addr %s313, 2
        %s315 = smul.addr %s311, 32
        %s316 = sadd.s32 %s314, %s315
        %s317 = smul.addr %s316, 8
        %s318 = scalar_lea.vmem %s2, %s317
        %s319 = sadd.s32 %s22, 1
        %p320 = scmp.lt.s32.totalorder %s319, 0
        %s321 = scalar_select %p320, %s319, 0
        %s322 = smul.u32 16, %s321
      $region40: #{conv_block_forward.3} parent=27 // pred_fallthru
        _
    $region28: #{conv_block_forward.3} parent=5 // pred_fallthru
      _
    %p323 = scmp.le.s32.totalorder 1, %s14
    %p324 = scmp.lt.s32.totalorder %s14, 3
    %p325 = pnand %p323, %p324
    %p326 = pneg %p325
    // Predicated region
    $region41: #{conv_block_forward.3} parent=5 // pred_check
      _
    $region42: #{conv_block_forward.3} parent=5 // pred_check_branch
      %328 = sbr.rel (%p325) target = $region44
    $region43: #{conv_block_forward.3} parent=5 // pred_region
      %s329 = ssub.s32 %s14, 1
      %s330 = smul.u32 16, %s24
      %p331 = scmp.lt.s32.totalorder %s23, 1
      %s332 = scalar_select %p331, %s23, 1
      %p333 = scmp.lt.s32.totalorder %s330, 15
      %s334 = scalar_select %p333, %s330, 15
      %s335 = smul.addr %s334, 2
      %s336 = smul.addr %s332, 32
      %s337 = sadd.s32 %s335, %s336
      %s338 = smul.addr %s337, 8
      %s339 = scalar_lea.vmem %s0, %s338
      %p340 = pneg %p54
      %p341 = pneg %p51
      %s342 = ssub.s32 %s24, 1
      %p343 = scmp.gt.s32.totalorder %s342, 0
      %s344 = scalar_select %p343, %s342, 0
      %s345 = smul.u32 16, %s344
      %p346 = scmp.lt.s32.totalorder %s23, 1
      %s347 = scalar_select %p346, %s23, 1
      %p348 = scmp.lt.s32.totalorder %s345, 15
      %s349 = scalar_select %p348, %s345, 15
      %s350 = smul.addr %s349, 2
      %s351 = smul.addr %s347, 32
      %s352 = sadd.s32 %s350, %s351
      %s353 = smul.addr %s352, 8
      %s354 = scalar_lea.vmem %s1, %s353
      %p355 = pneg %p88
      %p356 = pneg %p85
      %s357 = sadd.s32 %s24, 1
      %p358 = scmp.lt.s32.totalorder %s357, 0
      %s359 = scalar_select %p358, %s357, 0
      %s360 = smul.u32 16, %s359
      %p361 = scmp.lt.s32.totalorder %s23, 1
      %s362 = scalar_select %p361, %s23, 1
      %p363 = scmp.lt.s32.totalorder %s360, 15
      %s364 = scalar_select %p363, %s360, 15
      %s365 = smul.addr %s364, 2
      %s366 = smul.addr %s362, 32
      %s367 = sadd.s32 %s365, %s366
      %s368 = smul.addr %s367, 8
      %s369 = scalar_lea.vmem %s2, %s368
      %p370 = pneg %p122
      %p371 = pneg %p119
      %p372 = pneg %p143
      %p373 = pneg %p140
      %p374 = pneg %p164
      %p375 = pneg %p161
      %p376 = pneg %p185
      %p377 = pneg %p182
      %p378 = pneg %p213
      %p379 = pneg %p210
      %s380 = smul.u32 16, %s24
      %p381 = scmp.lt.s32.totalorder %s23, 1
      %s382 = scalar_select %p381, %s23, 1
      %p383 = scmp.lt.s32.totalorder %s380, 15
      %s384 = scalar_select %p383, %s380, 15
      %s385 = smul.addr %s384, 2
      %s386 = smul.addr %s382, 32
      %s387 = sadd.s32 %s385, %s386
      %s388 = smul.addr %s387, 4
      %s389 = scalar_lea.vmem %s6, %s388
      %p390 = pneg %p241
      %p391 = pneg %p238
      %s392 = sadd.s32 %s23, %s24
      %p393 = scmp.lt.s32.totalorder %s392, 1
      %s394 = scalar_select %p393, %s392, 1
      %s395 = smul.addr %s394, 2
      %s396 = scalar_lea.vmem %s7, %s395
      %s397 = smul.u32 16, %s24
      %p398 = scmp.lt.s32.totalorder %s23, 1
      %s399 = scalar_select %p398, %s23, 1
      %p400 = scmp.lt.s32.totalorder %s397, 15
      %s401 = scalar_select %p400, %s397, 15
      %s402 = smul.addr %s401, 2
      %s403 = smul.addr %s399, 32
      %s404 = sadd.s32 %s402, %s403
      %s405 = smul.addr %s404, 8
      %s406 = scalar_lea.vmem %s0, %s405
      %s407 = smul.u32 16, %s24
      %s408 = ssub.s32 %s24, 1
      %p409 = scmp.gt.s32.totalorder %s408, 0
      %s410 = scalar_select %p409, %s408, 0
      %s411 = smul.u32 16, %s410
      %p412 = scmp.lt.s32.totalorder %s23, 1
      %s413 = scalar_select %p412, %s23, 1
      %p414 = scmp.lt.s32.totalorder %s411, 15
      %s415 = scalar_select %p414, %s411, 15
      %s416 = smul.addr %s415, 2
      %s417 = smul.addr %s413, 32
      %s418 = sadd.s32 %s416, %s417
      %s419 = smul.addr %s418, 8
      %s420 = scalar_lea.vmem %s1, %s419
      %s421 = ssub.s32 %s24, 1
      %p422 = scmp.gt.s32.totalorder %s421, 0
      %s423 = scalar_select %p422, %s421, 0
      %s424 = smul.u32 16, %s423
      %s425 = sadd.s32 %s24, 1
      %p426 = scmp.lt.s32.totalorder %s425, 0
      %s427 = scalar_select %p426, %s425, 0
      %s428 = smul.u32 16, %s427
      %p429 = scmp.lt.s32.totalorder %s23, 1
      %s430 = scalar_select %p429, %s23, 1
      %p431 = scmp.lt.s32.totalorder %s428, 15
      %s432 = scalar_select %p431, %s428, 15
      %s433 = smul.addr %s432, 2
      %s434 = smul.addr %s430, 32
      %s435 = sadd.s32 %s433, %s434
      %s436 = smul.addr %s435, 8
      %s437 = scalar_lea.vmem %s2, %s436
      %s438 = sadd.s32 %s24, 1
      %p439 = scmp.lt.s32.totalorder %s438, 0
      %s440 = scalar_select %p439, %s438, 0
      %s441 = smul.u32 16, %s440
      %s442 = smul.u32 16, %s24
      %p443 = scmp.lt.s32.totalorder %s23, 1
      %s444 = scalar_select %p443, %s23, 1
      %p445 = scmp.lt.s32.totalorder %s442, 15
      %s446 = scalar_select %p445, %s442, 15
      %s447 = smul.addr %s446, 2
      %s448 = smul.addr %s444, 32
      %s449 = sadd.s32 %s447, %s448
      %s450 = smul.addr %s449, 4
      %s451 = scalar_lea.vmem %s6, %s450
      %s452 = smul.u32 16, %s24
      %s453 = sadd.s32 %s23, %s24
      %p454 = scmp.lt.s32.totalorder %s453, 1
      %s455 = scalar_select %p454, %s453, 1
      %s456 = smul.addr %s455, 2
      %s457 = scalar_lea.vmem %s7, %s456
      %s458 = sadd.s32 %s23, %s24
      %v460 = vld [vmem:[%s406] sm:$0xff]
      %v461 = vld [vmem:[%s406 + $0x8] sm:$0xff]
      %v462 = vld [vmem:[%s406 + $0x10] sm:$0xff]
      %v463 = vld [vmem:[%s406 + $0x18] sm:$0xff]
      %v464 = vld [vmem:[%s406 + $0x20] sm:$0xff]
      %v465 = vld [vmem:[%s406 + $0x28] sm:$0xff]
      %v466 = vld [vmem:[%s406 + $0x30] sm:$0xff]
      %v467 = vld [vmem:[%s406 + $0x38] sm:$0xff]
      %v468 = vld [vmem:[%s406 + $0x40] sm:$0xff]
      %v469 = vld [vmem:[%s406 + $0x48] sm:$0xff]
      %v470 = vld [vmem:[%s406 + $0x50] sm:$0xff]
      %v471 = vld [vmem:[%s406 + $0x58] sm:$0xff]
      %v472 = vld [vmem:[%s406 + $0x60] sm:$0xff]
      %v473 = vld [vmem:[%s406 + $0x68] sm:$0xff]
      %v474 = vld [vmem:[%s406 + $0x70] sm:$0xff]
      %v475 = vld [vmem:[%s406 + $0x78] sm:$0xff]
      %v476 = vld [vmem:[%s406 + $0x80] sm:$0xff]
      %v477 = vld [vmem:[%s406 + $0x88] sm:$0xff]
      %v478 = vld [vmem:[%s406 + $0x90] sm:$0xff]
      %v479 = vld [vmem:[%s406 + $0x98] sm:$0xff]
      %v480 = vld [vmem:[%s406 + $0xa0] sm:$0xff]
      %v481 = vld [vmem:[%s406 + $0xa8] sm:$0xff]
      %v482 = vld [vmem:[%s406 + $0xb0] sm:$0xff]
      %v483 = vld [vmem:[%s406 + $0xb8] sm:$0xff]
      %v484 = vld [vmem:[%s406 + $0xc0] sm:$0xff]
      %v485 = vld [vmem:[%s406 + $0xc8] sm:$0xff]
      %v486 = vld [vmem:[%s406 + $0xd0] sm:$0xff]
      %v487 = vld [vmem:[%s406 + $0xd8] sm:$0xff]
      %v488 = vld [vmem:[%s406 + $0xe0] sm:$0xff]
      %v489 = vld [vmem:[%s406 + $0xe8] sm:$0xff]
      %v490 = vld [vmem:[%s406 + $0xf0] sm:$0xff]
      %v491 = vld [vmem:[%s406 + $0xf8] sm:$0xff]
      %v492 = vpack.c.bf16 %v461, %v460
      %v493 = vpack.c.bf16 %v463, %v462
      %v494 = vpack.c.bf16 %v465, %v464
      %v495 = vpack.c.bf16 %v467, %v466
      %v496 = vpack.c.bf16 %v469, %v468
      %v497 = vpack.c.bf16 %v471, %v470
      %v498 = vpack.c.bf16 %v473, %v472
      %v499 = vpack.c.bf16 %v475, %v474
      %v500 = vpack.c.bf16 %v477, %v476
      %v501 = vpack.c.bf16 %v479, %v478
      %v502 = vpack.c.bf16 %v481, %v480
      %v503 = vpack.c.bf16 %v483, %v482
      %v504 = vpack.c.bf16 %v485, %v484
      %v505 = vpack.c.bf16 %v487, %v486
      %v506 = vpack.c.bf16 %v489, %v488
      %v507 = vpack.c.bf16 %v491, %v490
      %s508 = scalar_lea.vmem %s420, 240
      %v509 = vld [vmem:[%s508] sm:$0xff]
      %v510 = vld [vmem:[%s508 + $0x8] sm:$0xff]
      %v511 = vpack.c.bf16 %v510, %v509
      %v512 = vld [vmem:[%s437] sm:$0xff]
      %v513 = vld [vmem:[%s437 + $0x8] sm:$0xff]
      %v514 = vpack.c.bf16 %v513, %v512
      %p515 = scmp.eq.s32.totalorder %s24, 0
      %s516 = scalar_select %p515, 1, 0
      %v517 = vstv %s516
      %vm518 = vcmp.eq.s32.totalorder %v517, 1
      %v519 = vsel %vm518, 0, %v511
      %v520 = vsel %vm518, 0, %v514
      %v522 = vshrl.u32 %v519, 16
      %v524 = vrot.slane %v522, 7
      %v525 = vshll.u32 %v519, 16
      %v527 = vor.u32 %v524, %v525
      %v529 = vshrl.u32 %v492, 16
      %v531 = vrot.slane %v529, 7
      %v532 = vshll.u32 %v492, 16
      %v534 = vor.u32 %v531, %v532
      %v536 = vshrl.u32 %v493, 16
      %v538 = vrot.slane %v536, 7
      %v539 = vshll.u32 %v493, 16
      %v541 = vor.u32 %v538, %v539
      %v543 = vshrl.u32 %v494, 16
      %v545 = vrot.slane %v543, 7
      %v546 = vshll.u32 %v494, 16
      %v548 = vor.u32 %v545, %v546
      %v550 = vshrl.u32 %v495, 16
      %v552 = vrot.slane %v550, 7
      %v553 = vshll.u32 %v495, 16
      %v555 = vor.u32 %v552, %v553
      %v557 = vshrl.u32 %v496, 16
      %v559 = vrot.slane %v557, 7
      %v560 = vshll.u32 %v496, 16
      %v562 = vor.u32 %v559, %v560
      %v564 = vshrl.u32 %v497, 16
      %v566 = vrot.slane %v564, 7
      %v567 = vshll.u32 %v497, 16
      %v569 = vor.u32 %v566, %v567
      %v571 = vshrl.u32 %v498, 16
      %v573 = vrot.slane %v571, 7
      %v574 = vshll.u32 %v498, 16
      %v576 = vor.u32 %v573, %v574
      %v578 = vshrl.u32 %v499, 16
      %v580 = vrot.slane %v578, 7
      %v581 = vshll.u32 %v499, 16
      %v583 = vor.u32 %v580, %v581
      %v585 = vshrl.u32 %v500, 16
      %v587 = vrot.slane %v585, 7
      %v588 = vshll.u32 %v500, 16
      %v590 = vor.u32 %v587, %v588
      %v592 = vshrl.u32 %v501, 16
      %v594 = vrot.slane %v592, 7
      %v595 = vshll.u32 %v501, 16
      %v597 = vor.u32 %v594, %v595
      %v599 = vshrl.u32 %v502, 16
      %v601 = vrot.slane %v599, 7
      %v602 = vshll.u32 %v502, 16
      %v604 = vor.u32 %v601, %v602
      %v606 = vshrl.u32 %v503, 16
      %v608 = vrot.slane %v606, 7
      %v609 = vshll.u32 %v503, 16
      %v611 = vor.u32 %v608, %v609
      %v613 = vshrl.u32 %v504, 16
      %v615 = vrot.slane %v613, 7
      %v616 = vshll.u32 %v504, 16
      %v618 = vor.u32 %v615, %v616
      %v620 = vshrl.u32 %v505, 16
      %v622 = vrot.slane %v620, 7
      %v623 = vshll.u32 %v505, 16
      %v625 = vor.u32 %v622, %v623
      %v627 = vshrl.u32 %v506, 16
      %v629 = vrot.slane %v627, 7
      %v630 = vshll.u32 %v506, 16
      %v632 = vor.u32 %v629, %v630
      %v634 = vshrl.u32 %v507, 16
      %v636 = vrot.slane %v634, 7
      %v637 = vshll.u32 %v507, 16
      %v639 = vor.u32 %v636, %v637
      %v641 = vshrl.u32 %v520, 16
      %v643 = vrot.slane %v641, 7
      %v644 = vshll.u32 %v520, 16
      %v646 = vor.u32 %v643, %v644
      %vm683 = vcmask 1040384
      %vm684 = vsmask.f32 256
      %vm685 = vmand %vm683, %vm684
      %v686 = vsel %vm685, 0, %v527
      %v687 = vsel %vm685, 0, %v534
      %v688 = vsel %vm685, 0, %v541
      %v689 = vsel %vm685, 0, %v548
      %v690 = vsel %vm685, 0, %v555
      %v691 = vsel %vm685, 0, %v562
      %v692 = vsel %vm685, 0, %v569
      %v693 = vsel %vm685, 0, %v576
      %v694 = vsel %vm685, 0, %v583
      %v695 = vsel %vm685, 0, %v590
      %v696 = vsel %vm685, 0, %v597
      %v697 = vsel %vm685, 0, %v604
      %v698 = vsel %vm685, 0, %v611
      %v699 = vsel %vm685, 0, %v618
      %v700 = vsel %vm685, 0, %v625
      %v701 = vsel %vm685, 0, %v632
      %v702 = vsel %vm685, 0, %v639
      %v703 = vsel %vm685, 0, %v646
      %v704 = vsel %vm685, %v524, 0
      %v705 = vsel %vm685, %v531, 0
      %v706 = vsel %vm685, %v538, 0
      %v707 = vsel %vm685, %v545, 0
      %v708 = vsel %vm685, %v552, 0
      %v709 = vsel %vm685, %v559, 0
      %v710 = vsel %vm685, %v566, 0
      %v711 = vsel %vm685, %v573, 0
      %v712 = vsel %vm685, %v580, 0
      %v713 = vsel %vm685, %v587, 0
      %v714 = vsel %vm685, %v594, 0
      %v715 = vsel %vm685, %v601, 0
      %v716 = vsel %vm685, %v608, 0
      %v717 = vsel %vm685, %v615, 0
      %v718 = vsel %vm685, %v622, 0
      %v719 = vsel %vm685, %v629, 0
      %v720 = vsel %vm685, %v636, 0
      %v721 = vsel %vm685, %v643, 0
      %v722 = vld [vmem:[%s3] sm:$0x3]
      %vm723 = vsmask.f32 7424
      %v725 = vshrl.u32 %v686, 16
      %v727 = vshll.u32 %v686, 16
      %v729 = vrot.slane %v727, 1
      %v730 = vor.u32 %v725, %v729
      %v732 = vshll.u32 %v704, 16
      %v734 = vrot.slane %v732, 1
      %v735 = vsel %vm723, %v730, %v734
      %v737 = vshrl.u32 %v687, 16
      %v739 = vshll.u32 %v687, 16
      %v741 = vrot.slane %v739, 1
      %v742 = vor.u32 %v737, %v741
      %v744 = vshll.u32 %v705, 16
      %v746 = vrot.slane %v744, 1
      %v747 = vsel %vm723, %v742, %v746
      %v749 = vshrl.u32 %v688, 16
      %v751 = vshll.u32 %v688, 16
      %v753 = vrot.slane %v751, 1
      %v754 = vor.u32 %v749, %v753
      %v756 = vshll.u32 %v706, 16
      %v758 = vrot.slane %v756, 1
      %v759 = vsel %vm723, %v754, %v758
      %v761 = vshrl.u32 %v689, 16
      %v763 = vshll.u32 %v689, 16
      %v765 = vrot.slane %v763, 1
      %v766 = vor.u32 %v761, %v765
      %v768 = vshll.u32 %v707, 16
      %v770 = vrot.slane %v768, 1
      %v771 = vsel %vm723, %v766, %v770
      %v773 = vshrl.u32 %v690, 16
      %v775 = vshll.u32 %v690, 16
      %v777 = vrot.slane %v775, 1
      %v778 = vor.u32 %v773, %v777
      %v780 = vshll.u32 %v708, 16
      %v782 = vrot.slane %v780, 1
      %v783 = vsel %vm723, %v778, %v782
      %v785 = vshrl.u32 %v691, 16
      %v787 = vshll.u32 %v691, 16
      %v789 = vrot.slane %v787, 1
      %v790 = vor.u32 %v785, %v789
      %v792 = vshll.u32 %v709, 16
      %v794 = vrot.slane %v792, 1
      %v795 = vsel %vm723, %v790, %v794
      %v797 = vshrl.u32 %v692, 16
      %v799 = vshll.u32 %v692, 16
      %v801 = vrot.slane %v799, 1
      %v802 = vor.u32 %v797, %v801
      %v804 = vshll.u32 %v710, 16
      %v806 = vrot.slane %v804, 1
      %v807 = vsel %vm723, %v802, %v806
      %v809 = vshrl.u32 %v693, 16
      %v811 = vshll.u32 %v693, 16
      %v813 = vrot.slane %v811, 1
      %v814 = vor.u32 %v809, %v813
      %v816 = vshll.u32 %v711, 16
      %v818 = vrot.slane %v816, 1
      %v819 = vsel %vm723, %v814, %v818
      %v821 = vshrl.u32 %v694, 16
      %v823 = vshll.u32 %v694, 16
      %v825 = vrot.slane %v823, 1
      %v826 = vor.u32 %v821, %v825
      %v828 = vshll.u32 %v712, 16
      %v830 = vrot.slane %v828, 1
      %v831 = vsel %vm723, %v826, %v830
      %v833 = vshrl.u32 %v695, 16
      %v835 = vshll.u32 %v695, 16
      %v837 = vrot.slane %v835, 1
      %v838 = vor.u32 %v833, %v837
      %v840 = vshll.u32 %v713, 16
      %v842 = vrot.slane %v840, 1
      %v843 = vsel %vm723, %v838, %v842
      %v845 = vshrl.u32 %v696, 16
      %v847 = vshll.u32 %v696, 16
      %v849 = vrot.slane %v847, 1
      %v850 = vor.u32 %v845, %v849
      %v852 = vshll.u32 %v714, 16
      %v854 = vrot.slane %v852, 1
      %v855 = vsel %vm723, %v850, %v854
      %v857 = vshrl.u32 %v697, 16
      %v859 = vshll.u32 %v697, 16
      %v861 = vrot.slane %v859, 1
      %v862 = vor.u32 %v857, %v861
      %v864 = vshll.u32 %v715, 16
      %v866 = vrot.slane %v864, 1
      %v867 = vsel %vm723, %v862, %v866
      %v869 = vshrl.u32 %v698, 16
      %v871 = vshll.u32 %v698, 16
      %v873 = vrot.slane %v871, 1
      %v874 = vor.u32 %v869, %v873
      %v876 = vshll.u32 %v716, 16
      %v878 = vrot.slane %v876, 1
      %v879 = vsel %vm723, %v874, %v878
      %v881 = vshrl.u32 %v699, 16
      %v883 = vshll.u32 %v699, 16
      %v885 = vrot.slane %v883, 1
      %v886 = vor.u32 %v881, %v885
      %v888 = vshll.u32 %v717, 16
      %v890 = vrot.slane %v888, 1
      %v891 = vsel %vm723, %v886, %v890
      %v893 = vshrl.u32 %v700, 16
      %v895 = vshll.u32 %v700, 16
      %v897 = vrot.slane %v895, 1
      %v898 = vor.u32 %v893, %v897
      %v900 = vshll.u32 %v718, 16
      %v902 = vrot.slane %v900, 1
      %v903 = vsel %vm723, %v898, %v902
      %v905 = vshrl.u32 %v701, 16
      %v907 = vshll.u32 %v701, 16
      %v909 = vrot.slane %v907, 1
      %v910 = vor.u32 %v905, %v909
      %v912 = vshll.u32 %v719, 16
      %v914 = vrot.slane %v912, 1
      %v915 = vsel %vm723, %v910, %v914
      %s916 = scalar_lea.vmem %s3, 2
      %v917 = vld [vmem:[%s916] sm:$0x3]
      %vm918 = vcmask 31744
      %v920 = vsel %vm918, %v735, 0
      %v923 = vsel %vm918, %v747, 0
      %v926 = vsel %vm918, %v759, 0
      %v929 = vsel %vm918, %v771, 0
      %v932 = vsel %vm918, %v783, 0
      %v935 = vsel %vm918, %v795, 0
      %v938 = vsel %vm918, %v807, 0
      %v941 = vsel %vm918, %v819, 0
      %v944 = vsel %vm918, %v831, 0
      %v947 = vsel %vm918, %v843, 0
      %v950 = vsel %vm918, %v855, 0
      %v953 = vsel %vm918, %v867, 0
      %v956 = vsel %vm918, %v879, 0
      %v959 = vsel %vm918, %v891, 0
      %v962 = vsel %vm918, %v903, 0
      %v965 = vsel %vm918, %v915, 0
      %vm967 = vcmask 1041408
      %v969 = vsel %vm967, %v917, 0
      %971 = vmatprep.subr.bf16.mxu0 0
      %972 = vmatpush1.bf16.msra.mxu0 %v969
      %973 = vmatprep.subr.bf16.mxu0 0
      %974 = vmatpush1.bf16.msra.mxu0 0
      %975 = vmatprep.subr.bf16.mxu0 0
      %976 = vmatpush1.bf16.msra.mxu0 0
      %977 = vmatprep.subr.bf16.mxu0 0
      %978 = vmatpush1.bf16.msra.mxu0 0
      %979 = vmatprep.subr.bf16.mxu0 0
      %980 = vmatpush1.bf16.msra.mxu0 0
      %981 = vmatprep.subr.bf16.mxu0 0
      %982 = vmatpush1.bf16.msra.mxu0 0
      %983 = vmatprep.subr.bf16.mxu0 0
      %984 = vmatpush1.bf16.msra.mxu0 0
      %985 = vmatprep.subr.bf16.mxu0 0
      %986 = vmatpush1.bf16.msra.mxu0 0
      %987 = vmatprep.subr.bf16.mxu0 0
      %988 = vmatpush1.bf16.msra.mxu0 0
      %989 = vmatprep.subr.bf16.mxu0 0
      %990 = vmatpush1.bf16.msra.mxu0 0
      %991 = vmatprep.subr.bf16.mxu0 0
      %992 = vmatpush1.bf16.msra.mxu0 0
      %993 = vmatprep.subr.bf16.mxu0 0
      %994 = vmatpush1.bf16.msra.mxu0 0
      %995 = vmatprep.subr.bf16.mxu0 0
      %996 = vmatpush1.bf16.msra.mxu0 0
      %997 = vmatprep.subr.bf16.mxu0 0
      %998 = vmatpush1.bf16.msra.mxu0 0
      %999 = vmatprep.subr.bf16.mxu0 0
      %1000 = vmatpush1.bf16.msra.mxu0 0
      %1001 = vmatprep.subr.bf16.mxu0 0
      %1002 = vmatpush1.bf16.msra.mxu0 0
      %1003 = vmatprep.mubr.bf16.mxu0 0
      %1004 = vmatmul.mubr.bf16.gmra.mrb[0].mxu0 %v920
      %v1005 = vpop.f32.mrb[0].mxu0
      %v1006 = vadd.f32 0.0, %v1005
      %v1007 = vpop.f32.mrb[0].mxu0
      %v1008 = vpop.f32.mrb[0].mxu0
      %v1009 = vadd.f32 0.0, %v1008
      %v1010 = vpop.f32.mrb[0].mxu0
      %1011 = vmatprep.mubr.bf16.mxu0 0
      %1012 = vmatmul.mubr.bf16.gmra.mrb[0].mxu0 %v923
      %v1013 = vpop.f32.mrb[0].mxu0
      %v1014 = vadd.f32 0.0, %v1013
      %v1015 = vpop.f32.mrb[0].mxu0
      %v1016 = vpop.f32.mrb[0].mxu0
      %v1017 = vadd.f32 0.0, %v1016
      %v1018 = vpop.f32.mrb[0].mxu0
      %1019 = vmatprep.mubr.bf16.mxu0 0
      %1020 = vmatmul.mubr.bf16.gmra.mrb[0].mxu0 %v926
      %v1021 = vpop.f32.mrb[0].mxu0
      %v1022 = vadd.f32 0.0, %v1021
      %v1023 = vpop.f32.mrb[0].mxu0
      %v1024 = vpop.f32.mrb[0].mxu0
      %v1025 = vadd.f32 0.0, %v1024
      %v1026 = vpop.f32.mrb[0].mxu0
      %1027 = vmatprep.mubr.bf16.mxu0 0
      %1028 = vmatmul.mubr.bf16.gmra.mrb[0].mxu0 %v929
      %v1029 = vpop.f32.mrb[0].mxu0
      %v1030 = vadd.f32 0.0, %v1029
      %v1031 = vpop.f32.mrb[0].mxu0
      %v1032 = vpop.f32.mrb[0].mxu0
      %v1033 = vadd.f32 0.0, %v1032
      %v1034 = vpop.f32.mrb[0].mxu0
      %1035 = vmatprep.mubr.bf16.mxu0 0
      %1036 = vmatmul.mubr.bf16.gmra.mrb[0].mxu0 %v932
      %v1037 = vpop.f32.mrb[0].mxu0
      %v1038 = vadd.f32 0.0, %v1037
      %v1039 = vpop.f32.mrb[0].mxu0
      %v1040 = vpop.f32.mrb[0].mxu0
      %v1041 = vadd.f32 0.0, %v1040
      %v1042 = vpop.f32.mrb[0].mxu0
      %1043 = vmatprep.mubr.bf16.mxu0 0
      %1044 = vmatmul.mubr.bf16.gmra.mrb[0].mxu0 %v935
      %v1045 = vpop.f32.mrb[0].mxu0
      %v1046 = vadd.f32 0.0, %v1045
      %v1047 = vpop.f32.mrb[0].mxu0
      %v1048 = vpop.f32.mrb[0].mxu0
      %v1049 = vadd.f32 0.0, %v1048
      %v1050 = vpop.f32.mrb[0].mxu0
      %1051 = vmatprep.mubr.bf16.mxu0 0
      %1052 = vmatmul.mubr.bf16.gmra.mrb[0].mxu0 %v938
      %v1053 = vpop.f32.mrb[0].mxu0
      %v1054 = vadd.f32 0.0, %v1053
      %v1055 = vpop.f32.mrb[0].mxu0
      %v1056 = vpop.f32.mrb[0].mxu0
      %v1057 = vadd.f32 0.0, %v1056
      %v1058 = vpop.f32.mrb[0].mxu0
      %1059 = vmatprep.mubr.bf16.mxu0 0
      %1060 = vmatmul.mubr.bf16.gmra.mrb[0].mxu0 %v941
      %v1061 = vpop.f32.mrb[0].mxu0
      %v1062 = vadd.f32 0.0, %v1061
      %v1063 = vpop.f32.mrb[0].mxu0
      %v1064 = vpop.f32.mrb[0].mxu0
      %v1065 = vadd.f32 0.0, %v1064
      %v1066 = vpop.f32.mrb[0].mxu0
      %1067 = vmatprep.mubr.bf16.mxu0 0
      %1068 = vmatmul.mubr.bf16.gmra.mrb[0].mxu0 %v944
      %v1069 = vpop.f32.mrb[0].mxu0
      %v1070 = vadd.f32 0.0, %v1069
      %v1071 = vpop.f32.mrb[0].mxu0
      %v1072 = vpop.f32.mrb[0].mxu0
      %v1073 = vadd.f32 0.0, %v1072
      %v1074 = vpop.f32.mrb[0].mxu0
      %1075 = vmatprep.mubr.bf16.mxu0 0
      %1076 = vmatmul.mubr.bf16.gmra.mrb[0].mxu0 %v947
      %v1077 = vpop.f32.mrb[0].mxu0
      %v1078 = vadd.f32 0.0, %v1077
      %v1079 = vpop.f32.mrb[0].mxu0
      %v1080 = vpop.f32.mrb[0].mxu0
      %v1081 = vadd.f32 0.0, %v1080
      %v1082 = vpop.f32.mrb[0].mxu0
      %1083 = vmatprep.mubr.bf16.mxu0 0
      %1084 = vmatmul.mubr.bf16.gmra.mrb[0].mxu0 %v950
      %v1085 = vpop.f32.mrb[0].mxu0
      %v1086 = vadd.f32 0.0, %v1085
      %v1087 = vpop.f32.mrb[0].mxu0
      %v1088 = vpop.f32.mrb[0].mxu0
      %v1089 = vadd.f32 0.0, %v1088
      %v1090 = vpop.f32.mrb[0].mxu0
      %1091 = vmatprep.mubr.bf16.mxu0 0
      %1092 = vmatmul.mubr.bf16.gmra.mrb[0].mxu0 %v953
      %v1093 = vpop.f32.mrb[0].mxu0
      %v1094 = vadd.f32 0.0, %v1093
      %v1095 = vpop.f32.mrb[0].mxu0
      %v1096 = vpop.f32.mrb[0].mxu0
      %v1097 = vadd.f32 0.0, %v1096
      %v1098 = vpop.f32.mrb[0].mxu0
      %1099 = vmatprep.mubr.bf16.mxu0 0
      %1100 = vmatmul.mubr.bf16.gmra.mrb[0].mxu0 %v956
      %v1101 = vpop.f32.mrb[0].mxu0
      %v1102 = vadd.f32 0.0, %v1101
      %v1103 = vpop.f32.mrb[0].mxu0
      %v1104 = vpop.f32.mrb[0].mxu0
      %v1105 = vadd.f32 0.0, %v1104
      %v1106 = vpop.f32.mrb[0].mxu0
      %1107 = vmatprep.mubr.bf16.mxu0 0
      %1108 = vmatmul.mubr.bf16.gmra.mrb[0].mxu0 %v959
      %v1109 = vpop.f32.mrb[0].mxu0
      %v1110 = vadd.f32 0.0, %v1109
      %v1111 = vpop.f32.mrb[0].mxu0
      %v1112 = vpop.f32.mrb[0].mxu0
      %v1113 = vadd.f32 0.0, %v1112
      %v1114 = vpop.f32.mrb[0].mxu0
      %1115 = vmatprep.mubr.bf16.mxu0 0
      %1116 = vmatmul.mubr.bf16.gmra.mrb[0].mxu0 %v962
      %v1117 = vpop.f32.mrb[0].mxu0
      %v1118 = vadd.f32 0.0, %v1117
      %v1119 = vpop.f32.mrb[0].mxu0
      %v1120 = vpop.f32.mrb[0].mxu0
      %v1121 = vadd.f32 0.0, %v1120
      %v1122 = vpop.f32.mrb[0].mxu0
      %1123 = vmatprep.mubr.bf16.mxu0 0
      %1124 = vmatmul.mubr.bf16.gmra.mrb[0].mxu0 %v965
      %v1125 = vpop.f32.mrb[0].mxu0
      %v1126 = vadd.f32 0.0, %v1125
      %v1127 = vpop.f32.mrb[0].mxu0
      %v1128 = vpop.f32.mrb[0].mxu0
      %v1129 = vadd.f32 0.0, %v1128
      %v1130 = vpop.f32.mrb[0].mxu0
      %1131 = vdwg.mxu0
      %v1132 = vsel %vm918, %v686, 0
      %v1134 = vsel %vm918, %v687, 0
      %v1136 = vsel %vm918, %v688, 0
      %v1138 = vsel %vm918, %v689, 0
      %v1140 = vsel %vm918, %v690, 0
      %v1142 = vsel %vm918, %v691, 0
      %v1144 = vsel %vm918, %v692, 0
      %v1146 = vsel %vm918, %v693, 0
      %v1148 = vsel %vm918, %v694, 0
      %v1150 = vsel %vm918, %v695, 0
      %v1152 = vsel %vm918, %v696, 0
      %v1154 = vsel %vm918, %v697, 0
      %v1156 = vsel %vm918, %v698, 0
      %v1158 = vsel %vm918, %v699, 0
      %v1160 = vsel %vm918, %v700, 0
      %v1162 = vsel %vm918, %v701, 0
      %v1165 = vsel %vm967, %v722, 0
      %1167 = vmatprep.subr.bf16.mxu0 0
      %1168 = vmatpush1.bf16.msra.mxu0 %v1165
      %1169 = vmatprep.subr.bf16.mxu0 0
      %1170 = vmatpush1.bf16.msra.mxu0 0
      %1171 = vmatprep.subr.bf16.mxu0 0
      %1172 = vmatpush1.bf16.msra.mxu0 0
      %1173 = vmatprep.subr.bf16.mxu0 0
      %1174 = vmatpush1.bf16.msra.mxu0 0
      %1175 = vmatprep.subr.bf16.mxu0 0
      %1176 = vmatpush1.bf16.msra.mxu0 0
      %1177 = vmatprep.subr.bf16.mxu0 0
      %1178 = vmatpush1.bf16.msra.mxu0 0
      %1179 = vmatprep.subr.bf16.mxu0 0
      %1180 = vmatpush1.bf16.msra.mxu0 0
      %1181 = vmatprep.subr.bf16.mxu0 0
      %1182 = vmatpush1.bf16.msra.mxu0 0
      %1183 = vmatprep.subr.bf16.mxu0 0
      %1184 = vmatpush1.bf16.msra.mxu0 0
      %1185 = vmatprep.subr.bf16.mxu0 0
      %1186 = vmatpush1.bf16.msra.mxu0 0
      %1187 = vmatprep.subr.bf16.mxu0 0
      %1188 = vmatpush1.bf16.msra.mxu0 0
      %1189 = vmatprep.subr.bf16.mxu0 0
      %1190 = vmatpush1.bf16.msra.mxu0 0
      %1191 = vmatprep.subr.bf16.mxu0 0
      %1192 = vmatpush1.bf16.msra.mxu0 0
      %1193 = vmatprep.subr.bf16.mxu0 0
      %1194 = vmatpush1.bf16.msra.mxu0 0
      %1195 = vmatprep.subr.bf16.mxu0 0
      %1196 = vmatpush1.bf16.msra.mxu0 0
      %1197 = vmatprep.subr.bf16.mxu0 0
      %1198 = vmatpush1.bf16.msra.mxu0 0
      %1199 = vmatprep.mubr.bf16.mxu0 0
      %1200 = vmatmul.mubr.bf16.gmra.mrb[0].mxu0 %v1132
      %v1201 = vpop.f32.mrb[0].mxu0
      %v1202 = vadd.f32 %v1006, %v1201
      %v1203 = vpop.f32.mrb[0].mxu0
      %v1204 = vpop.f32.mrb[0].mxu0
      %v1205 = vadd.f32 %v1009, %v1204
      %v1206 = vpop.f32.mrb[0].mxu0
      %1207 = vmatprep.mubr.bf16.mxu0 0
      %1208 = vmatmul.mubr.bf16.gmra.mrb[0].mxu0 %v1134
      %v1209 = vpop.f32.mrb[0].mxu0
      %v1210 = vadd.f32 %v1014, %v1209
      %v1211 = vpop.f32.mrb[0].mxu0
      %v1212 = vpop.f32.mrb[0].mxu0
      %v1213 = vadd.f32 %v1017, %v1212
      %v1214 = vpop.f32.mrb[0].mxu0
      %1215 = vmatprep.mubr.bf16.mxu0 0
      %1216 = vmatmul.mubr.bf16.gmra.mrb[0].mxu0 %v1136
      %v1217 = vpop.f32.mrb[0].mxu0
      %v1218 = vadd.f32 %v1022, %v1217
      %v1219 = vpop.f32.mrb[0].mxu0
      %v1220 = vpop.f32.mrb[0].mxu0
      %v1221 = vadd.f32 %v1025, %v1220
      %v1222 = vpop.f32.mrb[0].mxu0
      %1223 = vmatprep.mubr.bf16.mxu0 0
      %1224 = vmatmul.mubr.bf16.gmra.mrb[0].mxu0 %v1138
      %v1225 = vpop.f32.mrb[0].mxu0
      %v1226 = vadd.f32 %v1030, %v1225
      %v1227 = vpop.f32.mrb[0].mxu0
      %v1228 = vpop.f32.mrb[0].mxu0
      %v1229 = vadd.f32 %v1033, %v1228
      %v1230 = vpop.f32.mrb[0].mxu0
      %1231 = vmatprep.mubr.bf16.mxu0 0
      %1232 = vmatmul.mubr.bf16.gmra.mrb[0].mxu0 %v1140
      %v1233 = vpop.f32.mrb[0].mxu0
      %v1234 = vadd.f32 %v1038, %v1233
      %v1235 = vpop.f32.mrb[0].mxu0
      %v1236 = vpop.f32.mrb[0].mxu0
      %v1237 = vadd.f32 %v1041, %v1236
      %v1238 = vpop.f32.mrb[0].mxu0
      %1239 = vmatprep.mubr.bf16.mxu0 0
      %1240 = vmatmul.mubr.bf16.gmra.mrb[0].mxu0 %v1142
      %v1241 = vpop.f32.mrb[0].mxu0
      %v1242 = vadd.f32 %v1046, %v1241
      %v1243 = vpop.f32.mrb[0].mxu0
      %v1244 = vpop.f32.mrb[0].mxu0
      %v1245 = vadd.f32 %v1049, %v1244
      %v1246 = vpop.f32.mrb[0].mxu0
      %1247 = vmatprep.mubr.bf16.mxu0 0
      %1248 = vmatmul.mubr.bf16.gmra.mrb[0].mxu0 %v1144
      %v1249 = vpop.f32.mrb[0].mxu0
      %v1250 = vadd.f32 %v1054, %v1249
      %v1251 = vpop.f32.mrb[0].mxu0
      %v1252 = vpop.f32.mrb[0].mxu0
      %v1253 = vadd.f32 %v1057, %v1252
      %v1254 = vpop.f32.mrb[0].mxu0
      %1255 = vmatprep.mubr.bf16.mxu0 0
      %1256 = vmatmul.mubr.bf16.gmra.mrb[0].mxu0 %v1146
      %v1257 = vpop.f32.mrb[0].mxu0
      %v1258 = vadd.f32 %v1062, %v1257
      %v1259 = vpop.f32.mrb[0].mxu0
      %v1260 = vpop.f32.mrb[0].mxu0
      %v1261 = vadd.f32 %v1065, %v1260
      %v1262 = vpop.f32.mrb[0].mxu0
      %1263 = vmatprep.mubr.bf16.mxu0 0
      %1264 = vmatmul.mubr.bf16.gmra.mrb[0].mxu0 %v1148
      %v1265 = vpop.f32.mrb[0].mxu0
      %v1266 = vadd.f32 %v1070, %v1265
      %v1267 = vpop.f32.mrb[0].mxu0
      %v1268 = vpop.f32.mrb[0].mxu0
      %v1269 = vadd.f32 %v1073, %v1268
      %v1270 = vpop.f32.mrb[0].mxu0
      %1271 = vmatprep.mubr.bf16.mxu0 0
      %1272 = vmatmul.mubr.bf16.gmra.mrb[0].mxu0 %v1150
      %v1273 = vpop.f32.mrb[0].mxu0
      %v1274 = vadd.f32 %v1078, %v1273
      %v1275 = vpop.f32.mrb[0].mxu0
      %v1276 = vpop.f32.mrb[0].mxu0
      %v1277 = vadd.f32 %v1081, %v1276
      %v1278 = vpop.f32.mrb[0].mxu0
      %1279 = vmatprep.mubr.bf16.mxu0 0
      %1280 = vmatmul.mubr.bf16.gmra.mrb[0].mxu0 %v1152
      %v1281 = vpop.f32.mrb[0].mxu0
      %v1282 = vadd.f32 %v1086, %v1281
      %v1283 = vpop.f32.mrb[0].mxu0
      %v1284 = vpop.f32.mrb[0].mxu0
      %v1285 = vadd.f32 %v1089, %v1284
      %v1286 = vpop.f32.mrb[0].mxu0
      %1287 = vmatprep.mubr.bf16.mxu0 0
      %1288 = vmatmul.mubr.bf16.gmra.mrb[0].mxu0 %v1154
      %v1289 = vpop.f32.mrb[0].mxu0
      %v1290 = vadd.f32 %v1094, %v1289
      %v1291 = vpop.f32.mrb[0].mxu0
      %v1292 = vpop.f32.mrb[0].mxu0
      %v1293 = vadd.f32 %v1097, %v1292
      %v1294 = vpop.f32.mrb[0].mxu0
      %1295 = vmatprep.mubr.bf16.mxu0 0
      %1296 = vmatmul.mubr.bf16.gmra.mrb[0].mxu0 %v1156
      %v1297 = vpop.f32.mrb[0].mxu0
      %v1298 = vadd.f32 %v1102, %v1297
      %v1299 = vpop.f32.mrb[0].mxu0
      %v1300 = vpop.f32.mrb[0].mxu0
      %v1301 = vadd.f32 %v1105, %v1300
      %v1302 = vpop.f32.mrb[0].mxu0
      %1303 = vmatprep.mubr.bf16.mxu0 0
      %1304 = vmatmul.mubr.bf16.gmra.mrb[0].mxu0 %v1158
      %v1305 = vpop.f32.mrb[0].mxu0
      %v1306 = vadd.f32 %v1110, %v1305
      %v1307 = vpop.f32.mrb[0].mxu0
      %v1308 = vpop.f32.mrb[0].mxu0
      %v1309 = vadd.f32 %v1113, %v1308
      %v1310 = vpop.f32.mrb[0].mxu0
      %1311 = vmatprep.mubr.bf16.mxu0 0
      %1312 = vmatmul.mubr.bf16.gmra.mrb[0].mxu0 %v1160
      %v1313 = vpop.f32.mrb[0].mxu0
      %v1314 = vadd.f32 %v1118, %v1313
      %v1315 = vpop.f32.mrb[0].mxu0
      %v1316 = vpop.f32.mrb[0].mxu0
      %v1317 = vadd.f32 %v1121, %v1316
      %v1318 = vpop.f32.mrb[0].mxu0
      %1319 = vmatprep.mubr.bf16.mxu0 0
      %1320 = vmatmul.mubr.bf16.gmra.mrb[0].mxu0 %v1162
      %v1321 = vpop.f32.mrb[0].mxu0
      %v1322 = vadd.f32 %v1126, %v1321
      %v1323 = vpop.f32.mrb[0].mxu0
      %v1324 = vpop.f32.mrb[0].mxu0
      %v1325 = vadd.f32 %v1129, %v1324
      %v1326 = vpop.f32.mrb[0].mxu0
      %1327 = vdwg.mxu0
      %vm1360 = vcmask 1046528
      %v1361 = vrot.slane %v686, 1
      %v1362 = vrot.slane %v704, 1
      %v1363 = vsel %vm1360, %v1361, %v1362
      %v1364 = vrot.slane %v687, 1
      %v1365 = vrot.slane %v705, 1
      %v1366 = vsel %vm1360, %v1364, %v1365
      %v1367 = vrot.slane %v688, 1
      %v1368 = vrot.slane %v706, 1
      %v1369 = vsel %vm1360, %v1367, %v1368
      %v1370 = vrot.slane %v689, 1
      %v1371 = vrot.slane %v707, 1
      %v1372 = vsel %vm1360, %v1370, %v1371
      %v1373 = vrot.slane %v690, 1
      %v1374 = vrot.slane %v708, 1
      %v1375 = vsel %vm1360, %v1373, %v1374
      %v1376 = vrot.slane %v691, 1
      %v1377 = vrot.slane %v709, 1
      %v1378 = vsel %vm1360, %v1376, %v1377
      %v1379 = vrot.slane %v692, 1
      %v1380 = vrot.slane %v710, 1
      %v1381 = vsel %vm1360, %v1379, %v1380
      %v1382 = vrot.slane %v693, 1
      %v1383 = vrot.slane %v711, 1
      %v1384 = vsel %vm1360, %v1382, %v1383
      %v1385 = vrot.slane %v694, 1
      %v1386 = vrot.slane %v712, 1
      %v1387 = vsel %vm1360, %v1385, %v1386
      %v1388 = vrot.slane %v695, 1
      %v1389 = vrot.slane %v713, 1
      %v1390 = vsel %vm1360, %v1388, %v1389
      %v1391 = vrot.slane %v696, 1
      %v1392 = vrot.slane %v714, 1
      %v1393 = vsel %vm1360, %v1391, %v1392
      %v1394 = vrot.slane %v697, 1
      %v1395 = vrot.slane %v715, 1
      %v1396 = vsel %vm1360, %v1394, %v1395
      %v1397 = vrot.slane %v698, 1
      %v1398 = vrot.slane %v716, 1
      %v1399 = vsel %vm1360, %v1397, %v1398
      %v1400 = vrot.slane %v699, 1
      %v1401 = vrot.slane %v717, 1
      %v1402 = vsel %vm1360, %v1400, %v1401
      %v1403 = vrot.slane %v700, 1
      %v1404 = vrot.slane %v718, 1
      %v1405 = vsel %vm1360, %v1403, %v1404
      %v1406 = vrot.slane %v701, 1
      %v1407 = vrot.slane %v719, 1
      %v1408 = vsel %vm1360, %v1406, %v1407
      %s1409 = scalar_lea.vmem %s3, 4
      %v1410 = vld [vmem:[%s1409] sm:$0x3]
      %v1412 = vsel %vm918, %v1363, 0
      %v1415 = vsel %vm918, %v1366, 0
      %v1418 = vsel %vm918, %v1369, 0
      %v1421 = vsel %vm918, %v1372, 0
      %v1424 = vsel %vm918, %v1375, 0
      %v1427 = vsel %vm918, %v1378, 0
      %v1430 = vsel %vm918, %v1381, 0
      %v1433 = vsel %vm918, %v1384, 0
      %v1436 = vsel %vm918, %v1387, 0
      %v1439 = vsel %vm918, %v1390, 0
      %v1442 = vsel %vm918, %v1393, 0
      %v1445 = vsel %vm918, %v1396, 0
      %v1448 = vsel %vm918, %v1399, 0
      %v1451 = vsel %vm918, %v1402, 0
      %v1454 = vsel %vm918, %v1405, 0
      %v1457 = vsel %vm918, %v1408, 0
      %v1460 = vsel %vm967, %v1410, 0
      %1462 = vmatprep.subr.bf16.mxu0 0
      %1463 = vmatpush1.bf16.msra.mxu0 %v1460
      %1464 = vmatprep.subr.bf16.mxu0 0
      %1465 = vmatpush1.bf16.msra.mxu0 0
      %1466 = vmatprep.subr.bf16.mxu0 0
      %1467 = vmatpush1.bf16.msra.mxu0 0
      %1468 = vmatprep.subr.bf16.mxu0 0
      %1469 = vmatpush1.bf16.msra.mxu0 0
      %1470 = vmatprep.subr.bf16.mxu0 0
      %1471 = vmatpush1.bf16.msra.mxu0 0
      %1472 = vmatprep.subr.bf16.mxu0 0
      %1473 = vmatpush1.bf16.msra.mxu0 0
      %1474 = vmatprep.subr.bf16.mxu0 0
      %1475 = vmatpush1.bf16.msra.mxu0 0
      %1476 = vmatprep.subr.bf16.mxu0 0
      %1477 = vmatpush1.bf16.msra.mxu0 0
      %1478 = vmatprep.subr.bf16.mxu0 0
      %1479 = vmatpush1.bf16.msra.mxu0 0
      %1480 = vmatprep.subr.bf16.mxu0 0
      %1481 = vmatpush1.bf16.msra.mxu0 0
      %1482 = vmatprep.subr.bf16.mxu0 0
      %1483 = vmatpush1.bf16.msra.mxu0 0
      %1484 = vmatprep.subr.bf16.mxu0 0
      %1485 = vmatpush1.bf16.msra.mxu0 0
      %1486 = vmatprep.subr.bf16.mxu0 0
      %1487 = vmatpush1.bf16.msra.mxu0 0
      %1488 = vmatprep.subr.bf16.mxu0 0
      %1489 = vmatpush1.bf16.msra.mxu0 0
      %1490 = vmatprep.subr.bf16.mxu0 0
      %1491 = vmatpush1.bf16.msra.mxu0 0
      %1492 = vmatprep.subr.bf16.mxu0 0
      %1493 = vmatpush1.bf16.msra.mxu0 0
      %1494 = vmatprep.mubr.bf16.mxu0 0
      %1495 = vmatmul.mubr.bf16.gmra.mrb[0].mxu0 %v1412
      %v1496 = vpop.f32.mrb[0].mxu0
      %v1497 = vadd.f32 0.0, %v1496
      %v1498 = vpop.f32.mrb[0].mxu0
      %v1499 = vpop.f32.mrb[0].mxu0
      %v1500 = vadd.f32 0.0, %v1499
      %v1501 = vpop.f32.mrb[0].mxu0
      %1502 = vmatprep.mubr.bf16.mxu0 0
      %1503 = vmatmul.mubr.bf16.gmra.mrb[0].mxu0 %v1415
      %v1504 = vpop.f32.mrb[0].mxu0
      %v1505 = vadd.f32 0.0, %v1504
      %v1506 = vpop.f32.mrb[0].mxu0
      %v1507 = vpop.f32.mrb[0].mxu0
      %v1508 = vadd.f32 0.0, %v1507
      %v1509 = vpop.f32.mrb[0].mxu0
      %1510 = vmatprep.mubr.bf16.mxu0 0
      %1511 = vmatmul.mubr.bf16.gmra.mrb[0].mxu0 %v1418
      %v1512 = vpop.f32.mrb[0].mxu0
      %v1513 = vadd.f32 0.0, %v1512
      %v1514 = vpop.f32.mrb[0].mxu0
      %v1515 = vpop.f32.mrb[0].mxu0
      %v1516 = vadd.f32 0.0, %v1515
      %v1517 = vpop.f32.mrb[0].mxu0
      %1518 = vmatprep.mubr.bf16.mxu0 0
      %1519 = vmatmul.mubr.bf16.gmra.mrb[0].mxu0 %v1421
      %v1520 = vpop.f32.mrb[0].mxu0
      %v1521 = vadd.f32 0.0, %v1520
      %v1522 = vpop.f32.mrb[0].mxu0
      %v1523 = vpop.f32.mrb[0].mxu0
      %v1524 = vadd.f32 0.0, %v1523
      %v1525 = vpop.f32.mrb[0].mxu0
      %1526 = vmatprep.mubr.bf16.mxu0 0
      %1527 = vmatmul.mubr.bf16.gmra.mrb[0].mxu0 %v1424
      %v1528 = vpop.f32.mrb[0].mxu0
      %v1529 = vadd.f32 0.0, %v1528
      %v1530 = vpop.f32.mrb[0].mxu0
      %v1531 = vpop.f32.mrb[0].mxu0
      %v1532 = vadd.f32 0.0, %v1531
      %v1533 = vpop.f32.mrb[0].mxu0
      %1534 = vmatprep.mubr.bf16.mxu0 0
      %1535 = vmatmul.mubr.bf16.gmra.mrb[0].mxu0 %v1427
      %v1536 = vpop.f32.mrb[0].mxu0
      %v1537 = vadd.f32 0.0, %v1536
      %v1538 = vpop.f32.mrb[0].mxu0
      %v1539 = vpop.f32.mrb[0].mxu0
      %v1540 = vadd.f32 0.0, %v1539
      %v1541 = vpop.f32.mrb[0].mxu0
      %1542 = vmatprep.mubr.bf16.mxu0 0
      %1543 = vmatmul.mubr.bf16.gmra.mrb[0].mxu0 %v1430
      %v1544 = vpop.f32.mrb[0].mxu0
      %v1545 = vadd.f32 0.0, %v1544
      %v1546 = vpop.f32.mrb[0].mxu0
      %v1547 = vpop.f32.mrb[0].mxu0
      %v1548 = vadd.f32 0.0, %v1547
      %v1549 = vpop.f32.mrb[0].mxu0
      %1550 = vmatprep.mubr.bf16.mxu0 0
      %1551 = vmatmul.mubr.bf16.gmra.mrb[0].mxu0 %v1433
      %v1552 = vpop.f32.mrb[0].mxu0
      %v1553 = vadd.f32 0.0, %v1552
      %v1554 = vpop.f32.mrb[0].mxu0
      %v1555 = vpop.f32.mrb[0].mxu0
      %v1556 = vadd.f32 0.0, %v1555
      %v1557 = vpop.f32.mrb[0].mxu0
      %1558 = vmatprep.mubr.bf16.mxu0 0
      %1559 = vmatmul.mubr.bf16.gmra.mrb[0].mxu0 %v1436
      %v1560 = vpop.f32.mrb[0].mxu0
      %v1561 = vadd.f32 0.0, %v1560
      %v1562 = vpop.f32.mrb[0].mxu0
      %v1563 = vpop.f32.mrb[0].mxu0
      %v1564 = vadd.f32 0.0, %v1563
      %v1565 = vpop.f32.mrb[0].mxu0
      %1566 = vmatprep.mubr.bf16.mxu0 0
      %1567 = vmatmul.mubr.bf16.gmra.mrb[0].mxu0 %v1439
      %v1568 = vpop.f32.mrb[0].mxu0
      %v1569 = vadd.f32 0.0, %v1568
      %v1570 = vpop.f32.mrb[0].mxu0
      %v1571 = vpop.f32.mrb[0].mxu0
      %v1572 = vadd.f32 0.0, %v1571
      %v1573 = vpop.f32.mrb[0].mxu0
      %1574 = vmatprep.mubr.bf16.mxu0 0
      %1575 = vmatmul.mubr.bf16.gmra.mrb[0].mxu0 %v1442
      %v1576 = vpop.f32.mrb[0].mxu0
      %v1577 = vadd.f32 0.0, %v1576
      %v1578 = vpop.f32.mrb[0].mxu0
      %v1579 = vpop.f32.mrb[0].mxu0
      %v1580 = vadd.f32 0.0, %v1579
      %v1581 = vpop.f32.mrb[0].mxu0
      %1582 = vmatprep.mubr.bf16.mxu0 0
      %1583 = vmatmul.mubr.bf16.gmra.mrb[0].mxu0 %v1445
      %v1584 = vpop.f32.mrb[0].mxu0
      %v1585 = vadd.f32 0.0, %v1584
      %v1586 = vpop.f32.mrb[0].mxu0
      %v1587 = vpop.f32.mrb[0].mxu0
      %v1588 = vadd.f32 0.0, %v1587
      %v1589 = vpop.f32.mrb[0].mxu0
      %1590 = vmatprep.mubr.bf16.mxu0 0
      %1591 = vmatmul.mubr.bf16.gmra.mrb[0].mxu0 %v1448
      %v1592 = vpop.f32.mrb[0].mxu0
      %v1593 = vadd.f32 0.0, %v1592
      %v1594 = vpop.f32.mrb[0].mxu0
      %v1595 = vpop.f32.mrb[0].mxu0
      %v1596 = vadd.f32 0.0, %v1595
      %v1597 = vpop.f32.mrb[0].mxu0
      %1598 = vmatprep.mubr.bf16.mxu0 0
      %1599 = vmatmul.mubr.bf16.gmra.mrb[0].mxu0 %v1451
      %v1600 = vpop.f32.mrb[0].mxu0
      %v1601 = vadd.f32 0.0, %v1600
      %v1602 = vpop.f32.mrb[0].mxu0
      %v1603 = vpop.f32.mrb[0].mxu0
      %v1604 = vadd.f32 0.0, %v1603
      %v1605 = vpop.f32.mrb[0].mxu0
      %1606 = vmatprep.mubr.bf16.mxu0 0
      %1607 = vmatmul.mubr.bf16.gmra.mrb[0].mxu0 %v1454
      %v1608 = vpop.f32.mrb[0].mxu0
      %v1609 = vadd.f32 0.0, %v1608
      %v1610 = vpop.f32.mrb[0].mxu0
      %v1611 = vpop.f32.mrb[0].mxu0
      %v1612 = vadd.f32 0.0, %v1611
      %v1613 = vpop.f32.mrb[0].mxu0
      %1614 = vmatprep.mubr.bf16.mxu0 0
      %1615 = vmatmul.mubr.bf16.gmra.mrb[0].mxu0 %v1457
      %v1616 = vpop.f32.mrb[0].mxu0
      %v1617 = vadd.f32 0.0, %v1616
      %v1618 = vpop.f32.mrb[0].mxu0
      %v1619 = vpop.f32.mrb[0].mxu0
      %v1620 = vadd.f32 0.0, %v1619
      %v1621 = vpop.f32.mrb[0].mxu0
      %1622 = vdwg.mxu0
      %v1623 = vadd.f32 %v1202, %v1497
      %v1624 = vadd.f32 %v1205, %v1500
      %v1625 = vadd.f32 %v1210, %v1505
      %v1626 = vadd.f32 %v1213, %v1508
      %v1627 = vadd.f32 %v1218, %v1513
      %v1628 = vadd.f32 %v1221, %v1516
      %v1629 = vadd.f32 %v1226, %v1521
      %v1630 = vadd.f32 %v1229, %v1524
      %v1631 = vadd.f32 %v1234, %v1529
      %v1632 = vadd.f32 %v1237, %v1532
      %v1633 = vadd.f32 %v1242, %v1537
      %v1634 = vadd.f32 %v1245, %v1540
      %v1635 = vadd.f32 %v1250, %v1545
      %v1636 = vadd.f32 %v1253, %v1548
      %v1637 = vadd.f32 %v1258, %v1553
      %v1638 = vadd.f32 %v1261, %v1556
      %v1639 = vadd.f32 %v1266, %v1561
      %v1640 = vadd.f32 %v1269, %v1564
      %v1641 = vadd.f32 %v1274, %v1569
      %v1642 = vadd.f32 %v1277, %v1572
      %v1643 = vadd.f32 %v1282, %v1577
      %v1644 = vadd.f32 %v1285, %v1580
      %v1645 = vadd.f32 %v1290, %v1585
      %v1646 = vadd.f32 %v1293, %v1588
      %v1647 = vadd.f32 %v1298, %v1593
      %v1648 = vadd.f32 %v1301, %v1596
      %v1649 = vadd.f32 %v1306, %v1601
      %v1650 = vadd.f32 %v1309, %v1604
      %v1651 = vadd.f32 %v1314, %v1609
      %v1652 = vadd.f32 %v1317, %v1612
      %v1653 = vadd.f32 %v1322, %v1617
      %v1654 = vadd.f32 %v1325, %v1620
      %s1655 = scalar_lea.vmem %s3, 6
      %v1656 = vld [vmem:[%s1655] sm:$0x3]
      %v1658 = vsel %vm918, %v702, 0
      %v1661 = vsel %vm967, %v1656, 0
      %1663 = vmatprep.subr.bf16.mxu0 0
      %1664 = vmatpush1.bf16.msra.mxu0 %v1661
      %1665 = vmatprep.subr.bf16.mxu0 0
      %1666 = vmatpush1.bf16.msra.mxu0 0
      %1667 = vmatprep.subr.bf16.mxu0 0
      %1668 = vmatpush1.bf16.msra.mxu0 0
      %1669 = vmatprep.subr.bf16.mxu0 0
      %1670 = vmatpush1.bf16.msra.mxu0 0
      %1671 = vmatprep.subr.bf16.mxu0 0
      %1672 = vmatpush1.bf16.msra.mxu0 0
      %1673 = vmatprep.subr.bf16.mxu0 0
      %1674 = vmatpush1.bf16.msra.mxu0 0
      %1675 = vmatprep.subr.bf16.mxu0 0
      %1676 = vmatpush1.bf16.msra.mxu0 0
      %1677 = vmatprep.subr.bf16.mxu0 0
      %1678 = vmatpush1.bf16.msra.mxu0 0
      %1679 = vmatprep.subr.bf16.mxu0 0
      %1680 = vmatpush1.bf16.msra.mxu0 0
      %1681 = vmatprep.subr.bf16.mxu0 0
      %1682 = vmatpush1.bf16.msra.mxu0 0
      %1683 = vmatprep.subr.bf16.mxu0 0
      %1684 = vmatpush1.bf16.msra.mxu0 0
      %1685 = vmatprep.subr.bf16.mxu0 0
      %1686 = vmatpush1.bf16.msra.mxu0 0
      %1687 = vmatprep.subr.bf16.mxu0 0
      %1688 = vmatpush1.bf16.msra.mxu0 0
      %1689 = vmatprep.subr.bf16.mxu0 0
      %1690 = vmatpush1.bf16.msra.mxu0 0
      %1691 = vmatprep.subr.bf16.mxu0 0
      %1692 = vmatpush1.bf16.msra.mxu0 0
      %1693 = vmatprep.subr.bf16.mxu0 0
      %1694 = vmatpush1.bf16.msra.mxu0 0
      %1695 = vmatprep.mubr.bf16.mxu0 0
      %1696 = vmatmul.mubr.bf16.gmra.mrb[0].mxu0 %v1134
      %v1697 = vpop.f32.mrb[0].mxu0
      %v1698 = vadd.f32 0.0, %v1697
      %v1699 = vpop.f32.mrb[0].mxu0
      %v1700 = vpop.f32.mrb[0].mxu0
      %v1701 = vadd.f32 0.0, %v1700
      %v1702 = vpop.f32.mrb[0].mxu0
      %1703 = vmatprep.mubr.bf16.mxu0 0
      %1704 = vmatmul.mubr.bf16.gmra.mrb[0].mxu0 %v1136
      %v1705 = vpop.f32.mrb[0].mxu0
      %v1706 = vadd.f32 0.0, %v1705
      %v1707 = vpop.f32.mrb[0].mxu0
      %v1708 = vpop.f32.mrb[0].mxu0
      %v1709 = vadd.f32 0.0, %v1708
      %v1710 = vpop.f32.mrb[0].mxu0
      %1711 = vmatprep.mubr.bf16.mxu0 0
      %1712 = vmatmul.mubr.bf16.gmra.mrb[0].mxu0 %v1138
      %v1713 = vpop.f32.mrb[0].mxu0
      %v1714 = vadd.f32 0.0, %v1713
      %v1715 = vpop.f32.mrb[0].mxu0
      %v1716 = vpop.f32.mrb[0].mxu0
      %v1717 = vadd.f32 0.0, %v1716
      %v1718 = vpop.f32.mrb[0].mxu0
      %1719 = vmatprep.mubr.bf16.mxu0 0
      %1720 = vmatmul.mubr.bf16.gmra.mrb[0].mxu0 %v1140
      %v1721 = vpop.f32.mrb[0].mxu0
      %v1722 = vadd.f32 0.0, %v1721
      %v1723 = vpop.f32.mrb[0].mxu0
      %v1724 = vpop.f32.mrb[0].mxu0
      %v1725 = vadd.f32 0.0, %v1724
      %v1726 = vpop.f32.mrb[0].mxu0
      %1727 = vmatprep.mubr.bf16.mxu0 0
      %1728 = vmatmul.mubr.bf16.gmra.mrb[0].mxu0 %v1142
      %v1729 = vpop.f32.mrb[0].mxu0
      %v1730 = vadd.f32 0.0, %v1729
      %v1731 = vpop.f32.mrb[0].mxu0
      %v1732 = vpop.f32.mrb[0].mxu0
      %v1733 = vadd.f32 0.0, %v1732
      %v1734 = vpop.f32.mrb[0].mxu0
      %1735 = vmatprep.mubr.bf16.mxu0 0
      %1736 = vmatmul.mubr.bf16.gmra.mrb[0].mxu0 %v1144
      %v1737 = vpop.f32.mrb[0].mxu0
      %v1738 = vadd.f32 0.0, %v1737
      %v1739 = vpop.f32.mrb[0].mxu0
      %v1740 = vpop.f32.mrb[0].mxu0
      %v1741 = vadd.f32 0.0, %v1740
      %v1742 = vpop.f32.mrb[0].mxu0
      %1743 = vmatprep.mubr.bf16.mxu0 0
      %1744 = vmatmul.mubr.bf16.gmra.mrb[0].mxu0 %v1146
      %v1745 = vpop.f32.mrb[0].mxu0
      %v1746 = vadd.f32 0.0, %v1745
      %v1747 = vpop.f32.mrb[0].mxu0
      %v1748 = vpop.f32.mrb[0].mxu0
      %v1749 = vadd.f32 0.0, %v1748
      %v1750 = vpop.f32.mrb[0].mxu0
      %1751 = vmatprep.mubr.bf16.mxu0 0
      %1752 = vmatmul.mubr.bf16.gmra.mrb[0].mxu0 %v1148
      %v1753 = vpop.f32.mrb[0].mxu0
      %v1754 = vadd.f32 0.0, %v1753
      %v1755 = vpop.f32.mrb[0].mxu0
      %v1756 = vpop.f32.mrb[0].mxu0
      %v1757 = vadd.f32 0.0, %v1756
      %v1758 = vpop.f32.mrb[0].mxu0
      %1759 = vmatprep.mubr.bf16.mxu0 0
      %1760 = vmatmul.mubr.bf16.gmra.mrb[0].mxu0 %v1150
      %v1761 = vpop.f32.mrb[0].mxu0
      %v1762 = vadd.f32 0.0, %v1761
      %v1763 = vpop.f32.mrb[0].mxu0
      %v1764 = vpop.f32.mrb[0].mxu0
      %v1765 = vadd.f32 0.0, %v1764
      %v1766 = vpop.f32.mrb[0].mxu0
      %1767 = vmatprep.mubr.bf16.mxu0 0
      %1768 = vmatmul.mubr.bf16.gmra.mrb[0].mxu0 %v1152
      %v1769 = vpop.f32.mrb[0].mxu0
      %v1770 = vadd.f32 0.0, %v1769
      %v1771 = vpop.f32.mrb[0].mxu0
      %v1772 = vpop.f32.mrb[0].mxu0
      %v1773 = vadd.f32 0.0, %v1772
      %v1774 = vpop.f32.mrb[0].mxu0
      %1775 = vmatprep.mubr.bf16.mxu0 0
      %1776 = vmatmul.mubr.bf16.gmra.mrb[0].mxu0 %v1154
      %v1777 = vpop.f32.mrb[0].mxu0
      %v1778 = vadd.f32 0.0, %v1777
      %v1779 = vpop.f32.mrb[0].mxu0
      %v1780 = vpop.f32.mrb[0].mxu0
      %v1781 = vadd.f32 0.0, %v1780
      %v1782 = vpop.f32.mrb[0].mxu0
      %1783 = vmatprep.mubr.bf16.mxu0 0
      %1784 = vmatmul.mubr.bf16.gmra.mrb[0].mxu0 %v1156
      %v1785 = vpop.f32.mrb[0].mxu0
      %v1786 = vadd.f32 0.0, %v1785
      %v1787 = vpop.f32.mrb[0].mxu0
      %v1788 = vpop.f32.mrb[0].mxu0
      %v1789 = vadd.f32 0.0, %v1788
      %v1790 = vpop.f32.mrb[0].mxu0
      %1791 = vmatprep.mubr.bf16.mxu0 0
      %1792 = vmatmul.mubr.bf16.gmra.mrb[0].mxu0 %v1158
      %v1793 = vpop.f32.mrb[0].mxu0
      %v1794 = vadd.f32 0.0, %v1793
      %v1795 = vpop.f32.mrb[0].mxu0
      %v1796 = vpop.f32.mrb[0].mxu0
      %v1797 = vadd.f32 0.0, %v1796
      %v1798 = vpop.f32.mrb[0].mxu0
      %1799 = vmatprep.mubr.bf16.mxu0 0
      %1800 = vmatmul.mubr.bf16.gmra.mrb[0].mxu0 %v1160
      %v1801 = vpop.f32.mrb[0].mxu0
      %v1802 = vadd.f32 0.0, %v1801
      %v1803 = vpop.f32.mrb[0].mxu0
      %v1804 = vpop.f32.mrb[0].mxu0
      %v1805 = vadd.f32 0.0, %v1804
      %v1806 = vpop.f32.mrb[0].mxu0
      %1807 = vmatprep.mubr.bf16.mxu0 0
      %1808 = vmatmul.mubr.bf16.gmra.mrb[0].mxu0 %v1162
      %v1809 = vpop.f32.mrb[0].mxu0
      %v1810 = vadd.f32 0.0, %v1809
      %v1811 = vpop.f32.mrb[0].mxu0
      %v1812 = vpop.f32.mrb[0].mxu0
      %v1813 = vadd.f32 0.0, %v1812
      %v1814 = vpop.f32.mrb[0].mxu0
      %1815 = vmatprep.mubr.bf16.mxu0 0
      %1816 = vmatmul.mubr.bf16.gmra.mrb[0].mxu0 %v1658
      %v1817 = vpop.f32.mrb[0].mxu0
      %v1818 = vadd.f32 0.0, %v1817
      %v1819 = vpop.f32.mrb[0].mxu0
      %v1820 = vpop.f32.mrb[0].mxu0
      %v1821 = vadd.f32 0.0, %v1820
      %v1822 = vpop.f32.mrb[0].mxu0
      %1823 = vdwg.mxu0
      %v1824 = vadd.f32 %v1623, %v1698
      %v1825 = vadd.f32 %v1624, %v1701
      %v1826 = vadd.f32 %v1625, %v1706
      %v1827 = vadd.f32 %v1626, %v1709
      %v1828 = vadd.f32 %v1627, %v1714
      %v1829 = vadd.f32 %v1628, %v1717
      %v1830 = vadd.f32 %v1629, %v1722
      %v1831 = vadd.f32 %v1630, %v1725
      %v1832 = vadd.f32 %v1631, %v1730
      %v1833 = vadd.f32 %v1632, %v1733
      %v1834 = vadd.f32 %v1633, %v1738
      %v1835 = vadd.f32 %v1634, %v1741
      %v1836 = vadd.f32 %v1635, %v1746
      %v1837 = vadd.f32 %v1636, %v1749
      %v1838 = vadd.f32 %v1637, %v1754
      %v1839 = vadd.f32 %v1638, %v1757
      %v1840 = vadd.f32 %v1639, %v1762
      %v1841 = vadd.f32 %v1640, %v1765
      %v1842 = vadd.f32 %v1641, %v1770
      %v1843 = vadd.f32 %v1642, %v1773
      %v1844 = vadd.f32 %v1643, %v1778
      %v1845 = vadd.f32 %v1644, %v1781
      %v1846 = vadd.f32 %v1645, %v1786
      %v1847 = vadd.f32 %v1646, %v1789
      %v1848 = vadd.f32 %v1647, %v1794
      %v1849 = vadd.f32 %v1648, %v1797
      %v1850 = vadd.f32 %v1649, %v1802
      %v1851 = vadd.f32 %v1650, %v1805
      %v1852 = vadd.f32 %v1651, %v1810
      %v1853 = vadd.f32 %v1652, %v1813
      %v1854 = vadd.f32 %v1653, %v1818
      %v1855 = vadd.f32 %v1654, %v1821
      %v1856 = vshrl.u32 %v702, 16
      %v1858 = vshll.u32 %v702, 16
      %v1860 = vrot.slane %v1858, 1
      %v1861 = vor.u32 %v1856, %v1860
      %v1863 = vshll.u32 %v720, 16
      %v1865 = vrot.slane %v1863, 1
      %v1866 = vsel %vm723, %v1861, %v1865
      %s1867 = scalar_lea.vmem %s3, 8
      %v1868 = vld [vmem:[%s1867] sm:$0x3]
      %v1870 = vsel %vm918, %v1866, 0
      %v1873 = vsel %vm967, %v1868, 0
      %1875 = vmatprep.subr.bf16.mxu0 0
      %1876 = vmatpush1.bf16.msra.mxu0 %v1873
      %1877 = vmatprep.subr.bf16.mxu0 0
      %1878 = vmatpush1.bf16.msra.mxu0 0
      %1879 = vmatprep.subr.bf16.mxu0 0
      %1880 = vmatpush1.bf16.msra.mxu0 0
      %1881 = vmatprep.subr.bf16.mxu0 0
      %1882 = vmatpush1.bf16.msra.mxu0 0
      %1883 = vmatprep.subr.bf16.mxu0 0
      %1884 = vmatpush1.bf16.msra.mxu0 0
      %1885 = vmatprep.subr.bf16.mxu0 0
      %1886 = vmatpush1.bf16.msra.mxu0 0
      %1887 = vmatprep.subr.bf16.mxu0 0
      %1888 = vmatpush1.bf16.msra.mxu0 0
      %1889 = vmatprep.subr.bf16.mxu0 0
      %1890 = vmatpush1.bf16.msra.mxu0 0
      %1891 = vmatprep.subr.bf16.mxu0 0
      %1892 = vmatpush1.bf16.msra.mxu0 0
      %1893 = vmatprep.subr.bf16.mxu0 0
      %1894 = vmatpush1.bf16.msra.mxu0 0
      %1895 = vmatprep.subr.bf16.mxu0 0
      %1896 = vmatpush1.bf16.msra.mxu0 0
      %1897 = vmatprep.subr.bf16.mxu0 0
      %1898 = vmatpush1.bf16.msra.mxu0 0
      %1899 = vmatprep.subr.bf16.mxu0 0
      %1900 = vmatpush1.bf16.msra.mxu0 0
      %1901 = vmatprep.subr.bf16.mxu0 0
      %1902 = vmatpush1.bf16.msra.mxu0 0
      %1903 = vmatprep.subr.bf16.mxu0 0
      %1904 = vmatpush1.bf16.msra.mxu0 0
      %1905 = vmatprep.subr.bf16.mxu0 0
      %1906 = vmatpush1.bf16.msra.mxu0 0
      %1907 = vmatprep.mubr.bf16.mxu0 0
      %1908 = vmatmul.mubr.bf16.gmra.mrb[0].mxu0 %v923
      %v1909 = vpop.f32.mrb[0].mxu0
      %v1910 = vadd.f32 0.0, %v1909
      %v1911 = vpop.f32.mrb[0].mxu0
      %v1912 = vpop.f32.mrb[0].mxu0
      %v1913 = vadd.f32 0.0, %v1912
      %v1914 = vpop.f32.mrb[0].mxu0
      %1915 = vmatprep.mubr.bf16.mxu0 0
      %1916 = vmatmul.mubr.bf16.gmra.mrb[0].mxu0 %v926
      %v1917 = vpop.f32.mrb[0].mxu0
      %v1918 = vadd.f32 0.0, %v1917
      %v1919 = vpop.f32.mrb[0].mxu0
      %v1920 = vpop.f32.mrb[0].mxu0
      %v1921 = vadd.f32 0.0, %v1920
      %v1922 = vpop.f32.mrb[0].mxu0
      %1923 = vmatprep.mubr.bf16.mxu0 0
      %1924 = vmatmul.mubr.bf16.gmra.mrb[0].mxu0 %v929
      %v1925 = vpop.f32.mrb[0].mxu0
      %v1926 = vadd.f32 0.0, %v1925
      %v1927 = vpop.f32.mrb[0].mxu0
      %v1928 = vpop.f32.mrb[0].mxu0
      %v1929 = vadd.f32 0.0, %v1928
      %v1930 = vpop.f32.mrb[0].mxu0
      %1931 = vmatprep.mubr.bf16.mxu0 0
      %1932 = vmatmul.mubr.bf16.gmra.mrb[0].mxu0 %v932
      %v1933 = vpop.f32.mrb[0].mxu0
      %v1934 = vadd.f32 0.0, %v1933
      %v1935 = vpop.f32.mrb[0].mxu0
      %v1936 = vpop.f32.mrb[0].mxu0
      %v1937 = vadd.f32 0.0, %v1936
      %v1938 = vpop.f32.mrb[0].mxu0
      %1939 = vmatprep.mubr.bf16.mxu0 0
      %1940 = vmatmul.mubr.bf16.gmra.mrb[0].mxu0 %v935
      %v1941 = vpop.f32.mrb[0].mxu0
      %v1942 = vadd.f32 0.0, %v1941
      %v1943 = vpop.f32.mrb[0].mxu0
      %v1944 = vpop.f32.mrb[0].mxu0
      %v1945 = vadd.f32 0.0, %v1944
      %v1946 = vpop.f32.mrb[0].mxu0
      %1947 = vmatprep.mubr.bf16.mxu0 0
      %1948 = vmatmul.mubr.bf16.gmra.mrb[0].mxu0 %v938
      %v1949 = vpop.f32.mrb[0].mxu0
      %v1950 = vadd.f32 0.0, %v1949
      %v1951 = vpop.f32.mrb[0].mxu0
      %v1952 = vpop.f32.mrb[0].mxu0
      %v1953 = vadd.f32 0.0, %v1952
      %v1954 = vpop.f32.mrb[0].mxu0
      %1955 = vmatprep.mubr.bf16.mxu0 0
      %1956 = vmatmul.mubr.bf16.gmra.mrb[0].mxu0 %v941
      %v1957 = vpop.f32.mrb[0].mxu0
      %v1958 = vadd.f32 0.0, %v1957
      %v1959 = vpop.f32.mrb[0].mxu0
      %v1960 = vpop.f32.mrb[0].mxu0
      %v1961 = vadd.f32 0.0, %v1960
      %v1962 = vpop.f32.mrb[0].mxu0
      %1963 = vmatprep.mubr.bf16.mxu0 0
      %1964 = vmatmul.mubr.bf16.gmra.mrb[0].mxu0 %v944
      %v1965 = vpop.f32.mrb[0].mxu0
      %v1966 = vadd.f32 0.0, %v1965
      %v1967 = vpop.f32.mrb[0].mxu0
      %v1968 = vpop.f32.mrb[0].mxu0
      %v1969 = vadd.f32 0.0, %v1968
      %v1970 = vpop.f32.mrb[0].mxu0
      %1971 = vmatprep.mubr.bf16.mxu0 0
      %1972 = vmatmul.mubr.bf16.gmra.mrb[0].mxu0 %v947
      %v1973 = vpop.f32.mrb[0].mxu0
      %v1974 = vadd.f32 0.0, %v1973
      %v1975 = vpop.f32.mrb[0].mxu0
      %v1976 = vpop.f32.mrb[0].mxu0
      %v1977 = vadd.f32 0.0, %v1976
      %v1978 = vpop.f32.mrb[0].mxu0
      %1979 = vmatprep.mubr.bf16.mxu0 0
      %1980 = vmatmul.mubr.bf16.gmra.mrb[0].mxu0 %v950
      %v1981 = vpop.f32.mrb[0].mxu0
      %v1982 = vadd.f32 0.0, %v1981
      %v1983 = vpop.f32.mrb[0].mxu0
      %v1984 = vpop.f32.mrb[0].mxu0
      %v1985 = vadd.f32 0.0, %v1984
      %v1986 = vpop.f32.mrb[0].mxu0
      %1987 = vmatprep.mubr.bf16.mxu0 0
      %1988 = vmatmul.mubr.bf16.gmra.mrb[0].mxu0 %v953
      %v1989 = vpop.f32.mrb[0].mxu0
      %v1990 = vadd.f32 0.0, %v1989
      %v1991 = vpop.f32.mrb[0].mxu0
      %v1992 = vpop.f32.mrb[0].mxu0
      %v1993 = vadd.f32 0.0, %v1992
      %v1994 = vpop.f32.mrb[0].mxu0
      %1995 = vmatprep.mubr.bf16.mxu0 0
      %1996 = vmatmul.mubr.bf16.gmra.mrb[0].mxu0 %v956
      %v1997 = vpop.f32.mrb[0].mxu0
      %v1998 = vadd.f32 0.0, %v1997
      %v1999 = vpop.f32.mrb[0].mxu0
      %v2000 = vpop.f32.mrb[0].mxu0
      %v2001 = vadd.f32 0.0, %v2000
      %v2002 = vpop.f32.mrb[0].mxu0
      %2003 = vmatprep.mubr.bf16.mxu0 0
      %2004 = vmatmul.mubr.bf16.gmra.mrb[0].mxu0 %v959
      %v2005 = vpop.f32.mrb[0].mxu0
      %v2006 = vadd.f32 0.0, %v2005
      %v2007 = vpop.f32.mrb[0].mxu0
      %v2008 = vpop.f32.mrb[0].mxu0
      %v2009 = vadd.f32 0.0, %v2008
      %v2010 = vpop.f32.mrb[0].mxu0
      %2011 = vmatprep.mubr.bf16.mxu0 0
      %2012 = vmatmul.mubr.bf16.gmra.mrb[0].mxu0 %v962
      %v2013 = vpop.f32.mrb[0].mxu0
      %v2014 = vadd.f32 0.0, %v2013
      %v2015 = vpop.f32.mrb[0].mxu0
      %v2016 = vpop.f32.mrb[0].mxu0
      %v2017 = vadd.f32 0.0, %v2016
      %v2018 = vpop.f32.mrb[0].mxu0
      %2019 = vmatprep.mubr.bf16.mxu0 0
      %2020 = vmatmul.mubr.bf16.gmra.mrb[0].mxu0 %v965
      %v2021 = vpop.f32.mrb[0].mxu0
      %v2022 = vadd.f32 0.0, %v2021
      %v2023 = vpop.f32.mrb[0].mxu0
      %v2024 = vpop.f32.mrb[0].mxu0
      %v2025 = vadd.f32 0.0, %v2024
      %v2026 = vpop.f32.mrb[0].mxu0
      %2027 = vmatprep.mubr.bf16.mxu0 0
      %2028 = vmatmul.mubr.bf16.gmra.mrb[0].mxu0 %v1870
      %v2029 = vpop.f32.mrb[0].mxu0
      %v2030 = vadd.f32 0.0, %v2029
      %v2031 = vpop.f32.mrb[0].mxu0
      %v2032 = vpop.f32.mrb[0].mxu0
      %v2033 = vadd.f32 0.0, %v2032
      %v2034 = vpop.f32.mrb[0].mxu0
      %2035 = vdwg.mxu0
      %v2036 = vadd.f32 %v1824, %v1910
      %v2037 = vadd.f32 %v1825, %v1913
      %v2038 = vadd.f32 %v1826, %v1918
      %v2039 = vadd.f32 %v1827, %v1921
      %v2040 = vadd.f32 %v1828, %v1926
      %v2041 = vadd.f32 %v1829, %v1929
      %v2042 = vadd.f32 %v1830, %v1934
      %v2043 = vadd.f32 %v1831, %v1937
      %v2044 = vadd.f32 %v1832, %v1942
      %v2045 = vadd.f32 %v1833, %v1945
      %v2046 = vadd.f32 %v1834, %v1950
      %v2047 = vadd.f32 %v1835, %v1953
      %v2048 = vadd.f32 %v1836, %v1958
      %v2049 = vadd.f32 %v1837, %v1961
      %v2050 = vadd.f32 %v1838, %v1966
      %v2051 = vadd.f32 %v1839, %v1969
      %v2052 = vadd.f32 %v1840, %v1974
      %v2053 = vadd.f32 %v1841, %v1977
      %v2054 = vadd.f32 %v1842, %v1982
      %v2055 = vadd.f32 %v1843, %v1985
      %v2056 = vadd.f32 %v1844, %v1990
      %v2057 = vadd.f32 %v1845, %v1993
      %v2058 = vadd.f32 %v1846, %v1998
      %v2059 = vadd.f32 %v1847, %v2001
      %v2060 = vadd.f32 %v1848, %v2006
      %v2061 = vadd.f32 %v1849, %v2009
      %v2062 = vadd.f32 %v1850, %v2014
      %v2063 = vadd.f32 %v1851, %v2017
      %v2064 = vadd.f32 %v1852, %v2022
      %v2065 = vadd.f32 %v1853, %v2025
      %v2066 = vadd.f32 %v1854, %v2030
      %v2067 = vadd.f32 %v1855, %v2033
      %v2070 = vrot.slane %v702, 1
      %v2071 = vrot.slane %v720, 1
      %v2072 = vsel %vm1360, %v2070, %v2071
      %s2073 = scalar_lea.vmem %s3, 10
      %v2074 = vld [vmem:[%s2073] sm:$0x3]
      %v2076 = vsel %vm918, %v2072, 0
      %v2079 = vsel %vm967, %v2074, 0
      %2081 = vmatprep.subr.bf16.mxu0 0
      %2082 = vmatpush1.bf16.msra.mxu0 %v2079
      %2083 = vmatprep.subr.bf16.mxu0 0
      %2084 = vmatpush1.bf16.msra.mxu0 0
      %2085 = vmatprep.subr.bf16.mxu0 0
      %2086 = vmatpush1.bf16.msra.mxu0 0
      %2087 = vmatprep.subr.bf16.mxu0 0
      %2088 = vmatpush1.bf16.msra.mxu0 0
      %2089 = vmatprep.subr.bf16.mxu0 0
      %2090 = vmatpush1.bf16.msra.mxu0 0
      %2091 = vmatprep.subr.bf16.mxu0 0
      %2092 = vmatpush1.bf16.msra.mxu0 0
      %2093 = vmatprep.subr.bf16.mxu0 0
      %2094 = vmatpush1.bf16.msra.mxu0 0
      %2095 = vmatprep.subr.bf16.mxu0 0
      %2096 = vmatpush1.bf16.msra.mxu0 0
      %2097 = vmatprep.subr.bf16.mxu0 0
      %2098 = vmatpush1.bf16.msra.mxu0 0
      %2099 = vmatprep.subr.bf16.mxu0 0
      %2100 = vmatpush1.bf16.msra.mxu0 0
      %2101 = vmatprep.subr.bf16.mxu0 0
      %2102 = vmatpush1.bf16.msra.mxu0 0
      %2103 = vmatprep.subr.bf16.mxu0 0
      %2104 = vmatpush1.bf16.msra.mxu0 0
      %2105 = vmatprep.subr.bf16.mxu0 0
      %2106 = vmatpush1.bf16.msra.mxu0 0
      %2107 = vmatprep.subr.bf16.mxu0 0
      %2108 = vmatpush1.bf16.msra.mxu0 0
      %2109 = vmatprep.subr.bf16.mxu0 0
      %2110 = vmatpush1.bf16.msra.mxu0 0
      %2111 = vmatprep.subr.bf16.mxu0 0
      %2112 = vmatpush1.bf16.msra.mxu0 0
      %2113 = vmatprep.mubr.bf16.mxu0 0
      %2114 = vmatmul.mubr.bf16.gmra.mrb[0].mxu0 %v1415
      %v2115 = vpop.f32.mrb[0].mxu0
      %v2116 = vadd.f32 0.0, %v2115
      %v2117 = vpop.f32.mrb[0].mxu0
      %v2118 = vpop.f32.mrb[0].mxu0
      %v2119 = vadd.f32 0.0, %v2118
      %v2120 = vpop.f32.mrb[0].mxu0
      %2121 = vmatprep.mubr.bf16.mxu0 0
      %2122 = vmatmul.mubr.bf16.gmra.mrb[0].mxu0 %v1418
      %v2123 = vpop.f32.mrb[0].mxu0
      %v2124 = vadd.f32 0.0, %v2123
      %v2125 = vpop.f32.mrb[0].mxu0
      %v2126 = vpop.f32.mrb[0].mxu0
      %v2127 = vadd.f32 0.0, %v2126
      %v2128 = vpop.f32.mrb[0].mxu0
      %2129 = vmatprep.mubr.bf16.mxu0 0
      %2130 = vmatmul.mubr.bf16.gmra.mrb[0].mxu0 %v1421
      %v2131 = vpop.f32.mrb[0].mxu0
      %v2132 = vadd.f32 0.0, %v2131
      %v2133 = vpop.f32.mrb[0].mxu0
      %v2134 = vpop.f32.mrb[0].mxu0
      %v2135 = vadd.f32 0.0, %v2134
      %v2136 = vpop.f32.mrb[0].mxu0
      %2137 = vmatprep.mubr.bf16.mxu0 0
      %2138 = vmatmul.mubr.bf16.gmra.mrb[0].mxu0 %v1424
      %v2139 = vpop.f32.mrb[0].mxu0
      %v2140 = vadd.f32 0.0, %v2139
      %v2141 = vpop.f32.mrb[0].mxu0
      %v2142 = vpop.f32.mrb[0].mxu0
      %v2143 = vadd.f32 0.0, %v2142
      %v2144 = vpop.f32.mrb[0].mxu0
      %2145 = vmatprep.mubr.bf16.mxu0 0
      %2146 = vmatmul.mubr.bf16.gmra.mrb[0].mxu0 %v1427
      %v2147 = vpop.f32.mrb[0].mxu0
      %v2148 = vadd.f32 0.0, %v2147
      %v2149 = vpop.f32.mrb[0].mxu0
      %v2150 = vpop.f32.mrb[0].mxu0
      %v2151 = vadd.f32 0.0, %v2150
      %v2152 = vpop.f32.mrb[0].mxu0
      %2153 = vmatprep.mubr.bf16.mxu0 0
      %2154 = vmatmul.mubr.bf16.gmra.mrb[0].mxu0 %v1430
      %v2155 = vpop.f32.mrb[0].mxu0
      %v2156 = vadd.f32 0.0, %v2155
      %v2157 = vpop.f32.mrb[0].mxu0
      %v2158 = vpop.f32.mrb[0].mxu0
      %v2159 = vadd.f32 0.0, %v2158
      %v2160 = vpop.f32.mrb[0].mxu0
      %2161 = vmatprep.mubr.bf16.mxu0 0
      %2162 = vmatmul.mubr.bf16.gmra.mrb[0].mxu0 %v1433
      %v2163 = vpop.f32.mrb[0].mxu0
      %v2164 = vadd.f32 0.0, %v2163
      %v2165 = vpop.f32.mrb[0].mxu0
      %v2166 = vpop.f32.mrb[0].mxu0
      %v2167 = vadd.f32 0.0, %v2166
      %v2168 = vpop.f32.mrb[0].mxu0
      %2169 = vmatprep.mubr.bf16.mxu0 0
      %2170 = vmatmul.mubr.bf16.gmra.mrb[0].mxu0 %v1436
      %v2171 = vpop.f32.mrb[0].mxu0
      %v2172 = vadd.f32 0.0, %v2171
      %v2173 = vpop.f32.mrb[0].mxu0
      %v2174 = vpop.f32.mrb[0].mxu0
      %v2175 = vadd.f32 0.0, %v2174
      %v2176 = vpop.f32.mrb[0].mxu0
      %2177 = vmatprep.mubr.bf16.mxu0 0
      %2178 = vmatmul.mubr.bf16.gmra.mrb[0].mxu0 %v1439
      %v2179 = vpop.f32.mrb[0].mxu0
      %v2180 = vadd.f32 0.0, %v2179
      %v2181 = vpop.f32.mrb[0].mxu0
      %v2182 = vpop.f32.mrb[0].mxu0
      %v2183 = vadd.f32 0.0, %v2182
      %v2184 = vpop.f32.mrb[0].mxu0
      %2185 = vmatprep.mubr.bf16.mxu0 0
      %2186 = vmatmul.mubr.bf16.gmra.mrb[0].mxu0 %v1442
      %v2187 = vpop.f32.mrb[0].mxu0
      %v2188 = vadd.f32 0.0, %v2187
      %v2189 = vpop.f32.mrb[0].mxu0
      %v2190 = vpop.f32.mrb[0].mxu0
      %v2191 = vadd.f32 0.0, %v2190
      %v2192 = vpop.f32.mrb[0].mxu0
      %2193 = vmatprep.mubr.bf16.mxu0 0
      %2194 = vmatmul.mubr.bf16.gmra.mrb[0].mxu0 %v1445
      %v2195 = vpop.f32.mrb[0].mxu0
      %v2196 = vadd.f32 0.0, %v2195
      %v2197 = vpop.f32.mrb[0].mxu0
      %v2198 = vpop.f32.mrb[0].mxu0
      %v2199 = vadd.f32 0.0, %v2198
      %v2200 = vpop.f32.mrb[0].mxu0
      %2201 = vmatprep.mubr.bf16.mxu0 0
      %2202 = vmatmul.mubr.bf16.gmra.mrb[0].mxu0 %v1448
      %v2203 = vpop.f32.mrb[0].mxu0
      %v2204 = vadd.f32 0.0, %v2203
      %v2205 = vpop.f32.mrb[0].mxu0
      %v2206 = vpop.f32.mrb[0].mxu0
      %v2207 = vadd.f32 0.0, %v2206
      %v2208 = vpop.f32.mrb[0].mxu0
      %2209 = vmatprep.mubr.bf16.mxu0 0
      %2210 = vmatmul.mubr.bf16.gmra.mrb[0].mxu0 %v1451
      %v2211 = vpop.f32.mrb[0].mxu0
      %v2212 = vadd.f32 0.0, %v2211
      %v2213 = vpop.f32.mrb[0].mxu0
      %v2214 = vpop.f32.mrb[0].mxu0
      %v2215 = vadd.f32 0.0, %v2214
      %v2216 = vpop.f32.mrb[0].mxu0
      %2217 = vmatprep.mubr.bf16.mxu0 0
      %2218 = vmatmul.mubr.bf16.gmra.mrb[0].mxu0 %v1454
      %v2219 = vpop.f32.mrb[0].mxu0
      %v2220 = vadd.f32 0.0, %v2219
      %v2221 = vpop.f32.mrb[0].mxu0
      %v2222 = vpop.f32.mrb[0].mxu0
      %v2223 = vadd.f32 0.0, %v2222
      %v2224 = vpop.f32.mrb[0].mxu0
      %2225 = vmatprep.mubr.bf16.mxu0 0
      %2226 = vmatmul.mubr.bf16.gmra.mrb[0].mxu0 %v1457
      %v2227 = vpop.f32.mrb[0].mxu0
      %v2228 = vadd.f32 0.0, %v2227
      %v2229 = vpop.f32.mrb[0].mxu0
      %v2230 = vpop.f32.mrb[0].mxu0
      %v2231 = vadd.f32 0.0, %v2230
      %v2232 = vpop.f32.mrb[0].mxu0
      %2233 = vmatprep.mubr.bf16.mxu0 0
      %2234 = vmatmul.mubr.bf16.gmra.mrb[0].mxu0 %v2076
      %v2235 = vpop.f32.mrb[0].mxu0
      %v2236 = vadd.f32 0.0, %v2235
      %v2237 = vpop.f32.mrb[0].mxu0
      %v2238 = vpop.f32.mrb[0].mxu0
      %v2239 = vadd.f32 0.0, %v2238
      %v2240 = vpop.f32.mrb[0].mxu0
      %2241 = vdwg.mxu0
      %v2242 = vadd.f32 %v2036, %v2116
      %v2243 = vadd.f32 %v2037, %v2119
      %v2244 = vadd.f32 %v2038, %v2124
      %v2245 = vadd.f32 %v2039, %v2127
      %v2246 = vadd.f32 %v2040, %v2132
      %v2247 = vadd.f32 %v2041, %v2135
      %v2248 = vadd.f32 %v2042, %v2140
      %v2249 = vadd.f32 %v2043, %v2143
      %v2250 = vadd.f32 %v2044, %v2148
      %v2251 = vadd.f32 %v2045, %v2151
      %v2252 = vadd.f32 %v2046, %v2156
      %v2253 = vadd.f32 %v2047, %v2159
      %v2254 = vadd.f32 %v2048, %v2164
      %v2255 = vadd.f32 %v2049, %v2167
      %v2256 = vadd.f32 %v2050, %v2172
      %v2257 = vadd.f32 %v2051, %v2175
      %v2258 = vadd.f32 %v2052, %v2180
      %v2259 = vadd.f32 %v2053, %v2183
      %v2260 = vadd.f32 %v2054, %v2188
      %v2261 = vadd.f32 %v2055, %v2191
      %v2262 = vadd.f32 %v2056, %v2196
      %v2263 = vadd.f32 %v2057, %v2199
      %v2264 = vadd.f32 %v2058, %v2204
      %v2265 = vadd.f32 %v2059, %v2207
      %v2266 = vadd.f32 %v2060, %v2212
      %v2267 = vadd.f32 %v2061, %v2215
      %v2268 = vadd.f32 %v2062, %v2220
      %v2269 = vadd.f32 %v2063, %v2223
      %v2270 = vadd.f32 %v2064, %v2228
      %v2271 = vadd.f32 %v2065, %v2231
      %v2272 = vadd.f32 %v2066, %v2236
      %v2273 = vadd.f32 %v2067, %v2239
      %s2274 = scalar_lea.vmem %s3, 12
      %v2275 = vld [vmem:[%s2274] sm:$0x3]
      %v2277 = vsel %vm918, %v703, 0
      %v2280 = vsel %vm967, %v2275, 0
      %2282 = vmatprep.subr.bf16.mxu0 0
      %2283 = vmatpush1.bf16.msra.mxu0 %v2280
      %2284 = vmatprep.subr.bf16.mxu0 0
      %2285 = vmatpush1.bf16.msra.mxu0 0
      %2286 = vmatprep.subr.bf16.mxu0 0
      %2287 = vmatpush1.bf16.msra.mxu0 0
      %2288 = vmatprep.subr.bf16.mxu0 0
      %2289 = vmatpush1.bf16.msra.mxu0 0
      %2290 = vmatprep.subr.bf16.mxu0 0
      %2291 = vmatpush1.bf16.msra.mxu0 0
      %2292 = vmatprep.subr.bf16.mxu0 0
      %2293 = vmatpush1.bf16.msra.mxu0 0
      %2294 = vmatprep.subr.bf16.mxu0 0
      %2295 = vmatpush1.bf16.msra.mxu0 0
      %2296 = vmatprep.subr.bf16.mxu0 0
      %2297 = vmatpush1.bf16.msra.mxu0 0
      %2298 = vmatprep.subr.bf16.mxu0 0
      %2299 = vmatpush1.bf16.msra.mxu0 0
      %2300 = vmatprep.subr.bf16.mxu0 0
      %2301 = vmatpush1.bf16.msra.mxu0 0
      %2302 = vmatprep.subr.bf16.mxu0 0
      %2303 = vmatpush1.bf16.msra.mxu0 0
      %2304 = vmatprep.subr.bf16.mxu0 0
      %2305 = vmatpush1.bf16.msra.mxu0 0
      %2306 = vmatprep.subr.bf16.mxu0 0
      %2307 = vmatpush1.bf16.msra.mxu0 0
      %2308 = vmatprep.subr.bf16.mxu0 0
      %2309 = vmatpush1.bf16.msra.mxu0 0
      %2310 = vmatprep.subr.bf16.mxu0 0
      %2311 = vmatpush1.bf16.msra.mxu0 0
      %2312 = vmatprep.subr.bf16.mxu0 0
      %2313 = vmatpush1.bf16.msra.mxu0 0
      %2314 = vmatprep.mubr.bf16.mxu0 0
      %2315 = vmatmul.mubr.bf16.gmra.mrb[0].mxu0 %v1136
      %v2316 = vpop.f32.mrb[0].mxu0
      %v2317 = vadd.f32 0.0, %v2316
      %v2318 = vpop.f32.mrb[0].mxu0
      %v2319 = vpop.f32.mrb[0].mxu0
      %v2320 = vadd.f32 0.0, %v2319
      %v2321 = vpop.f32.mrb[0].mxu0
      %2322 = vmatprep.mubr.bf16.mxu0 0
      %2323 = vmatmul.mubr.bf16.gmra.mrb[0].mxu0 %v1138
      %v2324 = vpop.f32.mrb[0].mxu0
      %v2325 = vadd.f32 0.0, %v2324
      %v2326 = vpop.f32.mrb[0].mxu0
      %v2327 = vpop.f32.mrb[0].mxu0
      %v2328 = vadd.f32 0.0, %v2327
      %v2329 = vpop.f32.mrb[0].mxu0
      %2330 = vmatprep.mubr.bf16.mxu0 0
      %2331 = vmatmul.mubr.bf16.gmra.mrb[0].mxu0 %v1140
      %v2332 = vpop.f32.mrb[0].mxu0
      %v2333 = vadd.f32 0.0, %v2332
      %v2334 = vpop.f32.mrb[0].mxu0
      %v2335 = vpop.f32.mrb[0].mxu0
      %v2336 = vadd.f32 0.0, %v2335
      %v2337 = vpop.f32.mrb[0].mxu0
      %2338 = vmatprep.mubr.bf16.mxu0 0
      %2339 = vmatmul.mubr.bf16.gmra.mrb[0].mxu0 %v1142
      %v2340 = vpop.f32.mrb[0].mxu0
      %v2341 = vadd.f32 0.0, %v2340
      %v2342 = vpop.f32.mrb[0].mxu0
      %v2343 = vpop.f32.mrb[0].mxu0
      %v2344 = vadd.f32 0.0, %v2343
      %v2345 = vpop.f32.mrb[0].mxu0
      %2346 = vmatprep.mubr.bf16.mxu0 0
      %2347 = vmatmul.mubr.bf16.gmra.mrb[0].mxu0 %v1144
      %v2348 = vpop.f32.mrb[0].mxu0
      %v2349 = vadd.f32 0.0, %v2348
      %v2350 = vpop.f32.mrb[0].mxu0
      %v2351 = vpop.f32.mrb[0].mxu0
      %v2352 = vadd.f32 0.0, %v2351
      %v2353 = vpop.f32.mrb[0].mxu0
      %2354 = vmatprep.mubr.bf16.mxu0 0
      %2355 = vmatmul.mubr.bf16.gmra.mrb[0].mxu0 %v1146
      %v2356 = vpop.f32.mrb[0].mxu0
      %v2357 = vadd.f32 0.0, %v2356
      %v2358 = vpop.f32.mrb[0].mxu0
      %v2359 = vpop.f32.mrb[0].mxu0
      %v2360 = vadd.f32 0.0, %v2359
      %v2361 = vpop.f32.mrb[0].mxu0
      %2362 = vmatprep.mubr.bf16.mxu0 0
      %2363 = vmatmul.mubr.bf16.gmra.mrb[0].mxu0 %v1148
      %v2364 = vpop.f32.mrb[0].mxu0
      %v2365 = vadd.f32 0.0, %v2364
      %v2366 = vpop.f32.mrb[0].mxu0
      %v2367 = vpop.f32.mrb[0].mxu0
      %v2368 = vadd.f32 0.0, %v2367
      %v2369 = vpop.f32.mrb[0].mxu0
      %2370 = vmatprep.mubr.bf16.mxu0 0
      %2371 = vmatmul.mubr.bf16.gmra.mrb[0].mxu0 %v1150
      %v2372 = vpop.f32.mrb[0].mxu0
      %v2373 = vadd.f32 0.0, %v2372
      %v2374 = vpop.f32.mrb[0].mxu0
      %v2375 = vpop.f32.mrb[0].mxu0
      %v2376 = vadd.f32 0.0, %v2375
      %v2377 = vpop.f32.mrb[0].mxu0
      %2378 = vmatprep.mubr.bf16.mxu0 0
      %2379 = vmatmul.mubr.bf16.gmra.mrb[0].mxu0 %v1152
      %v2380 = vpop.f32.mrb[0].mxu0
      %v2381 = vadd.f32 0.0, %v2380
      %v2382 = vpop.f32.mrb[0].mxu0
      %v2383 = vpop.f32.mrb[0].mxu0
      %v2384 = vadd.f32 0.0, %v2383
      %v2385 = vpop.f32.mrb[0].mxu0
      %2386 = vmatprep.mubr.bf16.mxu0 0
      %2387 = vmatmul.mubr.bf16.gmra.mrb[0].mxu0 %v1154
      %v2388 = vpop.f32.mrb[0].mxu0
      %v2389 = vadd.f32 0.0, %v2388
      %v2390 = vpop.f32.mrb[0].mxu0
      %v2391 = vpop.f32.mrb[0].mxu0
      %v2392 = vadd.f32 0.0, %v2391
      %v2393 = vpop.f32.mrb[0].mxu0
      %2394 = vmatprep.mubr.bf16.mxu0 0
      %2395 = vmatmul.mubr.bf16.gmra.mrb[0].mxu0 %v1156
      %v2396 = vpop.f32.mrb[0].mxu0
      %v2397 = vadd.f32 0.0, %v2396
      %v2398 = vpop.f32.mrb[0].mxu0
      %v2399 = vpop.f32.mrb[0].mxu0
      %v2400 = vadd.f32 0.0, %v2399
      %v2401 = vpop.f32.mrb[0].mxu0
      %2402 = vmatprep.mubr.bf16.mxu0 0
      %2403 = vmatmul.mubr.bf16.gmra.mrb[0].mxu0 %v1158
      %v2404 = vpop.f32.mrb[0].mxu0
      %v2405 = vadd.f32 0.0, %v2404
      %v2406 = vpop.f32.mrb[0].mxu0
      %v2407 = vpop.f32.mrb[0].mxu0
      %v2408 = vadd.f32 0.0, %v2407
      %v2409 = vpop.f32.mrb[0].mxu0
      %2410 = vmatprep.mubr.bf16.mxu0 0
      %2411 = vmatmul.mubr.bf16.gmra.mrb[0].mxu0 %v1160
      %v2412 = vpop.f32.mrb[0].mxu0
      %v2413 = vadd.f32 0.0, %v2412
      %v2414 = vpop.f32.mrb[0].mxu0
      %v2415 = vpop.f32.mrb[0].mxu0
      %v2416 = vadd.f32 0.0, %v2415
      %v2417 = vpop.f32.mrb[0].mxu0
      %2418 = vmatprep.mubr.bf16.mxu0 0
      %2419 = vmatmul.mubr.bf16.gmra.mrb[0].mxu0 %v1162
      %v2420 = vpop.f32.mrb[0].mxu0
      %v2421 = vadd.f32 0.0, %v2420
      %v2422 = vpop.f32.mrb[0].mxu0
      %v2423 = vpop.f32.mrb[0].mxu0
      %v2424 = vadd.f32 0.0, %v2423
      %v2425 = vpop.f32.mrb[0].mxu0
      %2426 = vmatprep.mubr.bf16.mxu0 0
      %2427 = vmatmul.mubr.bf16.gmra.mrb[0].mxu0 %v1658
      %v2428 = vpop.f32.mrb[0].mxu0
      %v2429 = vadd.f32 0.0, %v2428
      %v2430 = vpop.f32.mrb[0].mxu0
      %v2431 = vpop.f32.mrb[0].mxu0
      %v2432 = vadd.f32 0.0, %v2431
      %v2433 = vpop.f32.mrb[0].mxu0
      %2434 = vmatprep.mubr.bf16.mxu0 0
      %2435 = vmatmul.mubr.bf16.gmra.mrb[0].mxu0 %v2277
      %v2436 = vpop.f32.mrb[0].mxu0
      %v2437 = vadd.f32 0.0, %v2436
      %v2438 = vpop.f32.mrb[0].mxu0
      %v2439 = vpop.f32.mrb[0].mxu0
      %v2440 = vadd.f32 0.0, %v2439
      %v2441 = vpop.f32.mrb[0].mxu0
      %2442 = vdwg.mxu0
      %v2443 = vadd.f32 %v2242, %v2317
      %v2444 = vadd.f32 %v2243, %v2320
      %v2445 = vadd.f32 %v2244, %v2325
      %v2446 = vadd.f32 %v2245, %v2328
      %v2447 = vadd.f32 %v2246, %v2333
      %v2448 = vadd.f32 %v2247, %v2336
      %v2449 = vadd.f32 %v2248, %v2341
      %v2450 = vadd.f32 %v2249, %v2344
      %v2451 = vadd.f32 %v2250, %v2349
      %v2452 = vadd.f32 %v2251, %v2352
      %v2453 = vadd.f32 %v2252, %v2357
      %v2454 = vadd.f32 %v2253, %v2360
      %v2455 = vadd.f32 %v2254, %v2365
      %v2456 = vadd.f32 %v2255, %v2368
      %v2457 = vadd.f32 %v2256, %v2373
      %v2458 = vadd.f32 %v2257, %v2376
      %v2459 = vadd.f32 %v2258, %v2381
      %v2460 = vadd.f32 %v2259, %v2384
      %v2461 = vadd.f32 %v2260, %v2389
      %v2462 = vadd.f32 %v2261, %v2392
      %v2463 = vadd.f32 %v2262, %v2397
      %v2464 = vadd.f32 %v2263, %v2400
      %v2465 = vadd.f32 %v2264, %v2405
      %v2466 = vadd.f32 %v2265, %v2408
      %v2467 = vadd.f32 %v2266, %v2413
      %v2468 = vadd.f32 %v2267, %v2416
      %v2469 = vadd.f32 %v2268, %v2421
      %v2470 = vadd.f32 %v2269, %v2424
      %v2471 = vadd.f32 %v2270, %v2429
      %v2472 = vadd.f32 %v2271, %v2432
      %v2473 = vadd.f32 %v2272, %v2437
      %v2474 = vadd.f32 %v2273, %v2440
      %v2475 = vshrl.u32 %v703, 16
      %v2477 = vshll.u32 %v703, 16
      %v2479 = vrot.slane %v2477, 1
      %v2480 = vor.u32 %v2475, %v2479
      %v2482 = vshll.u32 %v721, 16
      %v2484 = vrot.slane %v2482, 1
      %v2485 = vsel %vm723, %v2480, %v2484
      %s2486 = scalar_lea.vmem %s3, 14
      %v2487 = vld [vmem:[%s2486] sm:$0x3]
      %v2489 = vsel %vm918, %v2485, 0
      %v2492 = vsel %vm967, %v2487, 0
      %2494 = vmatprep.subr.bf16.mxu0 0
      %2495 = vmatpush1.bf16.msra.mxu0 %v2492
      %2496 = vmatprep.subr.bf16.mxu0 0
      %2497 = vmatpush1.bf16.msra.mxu0 0
      %2498 = vmatprep.subr.bf16.mxu0 0
      %2499 = vmatpush1.bf16.msra.mxu0 0
      %2500 = vmatprep.subr.bf16.mxu0 0
      %2501 = vmatpush1.bf16.msra.mxu0 0
      %2502 = vmatprep.subr.bf16.mxu0 0
      %2503 = vmatpush1.bf16.msra.mxu0 0
      %2504 = vmatprep.subr.bf16.mxu0 0
      %2505 = vmatpush1.bf16.msra.mxu0 0
      %2506 = vmatprep.subr.bf16.mxu0 0
      %2507 = vmatpush1.bf16.msra.mxu0 0
      %2508 = vmatprep.subr.bf16.mxu0 0
      %2509 = vmatpush1.bf16.msra.mxu0 0
      %2510 = vmatprep.subr.bf16.mxu0 0
      %2511 = vmatpush1.bf16.msra.mxu0 0
      %2512 = vmatprep.subr.bf16.mxu0 0
      %2513 = vmatpush1.bf16.msra.mxu0 0
      %2514 = vmatprep.subr.bf16.mxu0 0
      %2515 = vmatpush1.bf16.msra.mxu0 0
      %2516 = vmatprep.subr.bf16.mxu0 0
      %2517 = vmatpush1.bf16.msra.mxu0 0
      %2518 = vmatprep.subr.bf16.mxu0 0
      %2519 = vmatpush1.bf16.msra.mxu0 0
      %2520 = vmatprep.subr.bf16.mxu0 0
      %2521 = vmatpush1.bf16.msra.mxu0 0
      %2522 = vmatprep.subr.bf16.mxu0 0
      %2523 = vmatpush1.bf16.msra.mxu0 0
      %2524 = vmatprep.subr.bf16.mxu0 0
      %2525 = vmatpush1.bf16.msra.mxu0 0
      %2526 = vmatprep.mubr.bf16.mxu0 0
      %2527 = vmatmul.mubr.bf16.gmra.mrb[0].mxu0 %v926
      %v2528 = vpop.f32.mrb[0].mxu0
      %v2529 = vadd.f32 0.0, %v2528
      %v2530 = vpop.f32.mrb[0].mxu0
      %v2531 = vpop.f32.mrb[0].mxu0
      %v2532 = vadd.f32 0.0, %v2531
      %v2533 = vpop.f32.mrb[0].mxu0
      %2534 = vmatprep.mubr.bf16.mxu0 0
      %2535 = vmatmul.mubr.bf16.gmra.mrb[0].mxu0 %v929
      %v2536 = vpop.f32.mrb[0].mxu0
      %v2537 = vadd.f32 0.0, %v2536
      %v2538 = vpop.f32.mrb[0].mxu0
      %v2539 = vpop.f32.mrb[0].mxu0
      %v2540 = vadd.f32 0.0, %v2539
      %v2541 = vpop.f32.mrb[0].mxu0
      %2542 = vmatprep.mubr.bf16.mxu0 0
      %2543 = vmatmul.mubr.bf16.gmra.mrb[0].mxu0 %v932
      %v2544 = vpop.f32.mrb[0].mxu0
      %v2545 = vadd.f32 0.0, %v2544
      %v2546 = vpop.f32.mrb[0].mxu0
      %v2547 = vpop.f32.mrb[0].mxu0
      %v2548 = vadd.f32 0.0, %v2547
      %v2549 = vpop.f32.mrb[0].mxu0
      %2550 = vmatprep.mubr.bf16.mxu0 0
      %2551 = vmatmul.mubr.bf16.gmra.mrb[0].mxu0 %v935
      %v2552 = vpop.f32.mrb[0].mxu0
      %v2553 = vadd.f32 0.0, %v2552
      %v2554 = vpop.f32.mrb[0].mxu0
      %v2555 = vpop.f32.mrb[0].mxu0
      %v2556 = vadd.f32 0.0, %v2555
      %v2557 = vpop.f32.mrb[0].mxu0
      %2558 = vmatprep.mubr.bf16.mxu0 0
      %2559 = vmatmul.mubr.bf16.gmra.mrb[0].mxu0 %v938
      %v2560 = vpop.f32.mrb[0].mxu0
      %v2561 = vadd.f32 0.0, %v2560
      %v2562 = vpop.f32.mrb[0].mxu0
      %v2563 = vpop.f32.mrb[0].mxu0
      %v2564 = vadd.f32 0.0, %v2563
      %v2565 = vpop.f32.mrb[0].mxu0
      %2566 = vmatprep.mubr.bf16.mxu0 0
      %2567 = vmatmul.mubr.bf16.gmra.mrb[0].mxu0 %v941
      %v2568 = vpop.f32.mrb[0].mxu0
      %v2569 = vadd.f32 0.0, %v2568
      %v2570 = vpop.f32.mrb[0].mxu0
      %v2571 = vpop.f32.mrb[0].mxu0
      %v2572 = vadd.f32 0.0, %v2571
      %v2573 = vpop.f32.mrb[0].mxu0
      %2574 = vmatprep.mubr.bf16.mxu0 0
      %2575 = vmatmul.mubr.bf16.gmra.mrb[0].mxu0 %v944
      %v2576 = vpop.f32.mrb[0].mxu0
      %v2577 = vadd.f32 0.0, %v2576
      %v2578 = vpop.f32.mrb[0].mxu0
      %v2579 = vpop.f32.mrb[0].mxu0
      %v2580 = vadd.f32 0.0, %v2579
      %v2581 = vpop.f32.mrb[0].mxu0
      %2582 = vmatprep.mubr.bf16.mxu0 0
      %2583 = vmatmul.mubr.bf16.gmra.mrb[0].mxu0 %v947
      %v2584 = vpop.f32.mrb[0].mxu0
      %v2585 = vadd.f32 0.0, %v2584
      %v2586 = vpop.f32.mrb[0].mxu0
      %v2587 = vpop.f32.mrb[0].mxu0
      %v2588 = vadd.f32 0.0, %v2587
      %v2589 = vpop.f32.mrb[0].mxu0
      %2590 = vmatprep.mubr.bf16.mxu0 0
      %2591 = vmatmul.mubr.bf16.gmra.mrb[0].mxu0 %v950
      %v2592 = vpop.f32.mrb[0].mxu0
      %v2593 = vadd.f32 0.0, %v2592
      %v2594 = vpop.f32.mrb[0].mxu0
      %v2595 = vpop.f32.mrb[0].mxu0
      %v2596 = vadd.f32 0.0, %v2595
      %v2597 = vpop.f32.mrb[0].mxu0
      %2598 = vmatprep.mubr.bf16.mxu0 0
      %2599 = vmatmul.mubr.bf16.gmra.mrb[0].mxu0 %v953
      %v2600 = vpop.f32.mrb[0].mxu0
      %v2601 = vadd.f32 0.0, %v2600
      %v2602 = vpop.f32.mrb[0].mxu0
      %v2603 = vpop.f32.mrb[0].mxu0
      %v2604 = vadd.f32 0.0, %v2603
      %v2605 = vpop.f32.mrb[0].mxu0
      %2606 = vmatprep.mubr.bf16.mxu0 0
      %2607 = vmatmul.mubr.bf16.gmra.mrb[0].mxu0 %v956
      %v2608 = vpop.f32.mrb[0].mxu0
      %v2609 = vadd.f32 0.0, %v2608
      %v2610 = vpop.f32.mrb[0].mxu0
      %v2611 = vpop.f32.mrb[0].mxu0
      %v2612 = vadd.f32 0.0, %v2611
      %v2613 = vpop.f32.mrb[0].mxu0
      %2614 = vmatprep.mubr.bf16.mxu0 0
      %2615 = vmatmul.mubr.bf16.gmra.mrb[0].mxu0 %v959
      %v2616 = vpop.f32.mrb[0].mxu0
      %v2617 = vadd.f32 0.0, %v2616
      %v2618 = vpop.f32.mrb[0].mxu0
      %v2619 = vpop.f32.mrb[0].mxu0
      %v2620 = vadd.f32 0.0, %v2619
      %v2621 = vpop.f32.mrb[0].mxu0
      %2622 = vmatprep.mubr.bf16.mxu0 0
      %2623 = vmatmul.mubr.bf16.gmra.mrb[0].mxu0 %v962
      %v2624 = vpop.f32.mrb[0].mxu0
      %v2625 = vadd.f32 0.0, %v2624
      %v2626 = vpop.f32.mrb[0].mxu0
      %v2627 = vpop.f32.mrb[0].mxu0
      %v2628 = vadd.f32 0.0, %v2627
      %v2629 = vpop.f32.mrb[0].mxu0
      %2630 = vmatprep.mubr.bf16.mxu0 0
      %2631 = vmatmul.mubr.bf16.gmra.mrb[0].mxu0 %v965
      %v2632 = vpop.f32.mrb[0].mxu0
      %v2633 = vadd.f32 0.0, %v2632
      %v2634 = vpop.f32.mrb[0].mxu0
      %v2635 = vpop.f32.mrb[0].mxu0
      %v2636 = vadd.f32 0.0, %v2635
      %v2637 = vpop.f32.mrb[0].mxu0
      %2638 = vmatprep.mubr.bf16.mxu0 0
      %2639 = vmatmul.mubr.bf16.gmra.mrb[0].mxu0 %v1870
      %v2640 = vpop.f32.mrb[0].mxu0
      %v2641 = vadd.f32 0.0, %v2640
      %v2642 = vpop.f32.mrb[0].mxu0
      %v2643 = vpop.f32.mrb[0].mxu0
      %v2644 = vadd.f32 0.0, %v2643
      %v2645 = vpop.f32.mrb[0].mxu0
      %2646 = vmatprep.mubr.bf16.mxu0 0
      %2647 = vmatmul.mubr.bf16.gmra.mrb[0].mxu0 %v2489
      %v2648 = vpop.f32.mrb[0].mxu0
      %v2649 = vadd.f32 0.0, %v2648
      %v2650 = vpop.f32.mrb[0].mxu0
      %v2651 = vpop.f32.mrb[0].mxu0
      %v2652 = vadd.f32 0.0, %v2651
      %v2653 = vpop.f32.mrb[0].mxu0
      %2654 = vdwg.mxu0
      %v2655 = vadd.f32 %v2443, %v2529
      %v2656 = vadd.f32 %v2444, %v2532
      %v2657 = vadd.f32 %v2445, %v2537
      %v2658 = vadd.f32 %v2446, %v2540
      %v2659 = vadd.f32 %v2447, %v2545
      %v2660 = vadd.f32 %v2448, %v2548
      %v2661 = vadd.f32 %v2449, %v2553
      %v2662 = vadd.f32 %v2450, %v2556
      %v2663 = vadd.f32 %v2451, %v2561
      %v2664 = vadd.f32 %v2452, %v2564
      %v2665 = vadd.f32 %v2453, %v2569
      %v2666 = vadd.f32 %v2454, %v2572
      %v2667 = vadd.f32 %v2455, %v2577
      %v2668 = vadd.f32 %v2456, %v2580
      %v2669 = vadd.f32 %v2457, %v2585
      %v2670 = vadd.f32 %v2458, %v2588
      %v2671 = vadd.f32 %v2459, %v2593
      %v2672 = vadd.f32 %v2460, %v2596
      %v2673 = vadd.f32 %v2461, %v2601
      %v2674 = vadd.f32 %v2462, %v2604
      %v2675 = vadd.f32 %v2463, %v2609
      %v2676 = vadd.f32 %v2464, %v2612
      %v2677 = vadd.f32 %v2465, %v2617
      %v2678 = vadd.f32 %v2466, %v2620
      %v2679 = vadd.f32 %v2467, %v2625
      %v2680 = vadd.f32 %v2468, %v2628
      %v2681 = vadd.f32 %v2469, %v2633
      %v2682 = vadd.f32 %v2470, %v2636
      %v2683 = vadd.f32 %v2471, %v2641
      %v2684 = vadd.f32 %v2472, %v2644
      %v2685 = vadd.f32 %v2473, %v2649
      %v2686 = vadd.f32 %v2474, %v2652
      %v2689 = vrot.slane %v703, 1
      %v2690 = vrot.slane %v721, 1
      %v2691 = vsel %vm1360, %v2689, %v2690
      %s2692 = scalar_lea.vmem %s3, 16
      %v2693 = vld [vmem:[%s2692] sm:$0x3]
      %v2695 = vsel %vm918, %v2691, 0
      %v2698 = vsel %vm967, %v2693, 0
      %2700 = vmatprep.subr.bf16.mxu0 0
      %2701 = vmatpush1.bf16.msra.mxu0 %v2698
      %2702 = vmatprep.subr.bf16.mxu0 0
      %2703 = vmatpush1.bf16.msra.mxu0 0
      %2704 = vmatprep.subr.bf16.mxu0 0
      %2705 = vmatpush1.bf16.msra.mxu0 0
      %2706 = vmatprep.subr.bf16.mxu0 0
      %2707 = vmatpush1.bf16.msra.mxu0 0
      %2708 = vmatprep.subr.bf16.mxu0 0
      %2709 = vmatpush1.bf16.msra.mxu0 0
      %2710 = vmatprep.subr.bf16.mxu0 0
      %2711 = vmatpush1.bf16.msra.mxu0 0
      %2712 = vmatprep.subr.bf16.mxu0 0
      %2713 = vmatpush1.bf16.msra.mxu0 0
      %2714 = vmatprep.subr.bf16.mxu0 0
      %2715 = vmatpush1.bf16.msra.mxu0 0
      %2716 = vmatprep.subr.bf16.mxu0 0
      %2717 = vmatpush1.bf16.msra.mxu0 0
      %2718 = vmatprep.subr.bf16.mxu0 0
      %2719 = vmatpush1.bf16.msra.mxu0 0
      %2720 = vmatprep.subr.bf16.mxu0 0
      %2721 = vmatpush1.bf16.msra.mxu0 0
      %2722 = vmatprep.subr.bf16.mxu0 0
      %2723 = vmatpush1.bf16.msra.mxu0 0
      %2724 = vmatprep.subr.bf16.mxu0 0
      %2725 = vmatpush1.bf16.msra.mxu0 0
      %2726 = vmatprep.subr.bf16.mxu0 0
      %2727 = vmatpush1.bf16.msra.mxu0 0
      %2728 = vmatprep.subr.bf16.mxu0 0
      %2729 = vmatpush1.bf16.msra.mxu0 0
      %2730 = vmatprep.subr.bf16.mxu0 0
      %2731 = vmatpush1.bf16.msra.mxu0 0
      %2732 = vmatprep.mubr.bf16.mxu0 0
      %2733 = vmatmul.mubr.bf16.gmra.mrb[0].mxu0 %v1418
      %v2734 = vpop.f32.mrb[0].mxu0
      %v2735 = vadd.f32 0.0, %v2734
      %v2736 = vpop.f32.mrb[0].mxu0
      %v2737 = vpop.f32.mrb[0].mxu0
      %v2738 = vadd.f32 0.0, %v2737
      %v2739 = vpop.f32.mrb[0].mxu0
      %2740 = vmatprep.mubr.bf16.mxu0 0
      %2741 = vmatmul.mubr.bf16.gmra.mrb[0].mxu0 %v1421
      %v2742 = vpop.f32.mrb[0].mxu0
      %v2743 = vadd.f32 0.0, %v2742
      %v2744 = vpop.f32.mrb[0].mxu0
      %v2745 = vpop.f32.mrb[0].mxu0
      %v2746 = vadd.f32 0.0, %v2745
      %v2747 = vpop.f32.mrb[0].mxu0
      %2748 = vmatprep.mubr.bf16.mxu0 0
      %2749 = vmatmul.mubr.bf16.gmra.mrb[0].mxu0 %v1424
      %v2750 = vpop.f32.mrb[0].mxu0
      %v2751 = vadd.f32 0.0, %v2750
      %v2752 = vpop.f32.mrb[0].mxu0
      %v2753 = vpop.f32.mrb[0].mxu0
      %v2754 = vadd.f32 0.0, %v2753
      %v2755 = vpop.f32.mrb[0].mxu0
      %2756 = vmatprep.mubr.bf16.mxu0 0
      %2757 = vmatmul.mubr.bf16.gmra.mrb[0].mxu0 %v1427
      %v2758 = vpop.f32.mrb[0].mxu0
      %v2759 = vadd.f32 0.0, %v2758
      %v2760 = vpop.f32.mrb[0].mxu0
      %v2761 = vpop.f32.mrb[0].mxu0
      %v2762 = vadd.f32 0.0, %v2761
      %v2763 = vpop.f32.mrb[0].mxu0
      %2764 = vmatprep.mubr.bf16.mxu0 0
      %2765 = vmatmul.mubr.bf16.gmra.mrb[0].mxu0 %v1430
      %v2766 = vpop.f32.mrb[0].mxu0
      %v2767 = vadd.f32 0.0, %v2766
      %v2768 = vpop.f32.mrb[0].mxu0
      %v2769 = vpop.f32.mrb[0].mxu0
      %v2770 = vadd.f32 0.0, %v2769
      %v2771 = vpop.f32.mrb[0].mxu0
      %2772 = vmatprep.mubr.bf16.mxu0 0
      %2773 = vmatmul.mubr.bf16.gmra.mrb[0].mxu0 %v1433
      %v2774 = vpop.f32.mrb[0].mxu0
      %v2775 = vadd.f32 0.0, %v2774
      %v2776 = vpop.f32.mrb[0].mxu0
      %v2777 = vpop.f32.mrb[0].mxu0
      %v2778 = vadd.f32 0.0, %v2777
      %v2779 = vpop.f32.mrb[0].mxu0
      %2780 = vmatprep.mubr.bf16.mxu0 0
      %2781 = vmatmul.mubr.bf16.gmra.mrb[0].mxu0 %v1436
      %v2782 = vpop.f32.mrb[0].mxu0
      %v2783 = vadd.f32 0.0, %v2782
      %v2784 = vpop.f32.mrb[0].mxu0
      %v2785 = vpop.f32.mrb[0].mxu0
      %v2786 = vadd.f32 0.0, %v2785
      %v2787 = vpop.f32.mrb[0].mxu0
      %2788 = vmatprep.mubr.bf16.mxu0 0
      %2789 = vmatmul.mubr.bf16.gmra.mrb[0].mxu0 %v1439
      %v2790 = vpop.f32.mrb[0].mxu0
      %v2791 = vadd.f32 0.0, %v2790
      %v2792 = vpop.f32.mrb[0].mxu0
      %v2793 = vpop.f32.mrb[0].mxu0
      %v2794 = vadd.f32 0.0, %v2793
      %v2795 = vpop.f32.mrb[0].mxu0
      %2796 = vmatprep.mubr.bf16.mxu0 0
      %2797 = vmatmul.mubr.bf16.gmra.mrb[0].mxu0 %v1442
      %v2798 = vpop.f32.mrb[0].mxu0
      %v2799 = vadd.f32 0.0, %v2798
      %v2800 = vpop.f32.mrb[0].mxu0
      %v2801 = vpop.f32.mrb[0].mxu0
      %v2802 = vadd.f32 0.0, %v2801
      %v2803 = vpop.f32.mrb[0].mxu0
      %2804 = vmatprep.mubr.bf16.mxu0 0
      %2805 = vmatmul.mubr.bf16.gmra.mrb[0].mxu0 %v1445
      %v2806 = vpop.f32.mrb[0].mxu0
      %v2807 = vadd.f32 0.0, %v2806
      %v2808 = vpop.f32.mrb[0].mxu0
      %v2809 = vpop.f32.mrb[0].mxu0
      %v2810 = vadd.f32 0.0, %v2809
      %v2811 = vpop.f32.mrb[0].mxu0
      %2812 = vmatprep.mubr.bf16.mxu0 0
      %2813 = vmatmul.mubr.bf16.gmra.mrb[0].mxu0 %v1448
      %v2814 = vpop.f32.mrb[0].mxu0
      %v2815 = vadd.f32 0.0, %v2814
      %v2816 = vpop.f32.mrb[0].mxu0
      %v2817 = vpop.f32.mrb[0].mxu0
      %v2818 = vadd.f32 0.0, %v2817
      %v2819 = vpop.f32.mrb[0].mxu0
      %2820 = vmatprep.mubr.bf16.mxu0 0
      %2821 = vmatmul.mubr.bf16.gmra.mrb[0].mxu0 %v1451
      %v2822 = vpop.f32.mrb[0].mxu0
      %v2823 = vadd.f32 0.0, %v2822
      %v2824 = vpop.f32.mrb[0].mxu0
      %v2825 = vpop.f32.mrb[0].mxu0
      %v2826 = vadd.f32 0.0, %v2825
      %v2827 = vpop.f32.mrb[0].mxu0
      %2828 = vmatprep.mubr.bf16.mxu0 0
      %2829 = vmatmul.mubr.bf16.gmra.mrb[0].mxu0 %v1454
      %v2830 = vpop.f32.mrb[0].mxu0
      %v2831 = vadd.f32 0.0, %v2830
      %v2832 = vpop.f32.mrb[0].mxu0
      %v2833 = vpop.f32.mrb[0].mxu0
      %v2834 = vadd.f32 0.0, %v2833
      %v2835 = vpop.f32.mrb[0].mxu0
      %2836 = vmatprep.mubr.bf16.mxu0 0
      %2837 = vmatmul.mubr.bf16.gmra.mrb[0].mxu0 %v1457
      %v2838 = vpop.f32.mrb[0].mxu0
      %v2839 = vadd.f32 0.0, %v2838
      %v2840 = vpop.f32.mrb[0].mxu0
      %v2841 = vpop.f32.mrb[0].mxu0
      %v2842 = vadd.f32 0.0, %v2841
      %v2843 = vpop.f32.mrb[0].mxu0
      %2844 = vmatprep.mubr.bf16.mxu0 0
      %2845 = vmatmul.mubr.bf16.gmra.mrb[0].mxu0 %v2076
      %v2846 = vpop.f32.mrb[0].mxu0
      %v2847 = vadd.f32 0.0, %v2846
      %v2848 = vpop.f32.mrb[0].mxu0
      %v2849 = vpop.f32.mrb[0].mxu0
      %v2850 = vadd.f32 0.0, %v2849
      %v2851 = vpop.f32.mrb[0].mxu0
      %2852 = vmatprep.mubr.bf16.mxu0 0
      %2853 = vmatmul.mubr.bf16.gmra.mrb[0].mxu0 %v2695
      %v2854 = vpop.f32.mrb[0].mxu0
      %v2855 = vadd.f32 0.0, %v2854
      %v2856 = vpop.f32.mrb[0].mxu0
      %v2857 = vpop.f32.mrb[0].mxu0
      %v2858 = vadd.f32 0.0, %v2857
      %v2859 = vpop.f32.mrb[0].mxu0
      %2860 = vdwg.mxu0
      %v2861 = vadd.f32 %v2655, %v2735
      %v2862 = vadd.f32 %v2656, %v2738
      %v2863 = vadd.f32 %v2657, %v2743
      %v2864 = vadd.f32 %v2658, %v2746
      %v2865 = vadd.f32 %v2659, %v2751
      %v2866 = vadd.f32 %v2660, %v2754
      %v2867 = vadd.f32 %v2661, %v2759
      %v2868 = vadd.f32 %v2662, %v2762
      %v2869 = vadd.f32 %v2663, %v2767
      %v2870 = vadd.f32 %v2664, %v2770
      %v2871 = vadd.f32 %v2665, %v2775
      %v2872 = vadd.f32 %v2666, %v2778
      %v2873 = vadd.f32 %v2667, %v2783
      %v2874 = vadd.f32 %v2668, %v2786
      %v2875 = vadd.f32 %v2669, %v2791
      %v2876 = vadd.f32 %v2670, %v2794
      %v2877 = vadd.f32 %v2671, %v2799
      %v2878 = vadd.f32 %v2672, %v2802
      %v2879 = vadd.f32 %v2673, %v2807
      %v2880 = vadd.f32 %v2674, %v2810
      %v2881 = vadd.f32 %v2675, %v2815
      %v2882 = vadd.f32 %v2676, %v2818
      %v2883 = vadd.f32 %v2677, %v2823
      %v2884 = vadd.f32 %v2678, %v2826
      %v2885 = vadd.f32 %v2679, %v2831
      %v2886 = vadd.f32 %v2680, %v2834
      %v2887 = vadd.f32 %v2681, %v2839
      %v2888 = vadd.f32 %v2682, %v2842
      %v2889 = vadd.f32 %v2683, %v2847
      %v2890 = vadd.f32 %v2684, %v2850
      %v2891 = vadd.f32 %v2685, %v2855
      %v2892 = vadd.f32 %v2686, %v2858
      %v2893 = vpack.c.bf16 %v2862, %v2861
      %v2894 = vpack.c.bf16 %v2864, %v2863
      %v2895 = vpack.c.bf16 %v2866, %v2865
      %v2896 = vpack.c.bf16 %v2868, %v2867
      %v2897 = vpack.c.bf16 %v2870, %v2869
      %v2898 = vpack.c.bf16 %v2872, %v2871
      %v2899 = vpack.c.bf16 %v2874, %v2873
      %v2900 = vpack.c.bf16 %v2876, %v2875
      %v2901 = vpack.c.bf16 %v2878, %v2877
      %v2902 = vpack.c.bf16 %v2880, %v2879
      %v2903 = vpack.c.bf16 %v2882, %v2881
      %v2904 = vpack.c.bf16 %v2884, %v2883
      %v2905 = vpack.c.bf16 %v2886, %v2885
      %v2906 = vpack.c.bf16 %v2888, %v2887
      %v2907 = vpack.c.bf16 %v2890, %v2889
      %v2908 = vpack.c.bf16 %v2892, %v2891
      %v2925 = vunpack.c.l.b16 %v2893
      %v2926 = vunpack.c.h.b16 %v2893
      %v2927 = vunpack.c.l.b16 %v2894
      %v2928 = vunpack.c.h.b16 %v2894
      %v2929 = vunpack.c.l.b16 %v2895
      %v2930 = vunpack.c.h.b16 %v2895
      %v2931 = vunpack.c.l.b16 %v2896
      %v2932 = vunpack.c.h.b16 %v2896
      %v2933 = vunpack.c.l.b16 %v2897
      %v2934 = vunpack.c.h.b16 %v2897
      %v2935 = vunpack.c.l.b16 %v2898
      %v2936 = vunpack.c.h.b16 %v2898
      %v2937 = vunpack.c.l.b16 %v2899
      %v2938 = vunpack.c.h.b16 %v2899
      %v2939 = vunpack.c.l.b16 %v2900
      %v2940 = vunpack.c.h.b16 %v2900
      %v2941 = vunpack.c.l.b16 %v2901
      %v2942 = vunpack.c.h.b16 %v2901
      %v2943 = vunpack.c.l.b16 %v2902
      %v2944 = vunpack.c.h.b16 %v2902
      %v2945 = vunpack.c.l.b16 %v2903
      %v2946 = vunpack.c.h.b16 %v2903
      %v2947 = vunpack.c.l.b16 %v2904
      %v2948 = vunpack.c.h.b16 %v2904
      %v2949 = vunpack.c.l.b16 %v2905
      %v2950 = vunpack.c.h.b16 %v2905
      %v2951 = vunpack.c.l.b16 %v2906
      %v2952 = vunpack.c.h.b16 %v2906
      %v2953 = vunpack.c.l.b16 %v2907
      %v2954 = vunpack.c.h.b16 %v2907
      %v2955 = vunpack.c.l.b16 %v2908
      %v2956 = vunpack.c.h.b16 %v2908
      %v2957 = vpack.c.b16 %v2925, %v2925
      %v2958 = vpack.c.b16 %v2926, %v2926
      %v2959 = vpack.c.b16 %v2927, %v2927
      %v2960 = vpack.c.b16 %v2928, %v2928
      %v2961 = vpack.c.b16 %v2929, %v2929
      %v2962 = vpack.c.b16 %v2930, %v2930
      %v2963 = vpack.c.b16 %v2931, %v2931
      %v2964 = vpack.c.b16 %v2932, %v2932
      %v2965 = vpack.c.b16 %v2933, %v2933
      %v2966 = vpack.c.b16 %v2934, %v2934
      %v2967 = vpack.c.b16 %v2935, %v2935
      %v2968 = vpack.c.b16 %v2936, %v2936
      %v2969 = vpack.c.b16 %v2937, %v2937
      %v2970 = vpack.c.b16 %v2938, %v2938
      %v2971 = vpack.c.b16 %v2939, %v2939
      %v2972 = vpack.c.b16 %v2940, %v2940
      %v2973 = vpack.c.b16 %v2941, %v2941
      %v2974 = vpack.c.b16 %v2942, %v2942
      %v2975 = vpack.c.b16 %v2943, %v2943
      %v2976 = vpack.c.b16 %v2944, %v2944
      %v2977 = vpack.c.b16 %v2945, %v2945
      %v2978 = vpack.c.b16 %v2946, %v2946
      %v2979 = vpack.c.b16 %v2947, %v2947
      %v2980 = vpack.c.b16 %v2948, %v2948
      %v2981 = vpack.c.b16 %v2949, %v2949
      %v2982 = vpack.c.b16 %v2950, %v2950
      %v2983 = vpack.c.b16 %v2951, %v2951
      %v2984 = vpack.c.b16 %v2952, %v2952
      %v2985 = vpack.c.b16 %v2953, %v2953
      %v2986 = vpack.c.b16 %v2954, %v2954
      %v2987 = vpack.c.b16 %v2955, %v2955
      %v2988 = vpack.c.b16 %v2956, %v2956
      %vm3021 = vcmask 257024
      %3022 = vst.msk [vmem:[%s451] sm:$0xf] %vm3021, %v2957
      %3023 = vst.msk [vmem:[%s451 + $0x4] sm:$0xf] %vm3021, %v2958
      %3024 = vst.msk [vmem:[%s451 + $0x8] sm:$0xf] %vm3021, %v2959
      %3025 = vst.msk [vmem:[%s451 + $0xc] sm:$0xf] %vm3021, %v2960
      %3026 = vst.msk [vmem:[%s451 + $0x10] sm:$0xf] %vm3021, %v2961
      %3027 = vst.msk [vmem:[%s451 + $0x14] sm:$0xf] %vm3021, %v2962
      %3028 = vst.msk [vmem:[%s451 + $0x18] sm:$0xf] %vm3021, %v2963
      %3029 = vst.msk [vmem:[%s451 + $0x1c] sm:$0xf] %vm3021, %v2964
      %3030 = vst.msk [vmem:[%s451 + $0x20] sm:$0xf] %vm3021, %v2965
      %3031 = vst.msk [vmem:[%s451 + $0x24] sm:$0xf] %vm3021, %v2966
      %3032 = vst.msk [vmem:[%s451 + $0x28] sm:$0xf] %vm3021, %v2967
      %3033 = vst.msk [vmem:[%s451 + $0x2c] sm:$0xf] %vm3021, %v2968
      %3034 = vst.msk [vmem:[%s451 + $0x30] sm:$0xf] %vm3021, %v2969
      %3035 = vst.msk [vmem:[%s451 + $0x34] sm:$0xf] %vm3021, %v2970
      %3036 = vst.msk [vmem:[%s451 + $0x38] sm:$0xf] %vm3021, %v2971
      %3037 = vst.msk [vmem:[%s451 + $0x3c] sm:$0xf] %vm3021, %v2972
      %3038 = vst.msk [vmem:[%s451 + $0x40] sm:$0xf] %vm3021, %v2973
      %3039 = vst.msk [vmem:[%s451 + $0x44] sm:$0xf] %vm3021, %v2974
      %3040 = vst.msk [vmem:[%s451 + $0x48] sm:$0xf] %vm3021, %v2975
      %3041 = vst.msk [vmem:[%s451 + $0x4c] sm:$0xf] %vm3021, %v2976
      %3042 = vst.msk [vmem:[%s451 + $0x50] sm:$0xf] %vm3021, %v2977
      %3043 = vst.msk [vmem:[%s451 + $0x54] sm:$0xf] %vm3021, %v2978
      %3044 = vst.msk [vmem:[%s451 + $0x58] sm:$0xf] %vm3021, %v2979
      %3045 = vst.msk [vmem:[%s451 + $0x5c] sm:$0xf] %vm3021, %v2980
      %3046 = vst.msk [vmem:[%s451 + $0x60] sm:$0xf] %vm3021, %v2981
      %3047 = vst.msk [vmem:[%s451 + $0x64] sm:$0xf] %vm3021, %v2982
      %3048 = vst.msk [vmem:[%s451 + $0x68] sm:$0xf] %vm3021, %v2983
      %3049 = vst.msk [vmem:[%s451 + $0x6c] sm:$0xf] %vm3021, %v2984
      %3050 = vst.msk [vmem:[%s451 + $0x70] sm:$0xf] %vm3021, %v2985
      %3051 = vst.msk [vmem:[%s451 + $0x74] sm:$0xf] %vm3021, %v2986
      %3052 = vst.msk [vmem:[%s451 + $0x78] sm:$0xf] %vm3021, %v2987
      %3053 = vst.msk [vmem:[%s451 + $0x7c] sm:$0xf] %vm3021, %v2988
      %vm3054 = vcmask 261120
      %v3055 = vsel %vm3054, %v2861, 0.0
      %v3056 = vsel %vm3054, %v2862, 0.0
      %v3057 = vadd.f32 %v3055, %v3056
      %v3058 = vsel %vm3054, %v2863, 0.0
      %v3059 = vadd.f32 %v3057, %v3058
      %v3060 = vsel %vm3054, %v2864, 0.0
      %v3061 = vadd.f32 %v3059, %v3060
      %v3062 = vsel %vm3054, %v2865, 0.0
      %v3063 = vadd.f32 %v3061, %v3062
      %v3064 = vsel %vm3054, %v2866, 0.0
      %v3065 = vadd.f32 %v3063, %v3064
      %v3066 = vsel %vm3054, %v2867, 0.0
      %v3067 = vadd.f32 %v3065, %v3066
      %v3068 = vsel %vm3054, %v2868, 0.0
      %v3069 = vadd.f32 %v3067, %v3068
      %v3070 = vsel %vm3054, %v2869, 0.0
      %v3071 = vadd.f32 %v3069, %v3070
      %v3072 = vsel %vm3054, %v2870, 0.0
      %v3073 = vadd.f32 %v3071, %v3072
      %v3074 = vsel %vm3054, %v2871, 0.0
      %v3075 = vadd.f32 %v3073, %v3074
      %v3076 = vsel %vm3054, %v2872, 0.0
      %v3077 = vadd.f32 %v3075, %v3076
      %v3078 = vsel %vm3054, %v2873, 0.0
      %v3079 = vadd.f32 %v3077, %v3078
      %v3080 = vsel %vm3054, %v2874, 0.0
      %v3081 = vadd.f32 %v3079, %v3080
      %v3082 = vsel %vm3054, %v2875, 0.0
      %v3083 = vadd.f32 %v3081, %v3082
      %v3084 = vsel %vm3054, %v2876, 0.0
      %v3085 = vadd.f32 %v3083, %v3084
      %v3086 = vsel %vm3054, %v2877, 0.0
      %v3087 = vadd.f32 %v3085, %v3086
      %v3088 = vsel %vm3054, %v2878, 0.0
      %v3089 = vadd.f32 %v3087, %v3088
      %v3090 = vsel %vm3054, %v2879, 0.0
      %v3091 = vadd.f32 %v3089, %v3090
      %v3092 = vsel %vm3054, %v2880, 0.0
      %v3093 = vadd.f32 %v3091, %v3092
      %v3094 = vsel %vm3054, %v2881, 0.0
      %v3095 = vadd.f32 %v3093, %v3094
      %v3096 = vsel %vm3054, %v2882, 0.0
      %v3097 = vadd.f32 %v3095, %v3096
      %v3098 = vsel %vm3054, %v2883, 0.0
      %v3099 = vadd.f32 %v3097, %v3098
      %v3100 = vsel %vm3054, %v2884, 0.0
      %v3101 = vadd.f32 %v3099, %v3100
      %v3102 = vsel %vm3054, %v2885, 0.0
      %v3103 = vadd.f32 %v3101, %v3102
      %v3104 = vsel %vm3054, %v2886, 0.0
      %v3105 = vadd.f32 %v3103, %v3104
      %v3106 = vsel %vm3054, %v2887, 0.0
      %v3107 = vadd.f32 %v3105, %v3106
      %v3108 = vsel %vm3054, %v2888, 0.0
      %v3109 = vadd.f32 %v3107, %v3108
      %v3110 = vsel %vm3054, %v2889, 0.0
      %v3111 = vadd.f32 %v3109, %v3110
      %v3112 = vsel %vm3054, %v2890, 0.0
      %v3113 = vadd.f32 %v3111, %v3112
      %v3114 = vsel %vm3054, %v2891, 0.0
      %v3115 = vadd.f32 %v3113, %v3114
      %v3116 = vsel %vm3054, %v2892, 0.0
      %v3117 = vadd.f32 %v3115, %v3116
      %v3118 = vrot.slane %v3117, 4
      %v3119 = vadd.f32 %v3117, %v3118
      %v3120 = vrot.slane %v3119, 2
      %v3121 = vadd.f32 %v3119, %v3120
      %v3122 = vrot.slane %v3121, 1
      %v3123 = vadd.f32 %v3121, %v3122
      %v3124 = vmul.f32 %v2861, %v2861
      %v3125 = vmul.f32 %v2862, %v2862
      %v3126 = vmul.f32 %v2863, %v2863
      %v3127 = vmul.f32 %v2864, %v2864
      %v3128 = vmul.f32 %v2865, %v2865
      %v3129 = vmul.f32 %v2866, %v2866
      %v3130 = vmul.f32 %v2867, %v2867
      %v3131 = vmul.f32 %v2868, %v2868
      %v3132 = vmul.f32 %v2869, %v2869
      %v3133 = vmul.f32 %v2870, %v2870
      %v3134 = vmul.f32 %v2871, %v2871
      %v3135 = vmul.f32 %v2872, %v2872
      %v3136 = vmul.f32 %v2873, %v2873
      %v3137 = vmul.f32 %v2874, %v2874
      %v3138 = vmul.f32 %v2875, %v2875
      %v3139 = vmul.f32 %v2876, %v2876
      %v3140 = vmul.f32 %v2877, %v2877
      %v3141 = vmul.f32 %v2878, %v2878
      %v3142 = vmul.f32 %v2879, %v2879
      %v3143 = vmul.f32 %v2880, %v2880
      %v3144 = vmul.f32 %v2881, %v2881
      %v3145 = vmul.f32 %v2882, %v2882
      %v3146 = vmul.f32 %v2883, %v2883
      %v3147 = vmul.f32 %v2884, %v2884
      %v3148 = vmul.f32 %v2885, %v2885
      %v3149 = vmul.f32 %v2886, %v2886
      %v3150 = vmul.f32 %v2887, %v2887
      %v3151 = vmul.f32 %v2888, %v2888
      %v3152 = vmul.f32 %v2889, %v2889
      %v3153 = vmul.f32 %v2890, %v2890
      %v3154 = vmul.f32 %v2891, %v2891
      %v3155 = vmul.f32 %v2892, %v2892
      %v3156 = vsel %vm3054, %v3124, 0.0
      %v3157 = vsel %vm3054, %v3125, 0.0
      %v3158 = vadd.f32 %v3156, %v3157
      %v3159 = vsel %vm3054, %v3126, 0.0
      %v3160 = vadd.f32 %v3158, %v3159
      %v3161 = vsel %vm3054, %v3127, 0.0
      %v3162 = vadd.f32 %v3160, %v3161
      %v3163 = vsel %vm3054, %v3128, 0.0
      %v3164 = vadd.f32 %v3162, %v3163
      %v3165 = vsel %vm3054, %v3129, 0.0
      %v3166 = vadd.f32 %v3164, %v3165
      %v3167 = vsel %vm3054, %v3130, 0.0
      %v3168 = vadd.f32 %v3166, %v3167
      %v3169 = vsel %vm3054, %v3131, 0.0
      %v3170 = vadd.f32 %v3168, %v3169
      %v3171 = vsel %vm3054, %v3132, 0.0
      %v3172 = vadd.f32 %v3170, %v3171
      %v3173 = vsel %vm3054, %v3133, 0.0
      %v3174 = vadd.f32 %v3172, %v3173
      %v3175 = vsel %vm3054, %v3134, 0.0
      %v3176 = vadd.f32 %v3174, %v3175
      %v3177 = vsel %vm3054, %v3135, 0.0
      %v3178 = vadd.f32 %v3176, %v3177
      %v3179 = vsel %vm3054, %v3136, 0.0
      %v3180 = vadd.f32 %v3178, %v3179
      %v3181 = vsel %vm3054, %v3137, 0.0
      %v3182 = vadd.f32 %v3180, %v3181
      %v3183 = vsel %vm3054, %v3138, 0.0
      %v3184 = vadd.f32 %v3182, %v3183
      %v3185 = vsel %vm3054, %v3139, 0.0
      %v3186 = vadd.f32 %v3184, %v3185
      %v3187 = vsel %vm3054, %v3140, 0.0
      %v3188 = vadd.f32 %v3186, %v3187
      %v3189 = vsel %vm3054, %v3141, 0.0
      %v3190 = vadd.f32 %v3188, %v3189
      %v3191 = vsel %vm3054, %v3142, 0.0
      %v3192 = vadd.f32 %v3190, %v3191
      %v3193 = vsel %vm3054, %v3143, 0.0
      %v3194 = vadd.f32 %v3192, %v3193
      %v3195 = vsel %vm3054, %v3144, 0.0
      %v3196 = vadd.f32 %v3194, %v3195
      %v3197 = vsel %vm3054, %v3145, 0.0
      %v3198 = vadd.f32 %v3196, %v3197
      %v3199 = vsel %vm3054, %v3146, 0.0
      %v3200 = vadd.f32 %v3198, %v3199
      %v3201 = vsel %vm3054, %v3147, 0.0
      %v3202 = vadd.f32 %v3200, %v3201
      %v3203 = vsel %vm3054, %v3148, 0.0
      %v3204 = vadd.f32 %v3202, %v3203
      %v3205 = vsel %vm3054, %v3149, 0.0
      %v3206 = vadd.f32 %v3204, %v3205
      %v3207 = vsel %vm3054, %v3150, 0.0
      %v3208 = vadd.f32 %v3206, %v3207
      %v3209 = vsel %vm3054, %v3151, 0.0
      %v3210 = vadd.f32 %v3208, %v3209
      %v3211 = vsel %vm3054, %v3152, 0.0
      %v3212 = vadd.f32 %v3210, %v3211
      %v3213 = vsel %vm3054, %v3153, 0.0
      %v3214 = vadd.f32 %v3212, %v3213
      %v3215 = vsel %vm3054, %v3154, 0.0
      %v3216 = vadd.f32 %v3214, %v3215
      %v3217 = vsel %vm3054, %v3155, 0.0
      %v3218 = vadd.f32 %v3216, %v3217
      %v3219 = vrot.slane %v3218, 4
      %v3220 = vadd.f32 %v3218, %v3219
      %v3221 = vrot.slane %v3220, 2
      %v3222 = vadd.f32 %v3220, %v3221
      %v3223 = vrot.slane %v3222, 1
      %v3224 = vadd.f32 %v3222, %v3223
      %vm3225 = vcmask 1040384
      %v3226 = vsel %vm3225, %v3123, %v3224
      %vm3227 = vcmask 254976
      %3228 = vst.msk [vmem:[%s457] sm:$0x3] %vm3227, %v3226
      %s3229 = smul.u32 16, %s24
      %p3230 = scmp.lt.s32.totalorder %s23, 1
      %s3231 = scalar_select %p3230, %s23, 1
      %p3232 = scmp.lt.s32.totalorder %s3229, 15
      %s3233 = scalar_select %p3232, %s3229, 15
      %s3234 = smul.addr %s3233, 2
      %s3235 = smul.addr %s3231, 32
      %s3236 = sadd.s32 %s3234, %s3235
      %s3237 = smul.addr %s3236, 4
      %s3238 = scalar_lea.vmem %s6, %s3237
      %s3239 = sadd.s32 %s23, %s24
      %p3240 = scmp.lt.s32.totalorder %s3239, 1
      %s3241 = scalar_select %p3240, %s3239, 1
      %s3242 = smul.addr %s3241, 2
      %s3243 = scalar_lea.vmem %s7, %s3242
      // Predicated region
      $region45: #{conv_block_forward.3} parent=43 // pred_check
        %p3244 = pneg %p210
      $region46: #{conv_block_forward.3} parent=43 // pred_check_branch
        %3246 = sbr.rel (%p3244) target = $region48
      $region47: #{conv_block_forward.3} parent=43 // pred_region
        %s3247 = smul.u32 16, %s24
      $region48: #{conv_block_forward.3} parent=43 // pred_fallthru
        _
      // Predicated region
      $region49: #{conv_block_forward.3} parent=43 // pred_check
        %p3248 = pneg %p238
      $region50: #{conv_block_forward.3} parent=43 // pred_check_branch
        %3250 = sbr.rel (%p3248) target = $region52
      $region51: #{conv_block_forward.3} parent=43 // pred_region
        %s3251 = sadd.s32 %s23, %s24
      $region52: #{conv_block_forward.3} parent=43 // pred_fallthru
        _
    $region44: #{conv_block_forward.3} parent=5 // pred_fallthru
      _
    %p3252 = scmp.le.s32.totalorder 2, %s14
    // Predicated region
    $region53: #{conv_block_forward.3} parent=5 // pred_check
      %p3253 = pneg %p3252
    $region54: #{conv_block_forward.3} parent=5 // pred_check_branch
      %3255 = sbr.rel (%p3253) target = $region56
    $region55: #{conv_block_forward.3} parent=5 // pred_region
      %s3256 = ssub.s32 %s14, 2
      // Predicated region
      $region57: #{conv_block_forward.3} parent=55 // pred_check
        %p3257 = pneg %p216
      $region58: #{conv_block_forward.3} parent=55 // pred_check_branch
        %3259 = sbr.rel (%p3257) target = $region60
      $region59: #{conv_block_forward.3} parent=55 // pred_region
        %s3260 = smul.u32 16, %s26
        %p3261 = scmp.lt.s32.totalorder %s25, 1
        %s3262 = scalar_select %p3261, %s25, 1
        %p3263 = scmp.lt.s32.totalorder %s3260, 15
        %s3264 = scalar_select %p3263, %s3260, 15
        %s3265 = smul.addr %s3264, 2
        %s3266 = smul.addr %s3262, 32
        %s3267 = sadd.s32 %s3265, %s3266
        %s3268 = smul.addr %s3267, 4
        %s3269 = scalar_lea.vmem %s6, %s3268
      $region60: #{conv_block_forward.3} parent=55 // pred_fallthru
        _
      // Predicated region
      $region61: #{conv_block_forward.3} parent=55 // pred_check
        %p3270 = pneg %p244
      $region62: #{conv_block_forward.3} parent=55 // pred_check_branch
        %3272 = sbr.rel (%p3270) target = $region64
      $region63: #{conv_block_forward.3} parent=55 // pred_region
        %s3273 = sadd.s32 %s25, %s26
        %p3274 = scmp.lt.s32.totalorder %s3273, 1
        %s3275 = scalar_select %p3274, %s3273, 1
        %s3276 = smul.addr %s3275, 2
        %s3277 = scalar_lea.vmem %s7, %s3276
      $region64: #{conv_block_forward.3} parent=55 // pred_fallthru
        _
    $region56: #{conv_block_forward.3} parent=5 // pred_fallthru
      _
  $region6: #{conv_block_forward.3} parent=0 // loop_footer
    %s18 = sadd.s32 1, %s14
  $region7: #{conv_block_forward.3} parent=0 // loop_footer_branch
    %13 = sbr.rel target = $region3
  $region8: #{conv_block_forward.3} parent=0 // loop_exit
    _

// kernel: conv_block_forward.4
$region0: #{conv_block_forward.4}
  #allocation0 [shape = 'u32[]', space=smem, size = 0x4, offset = 0x4, fixed_abs, tag = 'smem constant byte address 0x4 - core index']
  #allocation1 [shape = 'u32[144,128]{1,0:T(1,128)}', space=vmem, size = 0x12000, scoped, tag = 'internal scratch']
  %s0 = inlined_call_operand.vmem [shape: bf16[2,16,16,32], index: 0, kind: input, shape index: {}, may-alias: {0,1,2}]
  %s1 = inlined_call_operand.vmem [shape: bf16[2,16,16,32], index: 1, kind: input, shape index: {}, may-alias: {0,1,2}]
  %s2 = inlined_call_operand.vmem [shape: bf16[2,16,16,32], index: 2, kind: input, shape index: {}, may-alias: {0,1,2}]
  %s3 = inlined_call_operand.vmem [shape: bf16[288,32], index: 3, kind: input, shape index: {}]
  %s4 = inlined_call_operand.vmem [shape: f32[1,32], index: 4, kind: input, shape index: {}]
  %s5 = inlined_call_operand.vmem [shape: f32[1,32], index: 5, kind: input, shape index: {}]
  %s6 = inlined_call_operand.vmem [shape: bf16[2,16,16,32], index: 6, kind: output, shape index: {0}]
  %s7 = inlined_call_operand.vmem [shape: f32[2,2,32], index: 7, kind: output, shape index: {1}]
  %8 = xla_tuple %s6, %s7
  %s9 = sld [smem:[#allocation0]]
  $region65: #{conv_block_forward.4} parent=0
    _
  %s11 = ssub.s32 1, %s9
  %s12 = scalar_select 0, %s11, %s9
  loop: start=0, step=1, limit=4
  $region2: #{conv_block_forward.4} parent=0 // loop_pre_header
    _
  $region3: #{conv_block_forward.4} parent=0 // loop_header
    %s14 = sphi 0, %s18
    %p15 = scmp.ge.s32.totalorder %s14, 4
    %s21 = sphi 0, %s33
    %s22 = sphi 0, %s29
    %s23 = sphi 0, %s21
    %s24 = sphi 0, %s22
    %s25 = sphi 0, %s23
    %s26 = sphi 0, %s24
    %s38 = sphi 0, %s40
    %s41 = sphi 0, %s38
    %s42 = sphi 0, %s41
    %s58 = sphi 0, %s42
    %s72 = sphi 0, %s74
    %s75 = sphi 0, %s72
    %s76 = sphi 0, %s75
    %s92 = sphi 0, %s76
    %s106 = sphi 0, %s108
    %s109 = sphi 0, %s106
    %s110 = sphi 0, %s109
    %s126 = sphi 0, %s110
    %s130 = sphi 0, %s130
    %s132 = sphi 0, %s130
    %s133 = sphi 0, %s132
    %s147 = sphi 0, %s133
    %s151 = sphi 0, %s151
    %s153 = sphi 0, %s151
    %s154 = sphi 0, %s153
    %s168 = sphi 0, %s154
    %s172 = sphi 0, %s172
    %s174 = sphi 0, %s172
    %s175 = sphi 0, %s174
    %s189 = sphi 0, %s175
    %s197 = sphi 0, %s199
    %s200 = sphi 0, %s197
    %s201 = sphi 0, %s200
    %s217 = sphi 0, %s201
    %s225 = sphi 0, %s227
    %s228 = sphi 0, %s225
    %s229 = sphi 0, %s228
    %s245 = sphi 0, %s229
  $region4: #{conv_block_forward.4} parent=0 // loop_header_branch
    %17 = sbr.rel (%p15) target = $region8
  $region5: #{conv_block_forward.4} parent=0 // loop_body
    %s19 = ssub.s32 %s14, 1
    %s20 = ssub.s32 %s14, 2
    %s27 = sadd.s32 1, %s22
    %p28 = scmp.ge.s32.totalorder %s27, 1
    %s29 = scalar_select %p28, 0, %s27
    %s30 = sadd.s32 1, %s21
    %s31 = scalar_select %p28, %s30, %s21
    %p32 = scmp.ge.s32.totalorder %s31, 2
    %s33 = scalar_select %p32, 0, %s31
    %s34 = ssub.s32 %s21, %s33
    %s35 = ssub.s32 %s22, %s29
    %s36 = sor.u32 %s34, %s35
    %p37 = scmp.eq.s32.totalorder %s36, 0
    %s39 = sadd.s32 %s38, 1
    %s40 = scalar_select %p37, %s38, %s39
    %p43 = pneg %p37
    %p44 = scmp.eq.s32.totalorder %s14, 1
    %p45 = por %p43, %p44
    %p46 = scmp.ne.s32.totalorder %s38, %s41
    %p47 = scmp.eq.s32.totalorder %s14, 0
    %p48 = por %p46, %p47
    %p49 = scmp.ne.s32.totalorder %s38, %s41
    %p50 = scmp.eq.s32.totalorder %s19, 1
    %p51 = por %p49, %p50
    %p52 = scmp.ne.s32.totalorder %s41, %s42
    %p53 = scmp.eq.s32.totalorder %s19, 0
    %p54 = por %p52, %p53
    %p55 = scmp.ne.s32.totalorder %s41, %s42
    %p56 = scmp.eq.s32.totalorder %s20, 1
    %p57 = por %p55, %p56
    %p59 = scmp.ne.s32.totalorder %s42, %s58
    %p60 = scmp.eq.s32.totalorder %s20, 0
    %p61 = por %p59, %p60
    %s62 = ssub.s32 %s22, 1
    %p63 = scmp.gt.s32.totalorder %s62, 0
    %s64 = scalar_select %p63, %s62, 0
    %s65 = ssub.s32 %s29, 1
    %p66 = scmp.gt.s32.totalorder %s65, 0
    %s67 = scalar_select %p66, %s65, 0
    %s68 = ssub.s32 %s21, %s33
    %s69 = ssub.s32 %s64, %s67
    %s70 = sor.u32 %s68, %s69
    %p71 = scmp.eq.s32.totalorder %s70, 0
    %s73 = sadd.s32 %s72, 1
    %s74 = scalar_select %p71, %s72, %s73
    %p77 = pneg %p71
    %p78 = scmp.eq.s32.totalorder %s14, 1
    %p79 = por %p77, %p78
    %p80 = scmp.ne.s32.totalorder %s72, %s75
    %p81 = scmp.eq.s32.totalorder %s14, 0
    %p82 = por %p80, %p81
    %p83 = scmp.ne.s32.totalorder %s72, %s75
    %p84 = scmp.eq.s32.totalorder %s19, 1
    %p85 = por %p83, %p84
    %p86 = scmp.ne.s32.totalorder %s75, %s76
    %p87 = scmp.eq.s32.totalorder %s19, 0
    %p88 = por %p86, %p87
    %p89 = scmp.ne.s32.totalorder %s75, %s76
    %p90 = scmp.eq.s32.totalorder %s20, 1
    %p91 = por %p89, %p90
    %p93 = scmp.ne.s32.totalorder %s76, %s92
    %p94 = scmp.eq.s32.totalorder %s20, 0
    %p95 = por %p93, %p94
    %s96 = sadd.s32 %s22, 1
    %p97 = scmp.lt.s32.totalorder %s96, 0
    %s98 = scalar_select %p97, %s96, 0
    %s99 = sadd.s32 %s29, 1
    %p100 = scmp.lt.s32.totalorder %s99, 0
    %s101 = scalar_select %p100, %s99, 0
    %s102 = ssub.s32 %s21, %s33
    %s103 = ssub.s32 %s98, %s101
    %s104 = sor.u32 %s102, %s103
    %p105 = scmp.eq.s32.totalorder %s104, 0
    %s107 = sadd.s32 %s106, 1
    %s108 = scalar_select %p105, %s106, %s107
    %p111 = pneg %p105
    %p112 = scmp.eq.s32.totalorder %s14, 1
    %p113 = por %p111, %p112
    %p114 = scmp.ne.s32.totalorder %s106, %s109
    %p115 = scmp.eq.s32.totalorder %s14, 0
    %p116 = por %p114, %p115
    %p117 = scmp.ne.s32.totalorder %s106, %s109
    %p118 = scmp.eq.s32.totalorder %s19, 1
    %p119 = por %p117, %p118
    %p120 = scmp.ne.s32.totalorder %s109, %s110
    %p121 = scmp.eq.s32.totalorder %s19, 0
    %p122 = por %p120, %p121
    %p123 = scmp.ne.s32.totalorder %s109, %s110
    %p124 = scmp.eq.s32.totalorder %s20, 1
    %p125 = por %p123, %p124
    %p127 = scmp.ne.s32.totalorder %s110, %s126
    %p128 = scmp.eq.s32.totalorder %s20, 0
    %p129 = por %p127, %p128
    %s131 = sadd.s32 %s130, 1
    %p134 = scmp.eq.s32.totalorder %s14, 1
    %p135 = scmp.ne.s32.totalorder %s130, %s132
    %p136 = scmp.eq.s32.totalorder %s14, 0
    %p137 = por %p135, %p136
    %p138 = scmp.ne.s32.totalorder %s130, %s132
    %p139 = scmp.eq.s32.totalorder %s19, 1
    %p140 = por %p138, %p139
    %p141 = scmp.ne.s32.totalorder %s132, %s133
    %p142 = scmp.eq.s32.totalorder %s19, 0
    %p143 = por %p141, %p142
    %p144 = scmp.ne.s32.totalorder %s132, %s133
    %p145 = scmp.eq.s32.totalorder %s20, 1
    %p146 = por %p144, %p145
    %p148 = scmp.ne.s32.totalorder %s133, %s147
    %p149 = scmp.eq.s32.totalorder %s20, 0
    %p150 = por %p148, %p149
    %s152 = sadd.s32 %s151, 1
    %p155 = scmp.eq.s32.totalorder %s14, 1
    %p156 = scmp.ne.s32.totalorder %s151, %s153
    %p157 = scmp.eq.s32.totalorder %s14, 0
    %p158 = por %p156, %p157
    %p159 = scmp.ne.s32.totalorder %s151, %s153
    %p160 = scmp.eq.s32.totalorder %s19, 1
    %p161 = por %p159, %p160
    %p162 = scmp.ne.s32.totalorder %s153, %s154
    %p163 = scmp.eq.s32.totalorder %s19, 0
    %p164 = por %p162, %p163
    %p165 = scmp.ne.s32.totalorder %s153, %s154
    %p166 = scmp.eq.s32.totalorder %s20, 1
    %p167 = por %p165, %p166
    %p169 = scmp.ne.s32.totalorder %s154, %s168
    %p170 = scmp.eq.s32.totalorder %s20, 0
    %p171 = por %p169, %p170
    %s173 = sadd.s32 %s172, 1
    %p176 = scmp.eq.s32.totalorder %s14, 1
    %p177 = scmp.ne.s32.totalorder %s172, %s174
    %p178 = scmp.eq.s32.totalorder %s14, 0
    %p179 = por %p177, %p178
    %p180 = scmp.ne.s32.totalorder %s172, %s174
    %p181 = scmp.eq.s32.totalorder %s19, 1
    %p182 = por %p180, %p181
    %p183 = scmp.ne.s32.totalorder %s174, %s175
    %p184 = scmp.eq.s32.totalorder %s19, 0
    %p185 = por %p183, %p184
    %p186 = scmp.ne.s32.totalorder %s174, %s175
    %p187 = scmp.eq.s32.totalorder %s20, 1
    %p188 = por %p186, %p187
    %p190 = scmp.ne.s32.totalorder %s175, %s189
    %p191 = scmp.eq.s32.totalorder %s20, 0
    %p192 = por %p190, %p191
    %s193 = ssub.s32 %s21, %s33
    %s194 = ssub.s32 %s22, %s29
    %s195 = sor.u32 %s193, %s194
    %p196 = scmp.eq.s32.totalorder %s195, 0
    %s198 = sadd.s32 %s197, 1
    %s199 = scalar_select %p196, %s197, %s198
    %p202 = pneg %p196
    %p203 = scmp.eq.s32.totalorder %s14, 1
    %p204 = por %p202, %p203
    %p205 = scmp.ne.s32.totalorder %s197, %s200
    %p206 = scmp.eq.s32.totalorder %s14, 0
    %p207 = por %p205, %p206
    %p208 = scmp.ne.s32.totalorder %s197, %s200
    %p209 = scmp.eq.s32.totalorder %s19, 1
    %p210 = por %p208, %p209
    %p211 = scmp.ne.s32.totalorder %s200, %s201
    %p212 = scmp.eq.s32.totalorder %s19, 0
    %p213 = por %p211, %p212
    %p214 = scmp.ne.s32.totalorder %s200, %s201
    %p215 = scmp.eq.s32.totalorder %s20, 1
    %p216 = por %p214, %p215
    %p218 = scmp.ne.s32.totalorder %s201, %s217
    %p219 = scmp.eq.s32.totalorder %s20, 0
    %p220 = por %p218, %p219
    %s221 = sadd.s32 %s21, %s22
    %s222 = sadd.s32 %s33, %s29
    %s223 = ssub.s32 %s221, %s222
    %p224 = scmp.eq.s32.totalorder %s223, 0
    %s226 = sadd.s32 %s225, 1
    %s227 = scalar_select %p224, %s225, %s226
    %p230 = pneg %p224
    %p231 = scmp.eq.s32.totalorder %s14, 1
    %p232 = por %p230, %p231
    %p233 = scmp.ne.s32.totalorder %s225, %s228
    %p234 = scmp.eq.s32.totalorder %s14, 0
    %p235 = por %p233, %p234
    %p236 = scmp.ne.s32.totalorder %s225, %s228
    %p237 = scmp.eq.s32.totalorder %s19, 1
    %p238 = por %p236, %p237
    %p239 = scmp.ne.s32.totalorder %s228, %s229
    %p240 = scmp.eq.s32.totalorder %s19, 0
    %p241 = por %p239, %p240
    %p242 = scmp.ne.s32.totalorder %s228, %s229
    %p243 = scmp.eq.s32.totalorder %s20, 1
    %p244 = por %p242, %p243
    %p246 = scmp.ne.s32.totalorder %s229, %s245
    %p247 = scmp.eq.s32.totalorder %s20, 0
    %p248 = por %p246, %p247
    %p249 = scmp.le.s32.totalorder 1, %s14
    %p250 = scmp.lt.s32.totalorder %s14, 3
    %p251 = pnand %p249, %p250
    %p252 = pneg %p251
    // Predicated region
    $region9: #{conv_block_forward.4} parent=5 // pred_check
      _
    $region10: #{conv_block_forward.4} parent=5 // pred_check_branch
      %254 = sbr.rel (%p251) target = $region12
    $region11: #{conv_block_forward.4} parent=5 // pred_region
      %s255 = ssub.s32 %s14, 1
      // Predicated region
      $region13: #{conv_block_forward.4} parent=11 // pred_check
        %p256 = pneg %p143
      $region14: #{conv_block_forward.4} parent=11 // pred_check_branch
        %258 = sbr.rel (%p256) target = $region16
      $region15: #{conv_block_forward.4} parent=11 // pred_region
        _
      $region16: #{conv_block_forward.4} parent=11 // pred_fallthru
        _
      // Predicated region
      $region17: #{conv_block_forward.4} parent=11 // pred_check
        %p259 = pneg %p164
      $region18: #{conv_block_forward.4} parent=11 // pred_check_branch
        %261 = sbr.rel (%p259) target = $region20
      $region19: #{conv_block_forward.4} parent=11 // pred_region
        _
      $region20: #{conv_block_forward.4} parent=11 // pred_fallthru
        _
      // Predicated region
      $region21: #{conv_block_forward.4} parent=11 // pred_check
        %p262 = pneg %p185
      $region22: #{conv_block_forward.4} parent=11 // pred_check_branch
        %264 = sbr.rel (%p262) target = $region24
      $region23: #{conv_block_forward.4} parent=11 // pred_region
        _
      $region24: #{conv_block_forward.4} parent=11 // pred_fallthru
        _
    $region12: #{conv_block_forward.4} parent=5 // pred_fallthru
      _
    %p265 = scmp.lt.s32.totalorder %s14, 2
    // Predicated region
    $region25: #{conv_block_forward.4} parent=5 // pred_check
      %p266 = pneg %p265
    $region26: #{conv_block_forward.4} parent=5 // pred_check_branch
      %268 = sbr.rel (%p266) target = $region28
    $region27: #{conv_block_forward.4} parent=5 // pred_region
      // Predicated region
      $region29: #{conv_block_forward.4} parent=27 // pred_check
        %p269 = pneg %p48
      $region30: #{conv_block_forward.4} parent=27 // pred_check_branch
        %271 = sbr.rel (%p269) target = $region32
      $region31: #{conv_block_forward.4} parent=27 // pred_region
        %s272 = smul.u32 16, %s22
        %p273 = scmp.lt.s32.totalorder %s21, 1
        %s274 = scalar_select %p273, %s21, 1
        %p275 = scmp.lt.s32.totalorder %s272, 15
        %s276 = scalar_select %p275, %s272, 15
        %s277 = smul.addr %s276, 2
        %s278 = smul.addr %s274, 32
        %s279 = sadd.s32 %s277, %s278
        %s280 = smul.addr %s279, 4
        %s281 = scalar_lea.vmem %s0, %s280
        %s282 = smul.u32 16, %s22
      $region32: #{conv_block_forward.4} parent=27 // pred_fallthru
        _
      // Predicated region
      $region33: #{conv_block_forward.4} parent=27 // pred_check
        %p283 = pneg %p82
      $region34: #{conv_block_forward.4} parent=27 // pred_check_branch
        %285 = sbr.rel (%p283) target = $region36
      $region35: #{conv_block_forward.4} parent=27 // pred_region
        %s286 = ssub.s32 %s22, 1
        %p287 = scmp.gt.s32.totalorder %s286, 0
        %s288 = scalar_select %p287, %s286, 0
        %s289 = smul.u32 16, %s288
        %p290 = scmp.lt.s32.totalorder %s21, 1
        %s291 = scalar_select %p290, %s21, 1
        %p292 = scmp.lt.s32.totalorder %s289, 15
        %s293 = scalar_select %p292, %s289, 15
        %s294 = smul.addr %s293, 2
        %s295 = smul.addr %s291, 32
        %s296 = sadd.s32 %s294, %s295
        %s297 = smul.addr %s296, 4
        %s298 = scalar_lea.vmem %s1, %s297
        %s299 = ssub.s32 %s22, 1
        %p300 = scmp.gt.s32.totalorder %s299, 0
        %s301 = scalar_select %p300, %s299, 0
        %s302 = smul.u32 16, %s301
      $region36: #{conv_block_forward.4} parent=27 // pred_fallthru
        _
      // Predicated region
      $region37: #{conv_block_forward.4} parent=27 // pred_check
        %p303 = pneg %p116
      $region38: #{conv_block_forward.4} parent=27 // pred_check_branch
        %305 = sbr.rel (%p303) target = $region40
      $region39: #{conv_block_forward.4} parent=27 // pred_region
        %s306 = sadd.s32 %s22, 1
        %p307 = scmp.lt.s32.totalorder %s306, 0
        %s308 = scalar_select %p307, %s306, 0
        %s309 = smul.u32 16, %s308
        %p310 = scmp.lt.s32.totalorder %s21, 1
        %s311 = scalar_select %p310, %s21, 1
        %p312 = scmp.lt.s32.totalorder %s309, 15
        %s313 = scalar_select %p312, %s309, 15
        %s314 = smul.addr %s313, 2
        %s315 = smul.addr %s311, 32
        %s316 = sadd.s32 %s314, %s315
        %s317 = smul.addr %s316, 4
        %s318 = scalar_lea.vmem %s2, %s317
        %s319 = sadd.s32 %s22, 1
        %p320 = scmp.lt.s32.totalorder %s319, 0
        %s321 = scalar_select %p320, %s319, 0
        %s322 = smul.u32 16, %s321
      $region40: #{conv_block_forward.4} parent=27 // pred_fallthru
        _
    $region28: #{conv_block_forward.4} parent=5 // pred_fallthru
      _
    %p323 = scmp.le.s32.totalorder 1, %s14
    %p324 = scmp.lt.s32.totalorder %s14, 3
    %p325 = pnand %p323, %p324
    %p326 = pneg %p325
    // Predicated region
    $region41: #{conv_block_forward.4} parent=5 // pred_check
      _
    $region42: #{conv_block_forward.4} parent=5 // pred_check_branch
      %328 = sbr.rel (%p325) target = $region44
    $region43: #{conv_block_forward.4} parent=5 // pred_region
      %s329 = ssub.s32 %s14, 1
      %s330 = smul.u32 16, %s24
      %p331 = scmp.lt.s32.totalorder %s23, 1
      %s332 = scalar_select %p331, %s23, 1
      %p333 = scmp.lt.s32.totalorder %s330, 15
      %s334 = scalar_select %p333, %s330, 15
      %s335 = smul.addr %s334, 2
      %s336 = smul.addr %s332, 32
      %s337 = sadd.s32 %s335, %s336
      %s338 = smul.addr %s337, 4
      %s339 = scalar_lea.vmem %s0, %s338
      %p340 = pneg %p54
      %p341 = pneg %p51
      %s342 = ssub.s32 %s24, 1
      %p343 = scmp.gt.s32.totalorder %s342, 0
      %s344 = scalar_select %p343, %s342, 0
      %s345 = smul.u32 16, %s344
      %p346 = scmp.lt.s32.totalorder %s23, 1
      %s347 = scalar_select %p346, %s23, 1
      %p348 = scmp.lt.s32.totalorder %s345, 15
      %s349 = scalar_select %p348, %s345, 15
      %s350 = smul.addr %s349, 2
      %s351 = smul.addr %s347, 32
      %s352 = sadd.s32 %s350, %s351
      %s353 = smul.addr %s352, 4
      %s354 = scalar_lea.vmem %s1, %s353
      %p355 = pneg %p88
      %p356 = pneg %p85
      %s357 = sadd.s32 %s24, 1
      %p358 = scmp.lt.s32.totalorder %s357, 0
      %s359 = scalar_select %p358, %s357, 0
      %s360 = smul.u32 16, %s359
      %p361 = scmp.lt.s32.totalorder %s23, 1
      %s362 = scalar_select %p361, %s23, 1
      %p363 = scmp.lt.s32.totalorder %s360, 15
      %s364 = scalar_select %p363, %s360, 15
      %s365 = smul.addr %s364, 2
      %s366 = smul.addr %s362, 32
      %s367 = sadd.s32 %s365, %s366
      %s368 = smul.addr %s367, 4
      %s369 = scalar_lea.vmem %s2, %s368
      %p370 = pneg %p122
      %p371 = pneg %p119
      %p372 = pneg %p143
      %p373 = pneg %p140
      %p374 = pneg %p164
      %p375 = pneg %p161
      %p376 = pneg %p185
      %p377 = pneg %p182
      %p378 = pneg %p213
      %p379 = pneg %p210
      %s380 = smul.u32 16, %s24
      %p381 = scmp.lt.s32.totalorder %s23, 1
      %s382 = scalar_select %p381, %s23, 1
      %p383 = scmp.lt.s32.totalorder %s380, 15
      %s384 = scalar_select %p383, %s380, 15
      %s385 = smul.addr %s384, 2
      %s386 = smul.addr %s382, 32
      %s387 = sadd.s32 %s385, %s386
      %s388 = smul.addr %s387, 4
      %s389 = scalar_lea.vmem %s6, %s388
      %p390 = pneg %p241
      %p391 = pneg %p238
      %s392 = sadd.s32 %s23, %s24
      %p393 = scmp.lt.s32.totalorder %s392, 1
      %s394 = scalar_select %p393, %s392, 1
      %s395 = smul.addr %s394, 2
      %s396 = scalar_lea.vmem %s7, %s395
      %s397 = smul.u32 16, %s24
      %p398 = scmp.lt.s32.totalorder %s23, 1
      %s399 = scalar_select %p398, %s23, 1
      %p400 = scmp.lt.s32.totalorder %s397, 15
      %s401 = scalar_select %p400, %s397, 15
      %s402 = smul.addr %s401, 2
      %s403 = smul.addr %s399, 32
      %s404 = sadd.s32 %s402, %s403
      %s405 = smul.addr %s404, 4
      %s406 = scalar_lea.vmem %s0, %s405
      %s407 = smul.u32 16, %s24
      %s408 = ssub.s32 %s24, 1
      %p409 = scmp.gt.s32.totalorder %s408, 0
      %s410 = scalar_select %p409, %s408, 0
      %s411 = smul.u32 16, %s410
      %p412 = scmp.lt.s32.totalorder %s23, 1
      %s413 = scalar_select %p412, %s23, 1
      %p414 = scmp.lt.s32.totalorder %s411, 15
      %s415 = scalar_select %p414, %s411, 15
      %s416 = smul.addr %s415, 2
      %s417 = smul.addr %s413, 32
      %s418 = sadd.s32 %s416, %s417
      %s419 = smul.addr %s418, 4
      %s420 = scalar_lea.vmem %s1, %s419
      %s421 = ssub.s32 %s24, 1
      %p422 = scmp.gt.s32.totalorder %s421, 0
      %s423 = scalar_select %p422, %s421, 0
      %s424 = smul.u32 16, %s423
      %s425 = sadd.s32 %s24, 1
      %p426 = scmp.lt.s32.totalorder %s425, 0
      %s427 = scalar_select %p426, %s425, 0
      %s428 = smul.u32 16, %s427
      %p429 = scmp.lt.s32.totalorder %s23, 1
      %s430 = scalar_select %p429, %s23, 1
      %p431 = scmp.lt.s32.totalorder %s428, 15
      %s432 = scalar_select %p431, %s428, 15
      %s433 = smul.addr %s432, 2
      %s434 = smul.addr %s430, 32
      %s435 = sadd.s32 %s433, %s434
      %s436 = smul.addr %s435, 4
      %s437 = scalar_lea.vmem %s2, %s436
      %s438 = sadd.s32 %s24, 1
      %p439 = scmp.lt.s32.totalorder %s438, 0
      %s440 = scalar_select %p439, %s438, 0
      %s441 = smul.u32 16, %s440
      %s442 = smul.u32 16, %s24
      %p443 = scmp.lt.s32.totalorder %s23, 1
      %s444 = scalar_select %p443, %s23, 1
      %p445 = scmp.lt.s32.totalorder %s442, 15
      %s446 = scalar_select %p445, %s442, 15
      %s447 = smul.addr %s446, 2
      %s448 = smul.addr %s444, 32
      %s449 = sadd.s32 %s447, %s448
      %s450 = smul.addr %s449, 4
      %s451 = scalar_lea.vmem %s6, %s450
      %s452 = smul.u32 16, %s24
      %s453 = sadd.s32 %s23, %s24
      %p454 = scmp.lt.s32.totalorder %s453, 1
      %s455 = scalar_select %p454, %s453, 1
      %s456 = smul.addr %s455, 2
      %s457 = scalar_lea.vmem %s7, %s456
      %s458 = sadd.s32 %s23, %s24
      %v460 = vld [vmem:[%s406] sm:$0xf]
      %v461 = vld [vmem:[%s406 + $0x4] sm:$0xf]
      %v462 = vld [vmem:[%s406 + $0x8] sm:$0xf]
      %v463 = vld [vmem:[%s406 + $0xc] sm:$0xf]
      %v464 = vld [vmem:[%s406 + $0x10] sm:$0xf]
      %v465 = vld [vmem:[%s406 + $0x14] sm:$0xf]
      %v466 = vld [vmem:[%s406 + $0x18] sm:$0xf]
      %v467 = vld [vmem:[%s406 + $0x1c] sm:$0xf]
      %v468 = vld [vmem:[%s406 + $0x20] sm:$0xf]
      %v469 = vld [vmem:[%s406 + $0x24] sm:$0xf]
      %v470 = vld [vmem:[%s406 + $0x28] sm:$0xf]
      %v471 = vld [vmem:[%s406 + $0x2c] sm:$0xf]
      %v472 = vld [vmem:[%s406 + $0x30] sm:$0xf]
      %v473 = vld [vmem:[%s406 + $0x34] sm:$0xf]
      %v474 = vld [vmem:[%s406 + $0x38] sm:$0xf]
      %v475 = vld [vmem:[%s406 + $0x3c] sm:$0xf]
      %v476 = vld [vmem:[%s406 + $0x40] sm:$0xf]
      %v477 = vld [vmem:[%s406 + $0x44] sm:$0xf]
      %v478 = vld [vmem:[%s406 + $0x48] sm:$0xf]
      %v479 = vld [vmem:[%s406 + $0x4c] sm:$0xf]
      %v480 = vld [vmem:[%s406 + $0x50] sm:$0xf]
      %v481 = vld [vmem:[%s406 + $0x54] sm:$0xf]
      %v482 = vld [vmem:[%s406 + $0x58] sm:$0xf]
      %v483 = vld [vmem:[%s406 + $0x5c] sm:$0xf]
      %v484 = vld [vmem:[%s406 + $0x60] sm:$0xf]
      %v485 = vld [vmem:[%s406 + $0x64] sm:$0xf]
      %v486 = vld [vmem:[%s406 + $0x68] sm:$0xf]
      %v487 = vld [vmem:[%s406 + $0x6c] sm:$0xf]
      %v488 = vld [vmem:[%s406 + $0x70] sm:$0xf]
      %v489 = vld [vmem:[%s406 + $0x74] sm:$0xf]
      %v490 = vld [vmem:[%s406 + $0x78] sm:$0xf]
      %v491 = vld [vmem:[%s406 + $0x7c] sm:$0xf]
      %v492 = vunpack.c.l.bf16 %v460
      %v493 = vunpack.c.l.bf16 %v461
      %v494 = vunpack.c.l.bf16 %v462
      %v495 = vunpack.c.l.bf16 %v463
      %v496 = vunpack.c.l.bf16 %v464
      %v497 = vunpack.c.l.bf16 %v465
      %v498 = vunpack.c.l.bf16 %v466
      %v499 = vunpack.c.l.bf16 %v467
      %v500 = vunpack.c.l.bf16 %v468
      %v501 = vunpack.c.l.bf16 %v469
      %v502 = vunpack.c.l.bf16 %v470
      %v503 = vunpack.c.l.bf16 %v471
      %v504 = vunpack.c.l.bf16 %v472
      %v505 = vunpack.c.l.bf16 %v473
      %v506 = vunpack.c.l.bf16 %v474
      %v507 = vunpack.c.l.bf16 %v475
      %v508 = vunpack.c.l.bf16 %v476
      %v509 = vunpack.c.l.bf16 %v477
      %v510 = vunpack.c.l.bf16 %v478
      %v511 = vunpack.c.l.bf16 %v479
      %v512 = vunpack.c.l.bf16 %v480
      %v513 = vunpack.c.l.bf16 %v481
      %v514 = vunpack.c.l.bf16 %v482
      %v515 = vunpack.c.l.bf16 %v483
      %v516 = vunpack.c.l.bf16 %v484
      %v517 = vunpack.c.l.bf16 %v485
      %v518 = vunpack.c.l.bf16 %v486
      %v519 = vunpack.c.l.bf16 %v487
      %v520 = vunpack.c.l.bf16 %v488
      %v521 = vunpack.c.l.bf16 %v489
      %v522 = vunpack.c.l.bf16 %v490
      %v523 = vunpack.c.l.bf16 %v491
      %v524 = vld [vmem:[%s4] sm:$0x1]
      %v526 = vlaneseq
      %v527 = vshrl.u32 %v526, 7
      %v528 = vsub.s32 0, %v527
      %v529 = vrot.slane %v524, %v528
      %v531 = vmul.f32 %v492, %v529
      %v532 = vmul.f32 %v493, %v529
      %v533 = vmul.f32 %v494, %v529
      %v534 = vmul.f32 %v495, %v529
      %v535 = vmul.f32 %v496, %v529
      %v536 = vmul.f32 %v497, %v529
      %v537 = vmul.f32 %v498, %v529
      %v538 = vmul.f32 %v499, %v529
      %v539 = vmul.f32 %v500, %v529
      %v540 = vmul.f32 %v501, %v529
      %v541 = vmul.f32 %v502, %v529
      %v542 = vmul.f32 %v503, %v529
      %v543 = vmul.f32 %v504, %v529
      %v544 = vmul.f32 %v505, %v529
      %v545 = vmul.f32 %v506, %v529
      %v546 = vmul.f32 %v507, %v529
      %v547 = vmul.f32 %v508, %v529
      %v548 = vmul.f32 %v509, %v529
      %v549 = vmul.f32 %v510, %v529
      %v550 = vmul.f32 %v511, %v529
      %v551 = vmul.f32 %v512, %v529
      %v552 = vmul.f32 %v513, %v529
      %v553 = vmul.f32 %v514, %v529
      %v554 = vmul.f32 %v515, %v529
      %v555 = vmul.f32 %v516, %v529
      %v556 = vmul.f32 %v517, %v529
      %v557 = vmul.f32 %v518, %v529
      %v558 = vmul.f32 %v519, %v529
      %v559 = vmul.f32 %v520, %v529
      %v560 = vmul.f32 %v521, %v529
      %v561 = vmul.f32 %v522, %v529
      %v562 = vmul.f32 %v523, %v529
      %v563 = vld [vmem:[%s5] sm:$0x1]
      %v565 = vlaneseq
      %v566 = vshrl.u32 %v565, 7
      %v567 = vsub.s32 0, %v566
      %v568 = vrot.slane %v563, %v567
      %v570 = vadd.f32 %v531, %v568
      %v571 = vadd.f32 %v532, %v568
      %v572 = vadd.f32 %v533, %v568
      %v573 = vadd.f32 %v534, %v568
      %v574 = vadd.f32 %v535, %v568
      %v575 = vadd.f32 %v536, %v568
      %v576 = vadd.f32 %v537, %v568
      %v577 = vadd.f32 %v538, %v568
      %v578 = vadd.f32 %v539, %v568
      %v579 = vadd.f32 %v540, %v568
      %v580 = vadd.f32 %v541, %v568
      %v581 = vadd.f32 %v542, %v568
      %v582 = vadd.f32 %v543, %v568
      %v583 = vadd.f32 %v544, %v568
      %v584 = vadd.f32 %v545, %v568
      %v585 = vadd.f32 %v546, %v568
      %v586 = vadd.f32 %v547, %v568
      %v587 = vadd.f32 %v548, %v568
      %v588 = vadd.f32 %v549, %v568
      %v589 = vadd.f32 %v550, %v568
      %v590 = vadd.f32 %v551, %v568
      %v591 = vadd.f32 %v552, %v568
      %v592 = vadd.f32 %v553, %v568
      %v593 = vadd.f32 %v554, %v568
      %v594 = vadd.f32 %v555, %v568
      %v595 = vadd.f32 %v556, %v568
      %v596 = vadd.f32 %v557, %v568
      %v597 = vadd.f32 %v558, %v568
      %v598 = vadd.f32 %v559, %v568
      %v599 = vadd.f32 %v560, %v568
      %v600 = vadd.f32 %v561, %v568
      %v601 = vadd.f32 %v562, %v568
      %v602 = vmax.f32 %v570, 0.0
      %v603 = vmax.f32 %v571, 0.0
      %v604 = vmax.f32 %v572, 0.0
      %v605 = vmax.f32 %v573, 0.0
      %v606 = vmax.f32 %v574, 0.0
      %v607 = vmax.f32 %v575, 0.0
      %v608 = vmax.f32 %v576, 0.0
      %v609 = vmax.f32 %v577, 0.0
      %v610 = vmax.f32 %v578, 0.0
      %v611 = vmax.f32 %v579, 0.0
      %v612 = vmax.f32 %v580, 0.0
      %v613 = vmax.f32 %v581, 0.0
      %v614 = vmax.f32 %v582, 0.0
      %v615 = vmax.f32 %v583, 0.0
      %v616 = vmax.f32 %v584, 0.0
      %v617 = vmax.f32 %v585, 0.0
      %v618 = vmax.f32 %v586, 0.0
      %v619 = vmax.f32 %v587, 0.0
      %v620 = vmax.f32 %v588, 0.0
      %v621 = vmax.f32 %v589, 0.0
      %v622 = vmax.f32 %v590, 0.0
      %v623 = vmax.f32 %v591, 0.0
      %v624 = vmax.f32 %v592, 0.0
      %v625 = vmax.f32 %v593, 0.0
      %v626 = vmax.f32 %v594, 0.0
      %v627 = vmax.f32 %v595, 0.0
      %v628 = vmax.f32 %v596, 0.0
      %v629 = vmax.f32 %v597, 0.0
      %v630 = vmax.f32 %v598, 0.0
      %v631 = vmax.f32 %v599, 0.0
      %v632 = vmax.f32 %v600, 0.0
      %v633 = vmax.f32 %v601, 0.0
      %v634 = vpack.c.bf16 %v603, %v602
      %v635 = vpack.c.bf16 %v605, %v604
      %v636 = vpack.c.bf16 %v607, %v606
      %v637 = vpack.c.bf16 %v609, %v608
      %v638 = vpack.c.bf16 %v611, %v610
      %v639 = vpack.c.bf16 %v613, %v612
      %v640 = vpack.c.bf16 %v615, %v614
      %v641 = vpack.c.bf16 %v617, %v616
      %v642 = vpack.c.bf16 %v619, %v618
      %v643 = vpack.c.bf16 %v621, %v620
      %v644 = vpack.c.bf16 %v623, %v622
      %v645 = vpack.c.bf16 %v625, %v624
      %v646 = vpack.c.bf16 %v627, %v626
      %v647 = vpack.c.bf16 %v629, %v628
      %v648 = vpack.c.bf16 %v631, %v630
      %v649 = vpack.c.bf16 %v633, %v632
      %s650 = scalar_lea.vmem %s420, 120
      %v651 = vld [vmem:[%s650] sm:$0xf]
      %v652 = vld [vmem:[%s650 + $0x4] sm:$0xf]
      %v653 = vunpack.c.l.bf16 %v651
      %v654 = vunpack.c.l.bf16 %v652
      %v655 = vmul.f32 %v653, %v529
      %v656 = vmul.f32 %v654, %v529
      %v657 = vadd.f32 %v655, %v568
      %v658 = vadd.f32 %v656, %v568
      %v659 = vmax.f32 %v657, 0.0
      %v660 = vmax.f32 %v658, 0.0
      %v661 = vpack.c.bf16 %v660, %v659
      %v662 = vld [vmem:[%s437] sm:$0xf]
      %v663 = vld [vmem:[%s437 + $0x4] sm:$0xf]
      %v664 = vunpack.c.l.bf16 %v662
      %v665 = vunpack.c.l.bf16 %v663
      %v666 = vmul.f32 %v664, %v529
      %v667 = vmul.f32 %v665, %v529
      %v668 = vadd.f32 %v666, %v568
      %v669 = vadd.f32 %v667, %v568
      %v670 = vmax.f32 %v668, 0.0
      %v671 = vmax.f32 %v669, 0.0
      %v672 = vpack.c.bf16 %v671, %v670
      %p673 = scmp.eq.s32.totalorder %s24, 0
      %s674 = scalar_select %p673, 1, 0
      %v675 = vstv %s674
      %vm676 = vcmp.eq.s32.totalorder %v675, 1
      %v677 = vsel %vm676, 0, %v661
      %v678 = vsel %vm676, 0, %v672
      %v680 = vshrl.u32 %v677, 16
      %v682 = vrot.slane %v680, 7
      %v683 = vshll.u32 %v677, 16
      %v685 = vor.u32 %v682, %v683
      %v687 = vshrl.u32 %v634, 16
      %v689 = vrot.slane %v687, 7
      %v690 = vshll.u32 %v634, 16
      %v692 = vor.u32 %v689, %v690
      %v694 = vshrl.u32 %v635, 16
      %v696 = vrot.slane %v694, 7
      %v697 = vshll.u32 %v635, 16
      %v699 = vor.u32 %v696, %v697
      %v701 = vshrl.u32 %v636, 16
      %v703 = vrot.slane %v701, 7
      %v704 = vshll.u32 %v636, 16
      %v706 = vor.u32 %v703, %v704
      %v708 = vshrl.u32 %v637, 16
      %v710 = vrot.slane %v708, 7
      %v711 = vshll.u32 %v637, 16
      %v713 = vor.u32 %v710, %v711
      %v715 = vshrl.u32 %v638, 16
      %v717 = vrot.slane %v715, 7
      %v718 = vshll.u32 %v638, 16
      %v720 = vor.u32 %v717, %v718
      %v722 = vshrl.u32 %v639, 16
      %v724 = vrot.slane %v722, 7
      %v725 = vshll.u32 %v639, 16
      %v727 = vor.u32 %v724, %v725
      %v729 = vshrl.u32 %v640, 16
      %v731 = vrot.slane %v729, 7
      %v732 = vshll.u32 %v640, 16
      %v734 = vor.u32 %v731, %v732
      %v736 = vshrl.u32 %v641, 16
      %v738 = vrot.slane %v736, 7
      %v739 = vshll.u32 %v641, 16
      %v741 = vor.u32 %v738, %v739
      %v743 = vshrl.u32 %v642, 16
      %v745 = vrot.slane %v743, 7
      %v746 = vshll.u32 %v642, 16
      %v748 = vor.u32 %v745, %v746
      %v750 = vshrl.u32 %v643, 16
      %v752 = vrot.slane %v750, 7
      %v753 = vshll.u32 %v643, 16
      %v755 = vor.u32 %v752, %v753
      %v757 = vshrl.u32 %v644, 16
      %v759 = vrot.slane %v757, 7
      %v760 = vshll.u32 %v644, 16
      %v762 = vor.u32 %v759, %v760
      %v764 = vshrl.u32 %v645, 16
      %v766 = vrot.slane %v764, 7
      %v767 = vshll.u32 %v645, 16
      %v769 = vor.u32 %v766, %v767
      %v771 = vshrl.u32 %v646, 16
      %v773 = vrot.slane %v771, 7
      %v774 = vshll.u32 %v646, 16
      %v776 = vor.u32 %v773, %v774
      %v778 = vshrl.u32 %v647, 16
      %v780 = vrot.slane %v778, 7
      %v781 = vshll.u32 %v647, 16
      %v783 = vor.u32 %v780, %v781
      %v785 = vshrl.u32 %v648, 16
      %v787 = vrot.slane %v785, 7
      %v788 = vshll.u32 %v648, 16
      %v790 = vor.u32 %v787, %v788
      %v792 = vshrl.u32 %v649, 16
      %v794 = vrot.slane %v792, 7
      %v795 = vshll.u32 %v649, 16
      %v797 = vor.u32 %v794, %v795
      %v799 = vshrl.u32 %v678, 16
      %v801 = vrot.slane %v799, 7
      %v802 = vshll.u32 %v678, 16
      %v804 = vor.u32 %v801, %v802
      %vm841 = vcmask 1040384
      %vm842 = vsmask.f32 256
      %vm843 = vmand %vm841, %vm842
      %v844 = vsel %vm843, 0, %v685
      %v845 = vsel %vm843, 0, %v692
      %v846 = vsel %vm843, 0, %v699
      %v847 = vsel %vm843, 0, %v706
      %v848 = vsel %vm843, 0, %v713
      %v849 = vsel %vm843, 0, %v720
      %v850 = vsel %vm843, 0, %v727
      %v851 = vsel %vm843, 0, %v734
      %v852 = vsel %vm843, 0, %v741
      %v853 = vsel %vm843, 0, %v748
      %v854 = vsel %vm843, 0, %v755
      %v855 = vsel %vm843, 0, %v762
      %v856 = vsel %vm843, 0, %v769
      %v857 = vsel %vm843, 0, %v776
      %v858 = vsel %vm843, 0, %v783
      %v859 = vsel %vm843, 0, %v790
      %v860 = vsel %vm843, 0, %v797
      %v861 = vsel %vm843, 0, %v804
      %v862 = vsel %vm843, %v682, 0
      %v863 = vsel %vm843, %v689, 0
      %v864 = vsel %vm843, %v696, 0
      %v865 = vsel %vm843, %v703, 0
      %v866 = vsel %vm843, %v710, 0
      %v867 = vsel %vm843, %v717, 0
      %v868 = vsel %vm843, %v724, 0
      %v869 = vsel %vm843, %v731, 0
      %v870 = vsel %vm843, %v738, 0
      %v871 = vsel %vm843, %v745, 0
      %v872 = vsel %vm843, %v752, 0
      %v873 = vsel %vm843, %v759, 0
      %v874 = vsel %vm843, %v766, 0
      %v875 = vsel %vm843, %v773, 0
      %v876 = vsel %vm843, %v780, 0
      %v877 = vsel %vm843, %v787, 0
      %v878 = vsel %vm843, %v794, 0
      %v879 = vsel %vm843, %v801, 0
      %vm880 = vsmask.f32 7424
      %v882 = vshrl.u32 %v844, 16
      %v884 = vshll.u32 %v844, 16
      %v886 = vrot.slane %v884, 1
      %v887 = vor.u32 %v882, %v886
      %v889 = vshll.u32 %v862, 16
      %v891 = vrot.slane %v889, 1
      %v892 = vsel %vm880, %v887, %v891
      %v894 = vshrl.u32 %v845, 16
      %v896 = vshll.u32 %v845, 16
      %v898 = vrot.slane %v896, 1
      %v899 = vor.u32 %v894, %v898
      %v901 = vshll.u32 %v863, 16
      %v903 = vrot.slane %v901, 1
      %v904 = vsel %vm880, %v899, %v903
      %v906 = vshrl.u32 %v846, 16
      %v908 = vshll.u32 %v846, 16
      %v910 = vrot.slane %v908, 1
      %v911 = vor.u32 %v906, %v910
      %v913 = vshll.u32 %v864, 16
      %v915 = vrot.slane %v913, 1
      %v916 = vsel %vm880, %v911, %v915
      %v918 = vshrl.u32 %v847, 16
      %v920 = vshll.u32 %v847, 16
      %v922 = vrot.slane %v920, 1
      %v923 = vor.u32 %v918, %v922
      %v925 = vshll.u32 %v865, 16
      %v927 = vrot.slane %v925, 1
      %v928 = vsel %vm880, %v923, %v927
      %v930 = vshrl.u32 %v848, 16
      %v932 = vshll.u32 %v848, 16
      %v934 = vrot.slane %v932, 1
      %v935 = vor.u32 %v930, %v934
      %v937 = vshll.u32 %v866, 16
      %v939 = vrot.slane %v937, 1
      %v940 = vsel %vm880, %v935, %v939
      %v942 = vshrl.u32 %v849, 16
      %v944 = vshll.u32 %v849, 16
      %v946 = vrot.slane %v944, 1
      %v947 = vor.u32 %v942, %v946
      %v949 = vshll.u32 %v867, 16
      %v951 = vrot.slane %v949, 1
      %v952 = vsel %vm880, %v947, %v951
      %v954 = vshrl.u32 %v850, 16
      %v956 = vshll.u32 %v850, 16
      %v958 = vrot.slane %v956, 1
      %v959 = vor.u32 %v954, %v958
      %v961 = vshll.u32 %v868, 16
      %v963 = vrot.slane %v961, 1
      %v964 = vsel %vm880, %v959, %v963
      %v966 = vshrl.u32 %v851, 16
      %v968 = vshll.u32 %v851, 16
      %v970 = vrot.slane %v968, 1
      %v971 = vor.u32 %v966, %v970
      %v973 = vshll.u32 %v869, 16
      %v975 = vrot.slane %v973, 1
      %v976 = vsel %vm880, %v971, %v975
      %v978 = vshrl.u32 %v852, 16
      %v980 = vshll.u32 %v852, 16
      %v982 = vrot.slane %v980, 1
      %v983 = vor.u32 %v978, %v982
      %v985 = vshll.u32 %v870, 16
      %v987 = vrot.slane %v985, 1
      %v988 = vsel %vm880, %v983, %v987
      %v990 = vshrl.u32 %v853, 16
      %v992 = vshll.u32 %v853, 16
      %v994 = vrot.slane %v992, 1
      %v995 = vor.u32 %v990, %v994
      %v997 = vshll.u32 %v871, 16
      %v999 = vrot.slane %v997, 1
      %v1000 = vsel %vm880, %v995, %v999
      %v1002 = vshrl.u32 %v854, 16
      %v1004 = vshll.u32 %v854, 16
      %v1006 = vrot.slane %v1004, 1
      %v1007 = vor.u32 %v1002, %v1006
      %v1009 = vshll.u32 %v872, 16
      %v1011 = vrot.slane %v1009, 1
      %v1012 = vsel %vm880, %v1007, %v1011
      %v1014 = vshrl.u32 %v855, 16
      %v1016 = vshll.u32 %v855, 16
      %v1018 = vrot.slane %v1016, 1
      %v1019 = vor.u32 %v1014, %v1018
      %v1021 = vshll.u32 %v873, 16
      %v1023 = vrot.slane %v1021, 1
      %v1024 = vsel %vm880, %v1019, %v1023
      %v1026 = vshrl.u32 %v856, 16
      %v1028 = vshll.u32 %v856, 16
      %v1030 = vrot.slane %v1028, 1
      %v1031 = vor.u32 %v1026, %v1030
      %v1033 = vshll.u32 %v874, 16
      %v1035 = vrot.slane %v1033, 1
      %v1036 = vsel %vm880, %v1031, %v1035
      %v1038 = vshrl.u32 %v857, 16
      %v1040 = vshll.u32 %v857, 16
      %v1042 = vrot.slane %v1040, 1
      %v1043 = vor.u32 %v1038, %v1042
      %v1045 = vshll.u32 %v875, 16
      %v1047 = vrot.slane %v1045, 1
      %v1048 = vsel %vm880, %v1043, %v1047
      %v1050 = vshrl.u32 %v858, 16
      %v1052 = vshll.u32 %v858, 16
      %v1054 = vrot.slane %v1052, 1
      %v1055 = vor.u32 %v1050, %v1054
      %v1057 = vshll.u32 %v876, 16
      %v1059 = vrot.slane %v1057, 1
      %v1060 = vsel %vm880, %v1055, %v1059
      %v1062 = vshrl.u32 %v859, 16
      %v1064 = vshll.u32 %v859, 16
      %v1066 = vrot.slane %v1064, 1
      %v1067 = vor.u32 %v1062, %v1066
      %v1069 = vshll.u32 %v877, 16
      %v1071 = vrot.slane %v1069, 1
      %v1072 = vsel %vm880, %v1067, %v1071
      %1073 = vrot.lane.b32.xlu0 %v892, 32
      %v1074 = vpop.permute.xlu0 %1073
      %1075 = vrot.lane.b32.xlu0 %v904, 32
      %v1076 = vpop.permute.xlu0 %1075
      %1077 = vrot.lane.b32.xlu0 %v916, 32
      %v1078 = vpop.permute.xlu0 %1077
      %1079 = vrot.lane.b32.xlu0 %v928, 32
      %v1080 = vpop.permute.xlu0 %1079
      %1081 = vrot.lane.b32.xlu0 %v940, 32
      %v1082 = vpop.permute.xlu0 %1081
      %1083 = vrot.lane.b32.xlu0 %v952, 32
      %v1084 = vpop.permute.xlu0 %1083
      %1085 = vrot.lane.b32.xlu0 %v964, 32
      %v1086 = vpop.permute.xlu0 %1085
      %1087 = vrot.lane.b32.xlu0 %v976, 32
      %v1088 = vpop.permute.xlu0 %1087
      %1089 = vrot.lane.b32.xlu0 %v988, 32
      %v1090 = vpop.permute.xlu0 %1089
      %1091 = vrot.lane.b32.xlu0 %v1000, 32
      %v1092 = vpop.permute.xlu0 %1091
      %1093 = vrot.lane.b32.xlu0 %v1012, 32
      %v1094 = vpop.permute.xlu0 %1093
      %1095 = vrot.lane.b32.xlu0 %v1024, 32
      %v1096 = vpop.permute.xlu0 %1095
      %1097 = vrot.lane.b32.xlu0 %v1036, 32
      %v1098 = vpop.permute.xlu0 %1097
      %1099 = vrot.lane.b32.xlu0 %v1048, 32
      %v1100 = vpop.permute.xlu0 %1099
      %1101 = vrot.lane.b32.xlu0 %v1060, 32
      %v1102 = vpop.permute.xlu0 %1101
      %1103 = vrot.lane.b32.xlu0 %v1072, 32
      %v1104 = vpop.permute.xlu0 %1103
      %vm1137 = vcmask 1046528
      %v1138 = vrot.slane %v844, 1
      %v1139 = vrot.slane %v862, 1
      %v1140 = vsel %vm1137, %v1138, %v1139
      %v1141 = vrot.slane %v845, 1
      %v1142 = vrot.slane %v863, 1
      %v1143 = vsel %vm1137, %v1141, %v1142
      %v1144 = vrot.slane %v846, 1
      %v1145 = vrot.slane %v864, 1
      %v1146 = vsel %vm1137, %v1144, %v1145
      %v1147 = vrot.slane %v847, 1
      %v1148 = vrot.slane %v865, 1
      %v1149 = vsel %vm1137, %v1147, %v1148
      %v1150 = vrot.slane %v848, 1
      %v1151 = vrot.slane %v866, 1
      %v1152 = vsel %vm1137, %v1150, %v1151
      %v1153 = vrot.slane %v849, 1
      %v1154 = vrot.slane %v867, 1
      %v1155 = vsel %vm1137, %v1153, %v1154
      %v1156 = vrot.slane %v850, 1
      %v1157 = vrot.slane %v868, 1
      %v1158 = vsel %vm1137, %v1156, %v1157
      %v1159 = vrot.slane %v851, 1
      %v1160 = vrot.slane %v869, 1
      %v1161 = vsel %vm1137, %v1159, %v1160
      %v1162 = vrot.slane %v852, 1
      %v1163 = vrot.slane %v870, 1
      %v1164 = vsel %vm1137, %v1162, %v1163
      %v1165 = vrot.slane %v853, 1
      %v1166 = vrot.slane %v871, 1
      %v1167 = vsel %vm1137, %v1165, %v1166
      %v1168 = vrot.slane %v854, 1
      %v1169 = vrot.slane %v872, 1
      %v1170 = vsel %vm1137, %v1168, %v1169
      %v1171 = vrot.slane %v855, 1
      %v1172 = vrot.slane %v873, 1
      %v1173 = vsel %vm1137, %v1171, %v1172
      %v1174 = vrot.slane %v856, 1
      %v1175 = vrot.slane %v874, 1
      %v1176 = vsel %vm1137, %v1174, %v1175
      %v1177 = vrot.slane %v857, 1
      %v1178 = vrot.slane %v875, 1
      %v1179 = vsel %vm1137, %v1177, %v1178
      %v1180 = vrot.slane %v858, 1
      %v1181 = vrot.slane %v876, 1
      %v1182 = vsel %vm1137, %v1180, %v1181
      %v1183 = vrot.slane %v859, 1
      %v1184 = vrot.slane %v877, 1
      %v1185 = vsel %vm1137, %v1183, %v1184
      %1186 = vrot.lane.b32.xlu0 %v1140, 64
      %v1187 = vpop.permute.xlu0 %1186
      %1188 = vrot.lane.b32.xlu0 %v1143, 64
      %v1189 = vpop.permute.xlu0 %1188
      %1190 = vrot.lane.b32.xlu0 %v1146, 64
      %v1191 = vpop.permute.xlu0 %1190
      %1192 = vrot.lane.b32.xlu0 %v1149, 64
      %v1193 = vpop.permute.xlu0 %1192
      %1194 = vrot.lane.b32.xlu0 %v1152, 64
      %v1195 = vpop.permute.xlu0 %1194
      %1196 = vrot.lane.b32.xlu0 %v1155, 64
      %v1197 = vpop.permute.xlu0 %1196
      %1198 = vrot.lane.b32.xlu0 %v1158, 64
      %v1199 = vpop.permute.xlu0 %1198
      %1200 = vrot.lane.b32.xlu0 %v1161, 64
      %v1201 = vpop.permute.xlu0 %1200
      %1202 = vrot.lane.b32.xlu0 %v1164, 64
      %v1203 = vpop.permute.xlu0 %1202
      %1204 = vrot.lane.b32.xlu0 %v1167, 64
      %v1205 = vpop.permute.xlu0 %1204
      %1206 = vrot.lane.b32.xlu0 %v1170, 64
      %v1207 = vpop.permute.xlu0 %1206
      %1208 = vrot.lane.b32.xlu0 %v1173, 64
      %v1209 = vpop.permute.xlu0 %1208
      %1210 = vrot.lane.b32.xlu0 %v1176, 64
      %v1211 = vpop.permute.xlu0 %1210
      %1212 = vrot.lane.b32.xlu0 %v1179, 64
      %v1213 = vpop.permute.xlu0 %1212
      %1214 = vrot.lane.b32.xlu0 %v1182, 64
      %v1215 = vpop.permute.xlu0 %1214
      %1216 = vrot.lane.b32.xlu0 %v1185, 64
      %v1217 = vpop.permute.xlu0 %1216
      %1219 = vrot.lane.b32.xlu0 %v845, 96
      %v1220 = vpop.permute.xlu0 %1219
      %1221 = vrot.lane.b32.xlu0 %v846, 96
      %v1222 = vpop.permute.xlu0 %1221
      %1223 = vrot.lane.b32.xlu0 %v847, 96
      %v1224 = vpop.permute.xlu0 %1223
      %1225 = vrot.lane.b32.xlu0 %v848, 96
      %v1226 = vpop.permute.xlu0 %1225
      %1227 = vrot.lane.b32.xlu0 %v849, 96
      %v1228 = vpop.permute.xlu0 %1227
      %1229 = vrot.lane.b32.xlu0 %v850, 96
      %v1230 = vpop.permute.xlu0 %1229
      %1231 = vrot.lane.b32.xlu0 %v851, 96
      %v1232 = vpop.permute.xlu0 %1231
      %1233 = vrot.lane.b32.xlu0 %v852, 96
      %v1234 = vpop.permute.xlu0 %1233
      %1235 = vrot.lane.b32.xlu0 %v853, 96
      %v1236 = vpop.permute.xlu0 %1235
      %1237 = vrot.lane.b32.xlu0 %v854, 96
      %v1238 = vpop.permute.xlu0 %1237
      %1239 = vrot.lane.b32.xlu0 %v855, 96
      %v1240 = vpop.permute.xlu0 %1239
      %1241 = vrot.lane.b32.xlu0 %v856, 96
      %v1242 = vpop.permute.xlu0 %1241
      %1243 = vrot.lane.b32.xlu0 %v857, 96
      %v1244 = vpop.permute.xlu0 %1243
      %1245 = vrot.lane.b32.xlu0 %v858, 96
      %v1246 = vpop.permute.xlu0 %1245
      %1247 = vrot.lane.b32.xlu0 %v859, 96
      %v1248 = vpop.permute.xlu0 %1247
      %1249 = vrot.lane.b32.xlu0 %v860, 96
      %v1250 = vpop.permute.xlu0 %1249
      %v1252 = vshrl.u32 %v860, 16
      %v1254 = vshll.u32 %v860, 16
      %v1256 = vrot.slane %v1254, 1
      %v1257 = vor.u32 %v1252, %v1256
      %v1259 = vshll.u32 %v878, 16
      %v1261 = vrot.slane %v1259, 1
      %v1262 = vsel %vm880, %v1257, %v1261
      %v1264 = vrot.slane %v860, 1
      %v1265 = vrot.slane %v878, 1
      %v1266 = vsel %vm1137, %v1264, %v1265
      %1267 = vrot.lane.b32.xlu0 %v1143, 32
      %v1268 = vpop.permute.xlu0 %1267
      %1269 = vrot.lane.b32.xlu0 %v1146, 32
      %v1270 = vpop.permute.xlu0 %1269
      %1271 = vrot.lane.b32.xlu0 %v1149, 32
      %v1272 = vpop.permute.xlu0 %1271
      %1273 = vrot.lane.b32.xlu0 %v1152, 32
      %v1274 = vpop.permute.xlu0 %1273
      %1275 = vrot.lane.b32.xlu0 %v1155, 32
      %v1276 = vpop.permute.xlu0 %1275
      %1277 = vrot.lane.b32.xlu0 %v1158, 32
      %v1278 = vpop.permute.xlu0 %1277
      %1279 = vrot.lane.b32.xlu0 %v1161, 32
      %v1280 = vpop.permute.xlu0 %1279
      %1281 = vrot.lane.b32.xlu0 %v1164, 32
      %v1282 = vpop.permute.xlu0 %1281
      %1283 = vrot.lane.b32.xlu0 %v1167, 32
      %v1284 = vpop.permute.xlu0 %1283
      %1285 = vrot.lane.b32.xlu0 %v1170, 32
      %v1286 = vpop.permute.xlu0 %1285
      %1287 = vrot.lane.b32.xlu0 %v1173, 32
      %v1288 = vpop.permute.xlu0 %1287
      %1289 = vrot.lane.b32.xlu0 %v1176, 32
      %v1290 = vpop.permute.xlu0 %1289
      %1291 = vrot.lane.b32.xlu0 %v1179, 32
      %v1292 = vpop.permute.xlu0 %1291
      %1293 = vrot.lane.b32.xlu0 %v1182, 32
      %v1294 = vpop.permute.xlu0 %1293
      %1295 = vrot.lane.b32.xlu0 %v1185, 32
      %v1296 = vpop.permute.xlu0 %1295
      %1297 = vrot.lane.b32.xlu0 %v1266, 32
      %v1298 = vpop.permute.xlu0 %1297
      %1300 = vrot.lane.b32.xlu0 %v846, 64
      %v1301 = vpop.permute.xlu0 %1300
      %1302 = vrot.lane.b32.xlu0 %v847, 64
      %v1303 = vpop.permute.xlu0 %1302
      %1304 = vrot.lane.b32.xlu0 %v848, 64
      %v1305 = vpop.permute.xlu0 %1304
      %1306 = vrot.lane.b32.xlu0 %v849, 64
      %v1307 = vpop.permute.xlu0 %1306
      %1308 = vrot.lane.b32.xlu0 %v850, 64
      %v1309 = vpop.permute.xlu0 %1308
      %1310 = vrot.lane.b32.xlu0 %v851, 64
      %v1311 = vpop.permute.xlu0 %1310
      %1312 = vrot.lane.b32.xlu0 %v852, 64
      %v1313 = vpop.permute.xlu0 %1312
      %1314 = vrot.lane.b32.xlu0 %v853, 64
      %v1315 = vpop.permute.xlu0 %1314
      %1316 = vrot.lane.b32.xlu0 %v854, 64
      %v1317 = vpop.permute.xlu0 %1316
      %1318 = vrot.lane.b32.xlu0 %v855, 64
      %v1319 = vpop.permute.xlu0 %1318
      %1320 = vrot.lane.b32.xlu0 %v856, 64
      %v1321 = vpop.permute.xlu0 %1320
      %1322 = vrot.lane.b32.xlu0 %v857, 64
      %v1323 = vpop.permute.xlu0 %1322
      %1324 = vrot.lane.b32.xlu0 %v858, 64
      %v1325 = vpop.permute.xlu0 %1324
      %1326 = vrot.lane.b32.xlu0 %v859, 64
      %v1327 = vpop.permute.xlu0 %1326
      %1328 = vrot.lane.b32.xlu0 %v860, 64
      %v1329 = vpop.permute.xlu0 %1328
      %1330 = vrot.lane.b32.xlu0 %v861, 64
      %v1331 = vpop.permute.xlu0 %1330
      %v1333 = vshrl.u32 %v861, 16
      %v1335 = vshll.u32 %v861, 16
      %v1337 = vrot.slane %v1335, 1
      %v1338 = vor.u32 %v1333, %v1337
      %v1340 = vshll.u32 %v879, 16
      %v1342 = vrot.slane %v1340, 1
      %v1343 = vsel %vm880, %v1338, %v1342
      %1344 = vrot.lane.b32.xlu0 %v916, 96
      %v1345 = vpop.permute.xlu0 %1344
      %1346 = vrot.lane.b32.xlu0 %v928, 96
      %v1347 = vpop.permute.xlu0 %1346
      %1348 = vrot.lane.b32.xlu0 %v940, 96
      %v1349 = vpop.permute.xlu0 %1348
      %1350 = vrot.lane.b32.xlu0 %v952, 96
      %v1351 = vpop.permute.xlu0 %1350
      %1352 = vrot.lane.b32.xlu0 %v964, 96
      %v1353 = vpop.permute.xlu0 %1352
      %1354 = vrot.lane.b32.xlu0 %v976, 96
      %v1355 = vpop.permute.xlu0 %1354
      %1356 = vrot.lane.b32.xlu0 %v988, 96
      %v1357 = vpop.permute.xlu0 %1356
      %1358 = vrot.lane.b32.xlu0 %v1000, 96
      %v1359 = vpop.permute.xlu0 %1358
      %1360 = vrot.lane.b32.xlu0 %v1012, 96
      %v1361 = vpop.permute.xlu0 %1360
      %1362 = vrot.lane.b32.xlu0 %v1024, 96
      %v1363 = vpop.permute.xlu0 %1362
      %1364 = vrot.lane.b32.xlu0 %v1036, 96
      %v1365 = vpop.permute.xlu0 %1364
      %1366 = vrot.lane.b32.xlu0 %v1048, 96
      %v1367 = vpop.permute.xlu0 %1366
      %1368 = vrot.lane.b32.xlu0 %v1060, 96
      %v1369 = vpop.permute.xlu0 %1368
      %1370 = vrot.lane.b32.xlu0 %v1072, 96
      %v1371 = vpop.permute.xlu0 %1370
      %1372 = vrot.lane.b32.xlu0 %v1262, 96
      %v1373 = vpop.permute.xlu0 %1372
      %1374 = vrot.lane.b32.xlu0 %v1343, 96
      %v1375 = vpop.permute.xlu0 %1374
      %v1377 = vrot.slane %v861, 1
      %v1378 = vrot.slane %v879, 1
      %v1379 = vsel %vm1137, %v1377, %v1378
      %vm1380 = vcmask 261120
      %v1382 = vsel %vm1380, %v844, %v1074
      %v1384 = vsel %vm1380, %v845, %v1076
      %v1386 = vsel %vm1380, %v846, %v1078
      %v1388 = vsel %vm1380, %v847, %v1080
      %v1390 = vsel %vm1380, %v848, %v1082
      %v1392 = vsel %vm1380, %v849, %v1084
      %v1394 = vsel %vm1380, %v850, %v1086
      %v1396 = vsel %vm1380, %v851, %v1088
      %v1398 = vsel %vm1380, %v852, %v1090
      %v1400 = vsel %vm1380, %v853, %v1092
      %v1402 = vsel %vm1380, %v854, %v1094
      %v1404 = vsel %vm1380, %v855, %v1096
      %v1406 = vsel %vm1380, %v856, %v1098
      %v1408 = vsel %vm1380, %v857, %v1100
      %v1410 = vsel %vm1380, %v858, %v1102
      %v1412 = vsel %vm1380, %v859, %v1104
      %vm1413 = vcmask 523264
      %v1415 = vsel %vm1413, %v1382, %v1187
      %v1417 = vsel %vm1413, %v1384, %v1189
      %v1419 = vsel %vm1413, %v1386, %v1191
      %v1421 = vsel %vm1413, %v1388, %v1193
      %v1423 = vsel %vm1413, %v1390, %v1195
      %v1425 = vsel %vm1413, %v1392, %v1197
      %v1427 = vsel %vm1413, %v1394, %v1199
      %v1429 = vsel %vm1413, %v1396, %v1201
      %v1431 = vsel %vm1413, %v1398, %v1203
      %v1433 = vsel %vm1413, %v1400, %v1205
      %v1435 = vsel %vm1413, %v1402, %v1207
      %v1437 = vsel %vm1413, %v1404, %v1209
      %v1439 = vsel %vm1413, %v1406, %v1211
      %v1441 = vsel %vm1413, %v1408, %v1213
      %v1443 = vsel %vm1413, %v1410, %v1215
      %v1445 = vsel %vm1413, %v1412, %v1217
      %vm1446 = vcmask 785408
      %v1448 = vsel %vm1446, %v1415, %v1220
      %v1451 = vsel %vm1446, %v1417, %v1222
      %v1454 = vsel %vm1446, %v1419, %v1224
      %v1457 = vsel %vm1446, %v1421, %v1226
      %v1460 = vsel %vm1446, %v1423, %v1228
      %v1463 = vsel %vm1446, %v1425, %v1230
      %v1466 = vsel %vm1446, %v1427, %v1232
      %v1469 = vsel %vm1446, %v1429, %v1234
      %v1472 = vsel %vm1446, %v1431, %v1236
      %v1475 = vsel %vm1446, %v1433, %v1238
      %v1478 = vsel %vm1446, %v1435, %v1240
      %v1481 = vsel %vm1446, %v1437, %v1242
      %v1484 = vsel %vm1446, %v1439, %v1244
      %v1487 = vsel %vm1446, %v1441, %v1246
      %v1490 = vsel %vm1446, %v1443, %v1248
      %v1493 = vsel %vm1446, %v1445, %v1250
      %v1497 = vsel %vm1380, %v904, %v1268
      %v1500 = vsel %vm1380, %v916, %v1270
      %v1503 = vsel %vm1380, %v928, %v1272
      %v1506 = vsel %vm1380, %v940, %v1274
      %v1509 = vsel %vm1380, %v952, %v1276
      %v1512 = vsel %vm1380, %v964, %v1278
      %v1515 = vsel %vm1380, %v976, %v1280
      %v1518 = vsel %vm1380, %v988, %v1282
      %v1521 = vsel %vm1380, %v1000, %v1284
      %v1524 = vsel %vm1380, %v1012, %v1286
      %v1527 = vsel %vm1380, %v1024, %v1288
      %v1530 = vsel %vm1380, %v1036, %v1290
      %v1533 = vsel %vm1380, %v1048, %v1292
      %v1536 = vsel %vm1380, %v1060, %v1294
      %v1539 = vsel %vm1380, %v1072, %v1296
      %v1542 = vsel %vm1380, %v1262, %v1298
      %v1544 = vsel %vm1413, %v1497, %v1301
      %v1546 = vsel %vm1413, %v1500, %v1303
      %v1548 = vsel %vm1413, %v1503, %v1305
      %v1550 = vsel %vm1413, %v1506, %v1307
      %v1552 = vsel %vm1413, %v1509, %v1309
      %v1554 = vsel %vm1413, %v1512, %v1311
      %v1556 = vsel %vm1413, %v1515, %v1313
      %v1558 = vsel %vm1413, %v1518, %v1315
      %v1560 = vsel %vm1413, %v1521, %v1317
      %v1562 = vsel %vm1413, %v1524, %v1319
      %v1564 = vsel %vm1413, %v1527, %v1321
      %v1566 = vsel %vm1413, %v1530, %v1323
      %v1568 = vsel %vm1413, %v1533, %v1325
      %v1570 = vsel %vm1413, %v1536, %v1327
      %v1572 = vsel %vm1413, %v1539, %v1329
      %v1574 = vsel %vm1413, %v1542, %v1331
      %v1576 = vsel %vm1446, %v1544, %v1345
      %v1579 = vsel %vm1446, %v1546, %v1347
      %v1582 = vsel %vm1446, %v1548, %v1349
      %v1585 = vsel %vm1446, %v1550, %v1351
      %v1588 = vsel %vm1446, %v1552, %v1353
      %v1591 = vsel %vm1446, %v1554, %v1355
      %v1594 = vsel %vm1446, %v1556, %v1357
      %v1597 = vsel %vm1446, %v1558, %v1359
      %v1600 = vsel %vm1446, %v1560, %v1361
      %v1603 = vsel %vm1446, %v1562, %v1363
      %v1606 = vsel %vm1446, %v1564, %v1365
      %v1609 = vsel %vm1446, %v1566, %v1367
      %v1612 = vsel %vm1446, %v1568, %v1369
      %v1615 = vsel %vm1446, %v1570, %v1371
      %v1618 = vsel %vm1446, %v1572, %v1373
      %v1621 = vsel %vm1446, %v1574, %v1375
      %v1623 = vld [vmem:[%s3] sm:$0xf]
      %v1624 = vld [vmem:[%s3 + $0x4] sm:$0xf]
      %v1625 = vld [vmem:[%s3 + $0x8] sm:$0xf]
      %v1626 = vld [vmem:[%s3 + $0xc] sm:$0xf]
      %v1627 = vld [vmem:[%s3 + $0x10] sm:$0xf]
      %v1628 = vld [vmem:[%s3 + $0x14] sm:$0xf]
      %v1629 = vld [vmem:[%s3 + $0x18] sm:$0xf]
      %v1630 = vld [vmem:[%s3 + $0x1c] sm:$0xf]
      %v1631 = vld [vmem:[%s3 + $0x20] sm:$0xf]
      %v1632 = vld [vmem:[%s3 + $0x24] sm:$0xf]
      %v1633 = vld [vmem:[%s3 + $0x28] sm:$0xf]
      %v1634 = vld [vmem:[%s3 + $0x2c] sm:$0xf]
      %v1635 = vld [vmem:[%s3 + $0x30] sm:$0xf]
      %v1636 = vld [vmem:[%s3 + $0x34] sm:$0xf]
      %v1637 = vld [vmem:[%s3 + $0x38] sm:$0xf]
      %v1638 = vld [vmem:[%s3 + $0x3c] sm:$0xf]
      %v1639 = vld [vmem:[%s3 + $0x40] sm:$0xf]
      %v1640 = vld [vmem:[%s3 + $0x44] sm:$0xf]
      %v1641 = vld [vmem:[%s3 + $0x48] sm:$0xf]
      %v1642 = vld [vmem:[%s3 + $0x4c] sm:$0xf]
      %v1643 = vld [vmem:[%s3 + $0x50] sm:$0xf]
      %v1644 = vld [vmem:[%s3 + $0x54] sm:$0xf]
      %v1645 = vld [vmem:[%s3 + $0x58] sm:$0xf]
      %v1646 = vld [vmem:[%s3 + $0x5c] sm:$0xf]
      %v1647 = vld [vmem:[%s3 + $0x60] sm:$0xf]
      %v1648 = vld [vmem:[%s3 + $0x64] sm:$0xf]
      %v1649 = vld [vmem:[%s3 + $0x68] sm:$0xf]
      %v1650 = vld [vmem:[%s3 + $0x6c] sm:$0xf]
      %v1651 = vld [vmem:[%s3 + $0x70] sm:$0xf]
      %v1652 = vld [vmem:[%s3 + $0x74] sm:$0xf]
      %v1653 = vld [vmem:[%s3 + $0x78] sm:$0xf]
      %v1654 = vld [vmem:[%s3 + $0x7c] sm:$0xf]
      %v1655 = vld [vmem:[%s3 + $0x80] sm:$0xf]
      %v1656 = vld [vmem:[%s3 + $0x84] sm:$0xf]
      %v1657 = vld [vmem:[%s3 + $0x88] sm:$0xf]
      %v1658 = vld [vmem:[%s3 + $0x8c] sm:$0xf]
      %v1695 = vunpack.c.l.b16 %v1623
      %v1696 = vunpack.c.l.b16 %v1624
      %v1697 = vunpack.c.l.b16 %v1625
      %v1698 = vunpack.c.l.b16 %v1626
      %v1699 = vunpack.c.l.b16 %v1627
      %v1700 = vunpack.c.l.b16 %v1628
      %v1701 = vunpack.c.l.b16 %v1629
      %v1702 = vunpack.c.l.b16 %v1630
      %v1703 = vunpack.c.l.b16 %v1631
      %v1704 = vunpack.c.l.b16 %v1632
      %v1705 = vunpack.c.l.b16 %v1633
      %v1706 = vunpack.c.l.b16 %v1634
      %v1707 = vunpack.c.l.b16 %v1635
      %v1708 = vunpack.c.l.b16 %v1636
      %v1709 = vunpack.c.l.b16 %v1637
      %v1710 = vunpack.c.l.b16 %v1638
      %v1711 = vunpack.c.l.b16 %v1639
      %v1712 = vunpack.c.l.b16 %v1640
      %v1713 = vunpack.c.l.b16 %v1641
      %v1714 = vunpack.c.l.b16 %v1642
      %v1715 = vunpack.c.l.b16 %v1643
      %v1716 = vunpack.c.l.b16 %v1644
      %v1717 = vunpack.c.l.b16 %v1645
      %v1718 = vunpack.c.l.b16 %v1646
      %v1719 = vunpack.c.l.b16 %v1647
      %v1720 = vunpack.c.l.b16 %v1648
      %v1721 = vunpack.c.l.b16 %v1649
      %v1722 = vunpack.c.l.b16 %v1650
      %v1723 = vunpack.c.l.b16 %v1651
      %v1724 = vunpack.c.l.b16 %v1652
      %v1725 = vunpack.c.l.b16 %v1653
      %v1726 = vunpack.c.l.b16 %v1654
      %v1727 = vunpack.c.l.b16 %v1655
      %v1728 = vunpack.c.l.b16 %v1656
      %v1729 = vunpack.c.l.b16 %v1657
      %v1730 = vunpack.c.l.b16 %v1658
      %v1731 = vpack.c.b16 %v1696, %v1695
      %v1732 = vpack.c.b16 %v1698, %v1697
      %v1733 = vpack.c.b16 %v1700, %v1699
      %v1734 = vpack.c.b16 %v1702, %v1701
      %v1735 = vpack.c.b16 %v1704, %v1703
      %v1736 = vpack.c.b16 %v1706, %v1705
      %v1737 = vpack.c.b16 %v1708, %v1707
      %v1738 = vpack.c.b16 %v1710, %v1709
      %v1739 = vpack.c.b16 %v1712, %v1711
      %v1740 = vpack.c.b16 %v1714, %v1713
      %v1741 = vpack.c.b16 %v1716, %v1715
      %v1742 = vpack.c.b16 %v1718, %v1717
      %v1743 = vpack.c.b16 %v1720, %v1719
      %v1744 = vpack.c.b16 %v1722, %v1721
      %v1745 = vpack.c.b16 %v1724, %v1723
      %v1746 = vpack.c.b16 %v1726, %v1725
      %v1747 = vpack.c.b16 %v1728, %v1727
      %v1748 = vpack.c.b16 %v1730, %v1729
      %v1768 = vsel %vm1380, %v1146, 0
      %v1771 = vsel %vm1380, %v1149, 0
      %v1774 = vsel %vm1380, %v1152, 0
      %v1777 = vsel %vm1380, %v1155, 0
      %v1780 = vsel %vm1380, %v1158, 0
      %v1783 = vsel %vm1380, %v1161, 0
      %v1786 = vsel %vm1380, %v1164, 0
      %v1789 = vsel %vm1380, %v1167, 0
      %v1792 = vsel %vm1380, %v1170, 0
      %v1795 = vsel %vm1380, %v1173, 0
      %v1798 = vsel %vm1380, %v1176, 0
      %v1801 = vsel %vm1380, %v1179, 0
      %v1804 = vsel %vm1380, %v1182, 0
      %v1807 = vsel %vm1380, %v1185, 0
      %v1810 = vsel %vm1380, %v1266, 0
      %v1813 = vsel %vm1380, %v1379, 0
      %1815 = vmatprep.subr.bf16.mxu0 0
      %1816 = vmatpush1.bf16.msra.mxu0 %v1731
      %1817 = vmatprep.subr.bf16.mxu0 0
      %1818 = vmatpush1.bf16.msra.mxu0 %v1732
      %1819 = vmatprep.subr.bf16.mxu0 0
      %1820 = vmatpush1.bf16.msra.mxu0 %v1733
      %1821 = vmatprep.subr.bf16.mxu0 0
      %1822 = vmatpush1.bf16.msra.mxu0 %v1734
      %1823 = vmatprep.subr.bf16.mxu0 0
      %1824 = vmatpush1.bf16.msra.mxu0 %v1735
      %1825 = vmatprep.subr.bf16.mxu0 0
      %1826 = vmatpush1.bf16.msra.mxu0 %v1736
      %1827 = vmatprep.subr.bf16.mxu0 0
      %1828 = vmatpush1.bf16.msra.mxu0 %v1737
      %1829 = vmatprep.subr.bf16.mxu0 0
      %1830 = vmatpush1.bf16.msra.mxu0 %v1738
      %1831 = vmatprep.subr.bf16.mxu0 0
      %1832 = vmatpush1.bf16.msra.mxu0 %v1739
      %1833 = vmatprep.subr.bf16.mxu0 0
      %1834 = vmatpush1.bf16.msra.mxu0 %v1740
      %1835 = vmatprep.subr.bf16.mxu0 0
      %1836 = vmatpush1.bf16.msra.mxu0 %v1741
      %1837 = vmatprep.subr.bf16.mxu0 0
      %1838 = vmatpush1.bf16.msra.mxu0 %v1742
      %1839 = vmatprep.subr.bf16.mxu0 0
      %1840 = vmatpush1.bf16.msra.mxu0 %v1743
      %1841 = vmatprep.subr.bf16.mxu0 0
      %1842 = vmatpush1.bf16.msra.mxu0 %v1744
      %1843 = vmatprep.subr.bf16.mxu0 0
      %1844 = vmatpush1.bf16.msra.mxu0 %v1745
      %1845 = vmatprep.subr.bf16.mxu0 0
      %1846 = vmatpush1.bf16.msra.mxu0 %v1746
      %1847 = vmatprep.mubr.bf16.mxu0 %v1576
      %1848 = vmatmul.mubr.bf16.gmra.mrb[0].mxu0 %v1448
      %v1849 = vpop.f32.mrb[0].mxu0
      %v1850 = vadd.f32 0.0, %v1849
      %v1851 = vpop.f32.mrb[0].mxu0
      %v1852 = vpop.f32.mrb[0].mxu0
      %v1853 = vadd.f32 0.0, %v1852
      %v1854 = vpop.f32.mrb[0].mxu0
      %1855 = vmatprep.mubr.bf16.mxu0 %v1579
      %1856 = vmatmul.mubr.bf16.gmra.mrb[0].mxu0 %v1451
      %v1857 = vpop.f32.mrb[0].mxu0
      %v1858 = vadd.f32 0.0, %v1857
      %v1859 = vpop.f32.mrb[0].mxu0
      %v1860 = vpop.f32.mrb[0].mxu0
      %v1861 = vadd.f32 0.0, %v1860
      %v1862 = vpop.f32.mrb[0].mxu0
      %1863 = vmatprep.mubr.bf16.mxu0 %v1582
      %1864 = vmatmul.mubr.bf16.gmra.mrb[0].mxu0 %v1454
      %v1865 = vpop.f32.mrb[0].mxu0
      %v1866 = vadd.f32 0.0, %v1865
      %v1867 = vpop.f32.mrb[0].mxu0
      %v1868 = vpop.f32.mrb[0].mxu0
      %v1869 = vadd.f32 0.0, %v1868
      %v1870 = vpop.f32.mrb[0].mxu0
      %1871 = vmatprep.mubr.bf16.mxu0 %v1585
      %1872 = vmatmul.mubr.bf16.gmra.mrb[0].mxu0 %v1457
      %v1873 = vpop.f32.mrb[0].mxu0
      %v1874 = vadd.f32 0.0, %v1873
      %v1875 = vpop.f32.mrb[0].mxu0
      %v1876 = vpop.f32.mrb[0].mxu0
      %v1877 = vadd.f32 0.0, %v1876
      %v1878 = vpop.f32.mrb[0].mxu0
      %1879 = vmatprep.mubr.bf16.mxu0 %v1588
      %1880 = vmatmul.mubr.bf16.gmra.mrb[0].mxu0 %v1460
      %v1881 = vpop.f32.mrb[0].mxu0
      %v1882 = vadd.f32 0.0, %v1881
      %v1883 = vpop.f32.mrb[0].mxu0
      %v1884 = vpop.f32.mrb[0].mxu0
      %v1885 = vadd.f32 0.0, %v1884
      %v1886 = vpop.f32.mrb[0].mxu0
      %1887 = vmatprep.mubr.bf16.mxu0 %v1591
      %1888 = vmatmul.mubr.bf16.gmra.mrb[0].mxu0 %v1463
      %v1889 = vpop.f32.mrb[0].mxu0
      %v1890 = vadd.f32 0.0, %v1889
      %v1891 = vpop.f32.mrb[0].mxu0
      %v1892 = vpop.f32.mrb[0].mxu0
      %v1893 = vadd.f32 0.0, %v1892
      %v1894 = vpop.f32.mrb[0].mxu0
      %1895 = vmatprep.mubr.bf16.mxu0 %v1594
      %1896 = vmatmul.mubr.bf16.gmra.mrb[0].mxu0 %v1466
      %v1897 = vpop.f32.mrb[0].mxu0
      %v1898 = vadd.f32 0.0, %v1897
      %v1899 = vpop.f32.mrb[0].mxu0
      %v1900 = vpop.f32.mrb[0].mxu0
      %v1901 = vadd.f32 0.0, %v1900
      %v1902 = vpop.f32.mrb[0].mxu0
      %1903 = vmatprep.mubr.bf16.mxu0 %v1597
      %1904 = vmatmul.mubr.bf16.gmra.mrb[0].mxu0 %v1469
      %v1905 = vpop.f32.mrb[0].mxu0
      %v1906 = vadd.f32 0.0, %v1905
      %v1907 = vpop.f32.mrb[0].mxu0
      %v1908 = vpop.f32.mrb[0].mxu0
      %v1909 = vadd.f32 0.0, %v1908
      %v1910 = vpop.f32.mrb[0].mxu0
      %1911 = vmatprep.mubr.bf16.mxu0 %v1600
      %1912 = vmatmul.mubr.bf16.gmra.mrb[0].mxu0 %v1472
      %v1913 = vpop.f32.mrb[0].mxu0
      %v1914 = vadd.f32 0.0, %v1913
      %v1915 = vpop.f32.mrb[0].mxu0
      %v1916 = vpop.f32.mrb[0].mxu0
      %v1917 = vadd.f32 0.0, %v1916
      %v1918 = vpop.f32.mrb[0].mxu0
      %1919 = vmatprep.mubr.bf16.mxu0 %v1603
      %1920 = vmatmul.mubr.bf16.gmra.mrb[0].mxu0 %v1475
      %v1921 = vpop.f32.mrb[0].mxu0
      %v1922 = vadd.f32 0.0, %v1921
      %v1923 = vpop.f32.mrb[0].mxu0
      %v1924 = vpop.f32.mrb[0].mxu0
      %v1925 = vadd.f32 0.0, %v1924
      %v1926 = vpop.f32.mrb[0].mxu0
      %1927 = vmatprep.mubr.bf16.mxu0 %v1606
      %1928 = vmatmul.mubr.bf16.gmra.mrb[0].mxu0 %v1478
      %v1929 = vpop.f32.mrb[0].mxu0
      %v1930 = vadd.f32 0.0, %v1929
      %v1931 = vpop.f32.mrb[0].mxu0
      %v1932 = vpop.f32.mrb[0].mxu0
      %v1933 = vadd.f32 0.0, %v1932
      %v1934 = vpop.f32.mrb[0].mxu0
      %1935 = vmatprep.mubr.bf16.mxu0 %v1609
      %1936 = vmatmul.mubr.bf16.gmra.mrb[0].mxu0 %v1481
      %v1937 = vpop.f32.mrb[0].mxu0
      %v1938 = vadd.f32 0.0, %v1937
      %v1939 = vpop.f32.mrb[0].mxu0
      %v1940 = vpop.f32.mrb[0].mxu0
      %v1941 = vadd.f32 0.0, %v1940
      %v1942 = vpop.f32.mrb[0].mxu0
      %1943 = vmatprep.mubr.bf16.mxu0 %v1612
      %1944 = vmatmul.mubr.bf16.gmra.mrb[0].mxu0 %v1484
      %v1945 = vpop.f32.mrb[0].mxu0
      %v1946 = vadd.f32 0.0, %v1945
      %v1947 = vpop.f32.mrb[0].mxu0
      %v1948 = vpop.f32.mrb[0].mxu0
      %v1949 = vadd.f32 0.0, %v1948
      %v1950 = vpop.f32.mrb[0].mxu0
      %1951 = vmatprep.mubr.bf16.mxu0 %v1615
      %1952 = vmatmul.mubr.bf16.gmra.mrb[0].mxu0 %v1487
      %v1953 = vpop.f32.mrb[0].mxu0
      %v1954 = vadd.f32 0.0, %v1953
      %v1955 = vpop.f32.mrb[0].mxu0
      %v1956 = vpop.f32.mrb[0].mxu0
      %v1957 = vadd.f32 0.0, %v1956
      %v1958 = vpop.f32.mrb[0].mxu0
      %1959 = vmatprep.mubr.bf16.mxu0 %v1618
      %1960 = vmatmul.mubr.bf16.gmra.mrb[0].mxu0 %v1490
      %v1961 = vpop.f32.mrb[0].mxu0
      %v1962 = vadd.f32 0.0, %v1961
      %v1963 = vpop.f32.mrb[0].mxu0
      %v1964 = vpop.f32.mrb[0].mxu0
      %v1965 = vadd.f32 0.0, %v1964
      %v1966 = vpop.f32.mrb[0].mxu0
      %1967 = vmatprep.mubr.bf16.mxu0 %v1621
      %1968 = vmatmul.mubr.bf16.gmra.mrb[0].mxu0 %v1493
      %v1969 = vpop.f32.mrb[0].mxu0
      %v1970 = vadd.f32 0.0, %v1969
      %v1971 = vpop.f32.mrb[0].mxu0
      %v1972 = vpop.f32.mrb[0].mxu0
      %v1973 = vadd.f32 0.0, %v1972
      %v1974 = vpop.f32.mrb[0].mxu0
      %1975 = vdwg.mxu0
      %1976 = vmatprep.subr.bf16.mxu0 0
      %1977 = vmatpush1.bf16.msra.mxu0 %v1747
      %1978 = vmatprep.subr.bf16.mxu0 0
      %1979 = vmatpush1.bf16.msra.mxu0 %v1748
      %1980 = vmatprep.subr.bf16.mxu0 0
      %1981 = vmatpush1.bf16.msra.mxu0 0
      %1982 = vmatprep.subr.bf16.mxu0 0
      %1983 = vmatpush1.bf16.msra.mxu0 0
      %1984 = vmatprep.subr.bf16.mxu0 0
      %1985 = vmatpush1.bf16.msra.mxu0 0
      %1986 = vmatprep.subr.bf16.mxu0 0
      %1987 = vmatpush1.bf16.msra.mxu0 0
      %1988 = vmatprep.subr.bf16.mxu0 0
      %1989 = vmatpush1.bf16.msra.mxu0 0
      %1990 = vmatprep.subr.bf16.mxu0 0
      %1991 = vmatpush1.bf16.msra.mxu0 0
      %1992 = vmatprep.subr.bf16.mxu0 0
      %1993 = vmatpush1.bf16.msra.mxu0 0
      %1994 = vmatprep.subr.bf16.mxu0 0
      %1995 = vmatpush1.bf16.msra.mxu0 0
      %1996 = vmatprep.subr.bf16.mxu0 0
      %1997 = vmatpush1.bf16.msra.mxu0 0
      %1998 = vmatprep.subr.bf16.mxu0 0
      %1999 = vmatpush1.bf16.msra.mxu0 0
      %2000 = vmatprep.subr.bf16.mxu0 0
      %2001 = vmatpush1.bf16.msra.mxu0 0
      %2002 = vmatprep.subr.bf16.mxu0 0
      %2003 = vmatpush1.bf16.msra.mxu0 0
      %2004 = vmatprep.subr.bf16.mxu0 0
      %2005 = vmatpush1.bf16.msra.mxu0 0
      %2006 = vmatprep.subr.bf16.mxu0 0
      %2007 = vmatpush1.bf16.msra.mxu0 0
      %2008 = vmatprep.mubr.bf16.mxu0 0
      %2009 = vmatmul.mubr.bf16.gmra.mrb[0].mxu0 %v1768
      %v2010 = vpop.f32.mrb[0].mxu0
      %v2011 = vadd.f32 %v1850, %v2010
      %v2012 = vpop.f32.mrb[0].mxu0
      %v2013 = vpop.f32.mrb[0].mxu0
      %v2014 = vadd.f32 %v1853, %v2013
      %v2015 = vpop.f32.mrb[0].mxu0
      %2016 = vmatprep.mubr.bf16.mxu0 0
      %2017 = vmatmul.mubr.bf16.gmra.mrb[0].mxu0 %v1771
      %v2018 = vpop.f32.mrb[0].mxu0
      %v2019 = vadd.f32 %v1858, %v2018
      %v2020 = vpop.f32.mrb[0].mxu0
      %v2021 = vpop.f32.mrb[0].mxu0
      %v2022 = vadd.f32 %v1861, %v2021
      %v2023 = vpop.f32.mrb[0].mxu0
      %2024 = vmatprep.mubr.bf16.mxu0 0
      %2025 = vmatmul.mubr.bf16.gmra.mrb[0].mxu0 %v1774
      %v2026 = vpop.f32.mrb[0].mxu0
      %v2027 = vadd.f32 %v1866, %v2026
      %v2028 = vpop.f32.mrb[0].mxu0
      %v2029 = vpop.f32.mrb[0].mxu0
      %v2030 = vadd.f32 %v1869, %v2029
      %v2031 = vpop.f32.mrb[0].mxu0
      %2032 = vmatprep.mubr.bf16.mxu0 0
      %2033 = vmatmul.mubr.bf16.gmra.mrb[0].mxu0 %v1777
      %v2034 = vpop.f32.mrb[0].mxu0
      %v2035 = vadd.f32 %v1874, %v2034
      %v2036 = vpop.f32.mrb[0].mxu0
      %v2037 = vpop.f32.mrb[0].mxu0
      %v2038 = vadd.f32 %v1877, %v2037
      %v2039 = vpop.f32.mrb[0].mxu0
      %2040 = vmatprep.mubr.bf16.mxu0 0
      %2041 = vmatmul.mubr.bf16.gmra.mrb[0].mxu0 %v1780
      %v2042 = vpop.f32.mrb[0].mxu0
      %v2043 = vadd.f32 %v1882, %v2042
      %v2044 = vpop.f32.mrb[0].mxu0
      %v2045 = vpop.f32.mrb[0].mxu0
      %v2046 = vadd.f32 %v1885, %v2045
      %v2047 = vpop.f32.mrb[0].mxu0
      %2048 = vmatprep.mubr.bf16.mxu0 0
      %2049 = vmatmul.mubr.bf16.gmra.mrb[0].mxu0 %v1783
      %v2050 = vpop.f32.mrb[0].mxu0
      %v2051 = vadd.f32 %v1890, %v2050
      %v2052 = vpop.f32.mrb[0].mxu0
      %v2053 = vpop.f32.mrb[0].mxu0
      %v2054 = vadd.f32 %v1893, %v2053
      %v2055 = vpop.f32.mrb[0].mxu0
      %2056 = vmatprep.mubr.bf16.mxu0 0
      %2057 = vmatmul.mubr.bf16.gmra.mrb[0].mxu0 %v1786
      %v2058 = vpop.f32.mrb[0].mxu0
      %v2059 = vadd.f32 %v1898, %v2058
      %v2060 = vpop.f32.mrb[0].mxu0
      %v2061 = vpop.f32.mrb[0].mxu0
      %v2062 = vadd.f32 %v1901, %v2061
      %v2063 = vpop.f32.mrb[0].mxu0
      %2064 = vmatprep.mubr.bf16.mxu0 0
      %2065 = vmatmul.mubr.bf16.gmra.mrb[0].mxu0 %v1789
      %v2066 = vpop.f32.mrb[0].mxu0
      %v2067 = vadd.f32 %v1906, %v2066
      %v2068 = vpop.f32.mrb[0].mxu0
      %v2069 = vpop.f32.mrb[0].mxu0
      %v2070 = vadd.f32 %v1909, %v2069
      %v2071 = vpop.f32.mrb[0].mxu0
      %2072 = vmatprep.mubr.bf16.mxu0 0
      %2073 = vmatmul.mubr.bf16.gmra.mrb[0].mxu0 %v1792
      %v2074 = vpop.f32.mrb[0].mxu0
      %v2075 = vadd.f32 %v1914, %v2074
      %v2076 = vpop.f32.mrb[0].mxu0
      %v2077 = vpop.f32.mrb[0].mxu0
      %v2078 = vadd.f32 %v1917, %v2077
      %v2079 = vpop.f32.mrb[0].mxu0
      %2080 = vmatprep.mubr.bf16.mxu0 0
      %2081 = vmatmul.mubr.bf16.gmra.mrb[0].mxu0 %v1795
      %v2082 = vpop.f32.mrb[0].mxu0
      %v2083 = vadd.f32 %v1922, %v2082
      %v2084 = vpop.f32.mrb[0].mxu0
      %v2085 = vpop.f32.mrb[0].mxu0
      %v2086 = vadd.f32 %v1925, %v2085
      %v2087 = vpop.f32.mrb[0].mxu0
      %2088 = vmatprep.mubr.bf16.mxu0 0
      %2089 = vmatmul.mubr.bf16.gmra.mrb[0].mxu0 %v1798
      %v2090 = vpop.f32.mrb[0].mxu0
      %v2091 = vadd.f32 %v1930, %v2090
      %v2092 = vpop.f32.mrb[0].mxu0
      %v2093 = vpop.f32.mrb[0].mxu0
      %v2094 = vadd.f32 %v1933, %v2093
      %v2095 = vpop.f32.mrb[0].mxu0
      %2096 = vmatprep.mubr.bf16.mxu0 0
      %2097 = vmatmul.mubr.bf16.gmra.mrb[0].mxu0 %v1801
      %v2098 = vpop.f32.mrb[0].mxu0
      %v2099 = vadd.f32 %v1938, %v2098
      %v2100 = vpop.f32.mrb[0].mxu0
      %v2101 = vpop.f32.mrb[0].mxu0
      %v2102 = vadd.f32 %v1941, %v2101
      %v2103 = vpop.f32.mrb[0].mxu0
      %2104 = vmatprep.mubr.bf16.mxu0 0
      %2105 = vmatmul.mubr.bf16.gmra.mrb[0].mxu0 %v1804
      %v2106 = vpop.f32.mrb[0].mxu0
      %v2107 = vadd.f32 %v1946, %v2106
      %v2108 = vpop.f32.mrb[0].mxu0
      %v2109 = vpop.f32.mrb[0].mxu0
      %v2110 = vadd.f32 %v1949, %v2109
      %v2111 = vpop.f32.mrb[0].mxu0
      %2112 = vmatprep.mubr.bf16.mxu0 0
      %2113 = vmatmul.mubr.bf16.gmra.mrb[0].mxu0 %v1807
      %v2114 = vpop.f32.mrb[0].mxu0
      %v2115 = vadd.f32 %v1954, %v2114
      %v2116 = vpop.f32.mrb[0].mxu0
      %v2117 = vpop.f32.mrb[0].mxu0
      %v2118 = vadd.f32 %v1957, %v2117
      %v2119 = vpop.f32.mrb[0].mxu0
      %2120 = vmatprep.mubr.bf16.mxu0 0
      %2121 = vmatmul.mubr.bf16.gmra.mrb[0].mxu0 %v1810
      %v2122 = vpop.f32.mrb[0].mxu0
      %v2123 = vadd.f32 %v1962, %v2122
      %v2124 = vpop.f32.mrb[0].mxu0
      %v2125 = vpop.f32.mrb[0].mxu0
      %v2126 = vadd.f32 %v1965, %v2125
      %v2127 = vpop.f32.mrb[0].mxu0
      %2128 = vmatprep.mubr.bf16.mxu0 0
      %2129 = vmatmul.mubr.bf16.gmra.mrb[0].mxu0 %v1813
      %v2130 = vpop.f32.mrb[0].mxu0
      %v2131 = vadd.f32 %v1970, %v2130
      %v2132 = vpop.f32.mrb[0].mxu0
      %v2133 = vpop.f32.mrb[0].mxu0
      %v2134 = vadd.f32 %v1973, %v2133
      %v2135 = vpop.f32.mrb[0].mxu0
      %2136 = vdwg.mxu0
      %v2137 = vpack.c.bf16 %v2014, %v2011
      %v2138 = vpack.c.bf16 %v2022, %v2019
      %v2139 = vpack.c.bf16 %v2030, %v2027
      %v2140 = vpack.c.bf16 %v2038, %v2035
      %v2141 = vpack.c.bf16 %v2046, %v2043
      %v2142 = vpack.c.bf16 %v2054, %v2051
      %v2143 = vpack.c.bf16 %v2062, %v2059
      %v2144 = vpack.c.bf16 %v2070, %v2067
      %v2145 = vpack.c.bf16 %v2078, %v2075
      %v2146 = vpack.c.bf16 %v2086, %v2083
      %v2147 = vpack.c.bf16 %v2094, %v2091
      %v2148 = vpack.c.bf16 %v2102, %v2099
      %v2149 = vpack.c.bf16 %v2110, %v2107
      %v2150 = vpack.c.bf16 %v2118, %v2115
      %v2151 = vpack.c.bf16 %v2126, %v2123
      %v2152 = vpack.c.bf16 %v2134, %v2131
      %v2169 = vunpack.c.l.b16 %v2137
      %v2170 = vunpack.c.h.b16 %v2137
      %v2171 = vunpack.c.l.b16 %v2138
      %v2172 = vunpack.c.h.b16 %v2138
      %v2173 = vunpack.c.l.b16 %v2139
      %v2174 = vunpack.c.h.b16 %v2139
      %v2175 = vunpack.c.l.b16 %v2140
      %v2176 = vunpack.c.h.b16 %v2140
      %v2177 = vunpack.c.l.b16 %v2141
      %v2178 = vunpack.c.h.b16 %v2141
      %v2179 = vunpack.c.l.b16 %v2142
      %v2180 = vunpack.c.h.b16 %v2142
      %v2181 = vunpack.c.l.b16 %v2143
      %v2182 = vunpack.c.h.b16 %v2143
      %v2183 = vunpack.c.l.b16 %v2144
      %v2184 = vunpack.c.h.b16 %v2144
      %v2185 = vunpack.c.l.b16 %v2145
      %v2186 = vunpack.c.h.b16 %v2145
      %v2187 = vunpack.c.l.b16 %v2146
      %v2188 = vunpack.c.h.b16 %v2146
      %v2189 = vunpack.c.l.b16 %v2147
      %v2190 = vunpack.c.h.b16 %v2147
      %v2191 = vunpack.c.l.b16 %v2148
      %v2192 = vunpack.c.h.b16 %v2148
      %v2193 = vunpack.c.l.b16 %v2149
      %v2194 = vunpack.c.h.b16 %v2149
      %v2195 = vunpack.c.l.b16 %v2150
      %v2196 = vunpack.c.h.b16 %v2150
      %v2197 = vunpack.c.l.b16 %v2151
      %v2198 = vunpack.c.h.b16 %v2151
      %v2199 = vunpack.c.l.b16 %v2152
      %v2200 = vunpack.c.h.b16 %v2152
      %v2201 = vpack.c.b16 %v2169, %v2169
      %v2202 = vpack.c.b16 %v2170, %v2170
      %v2203 = vpack.c.b16 %v2171, %v2171
      %v2204 = vpack.c.b16 %v2172, %v2172
      %v2205 = vpack.c.b16 %v2173, %v2173
      %v2206 = vpack.c.b16 %v2174, %v2174
      %v2207 = vpack.c.b16 %v2175, %v2175
      %v2208 = vpack.c.b16 %v2176, %v2176
      %v2209 = vpack.c.b16 %v2177, %v2177
      %v2210 = vpack.c.b16 %v2178, %v2178
      %v2211 = vpack.c.b16 %v2179, %v2179
      %v2212 = vpack.c.b16 %v2180, %v2180
      %v2213 = vpack.c.b16 %v2181, %v2181
      %v2214 = vpack.c.b16 %v2182, %v2182
      %v2215 = vpack.c.b16 %v2183, %v2183
      %v2216 = vpack.c.b16 %v2184, %v2184
      %v2217 = vpack.c.b16 %v2185, %v2185
      %v2218 = vpack.c.b16 %v2186, %v2186
      %v2219 = vpack.c.b16 %v2187, %v2187
      %v2220 = vpack.c.b16 %v2188, %v2188
      %v2221 = vpack.c.b16 %v2189, %v2189
      %v2222 = vpack.c.b16 %v2190, %v2190
      %v2223 = vpack.c.b16 %v2191, %v2191
      %v2224 = vpack.c.b16 %v2192, %v2192
      %v2225 = vpack.c.b16 %v2193, %v2193
      %v2226 = vpack.c.b16 %v2194, %v2194
      %v2227 = vpack.c.b16 %v2195, %v2195
      %v2228 = vpack.c.b16 %v2196, %v2196
      %v2229 = vpack.c.b16 %v2197, %v2197
      %v2230 = vpack.c.b16 %v2198, %v2198
      %v2231 = vpack.c.b16 %v2199, %v2199
      %v2232 = vpack.c.b16 %v2200, %v2200
      %vm2265 = vcmask 257024
      %2266 = vst.msk [vmem:[%s451] sm:$0xf] %vm2265, %v2201
      %2267 = vst.msk [vmem:[%s451 + $0x4] sm:$0xf] %vm2265, %v2202
      %2268 = vst.msk [vmem:[%s451 + $0x8] sm:$0xf] %vm2265, %v2203
      %2269 = vst.msk [vmem:[%s451 + $0xc] sm:$0xf] %vm2265, %v2204
      %2270 = vst.msk [vmem:[%s451 + $0x10] sm:$0xf] %vm2265, %v2205
      %2271 = vst.msk [vmem:[%s451 + $0x14] sm:$0xf] %vm2265, %v2206
      %2272 = vst.msk [vmem:[%s451 + $0x18] sm:$0xf] %vm2265, %v2207
      %2273 = vst.msk [vmem:[%s451 + $0x1c] sm:$0xf] %vm2265, %v2208
      %2274 = vst.msk [vmem:[%s451 + $0x20] sm:$0xf] %vm2265, %v2209
      %2275 = vst.msk [vmem:[%s451 + $0x24] sm:$0xf] %vm2265, %v2210
      %2276 = vst.msk [vmem:[%s451 + $0x28] sm:$0xf] %vm2265, %v2211
      %2277 = vst.msk [vmem:[%s451 + $0x2c] sm:$0xf] %vm2265, %v2212
      %2278 = vst.msk [vmem:[%s451 + $0x30] sm:$0xf] %vm2265, %v2213
      %2279 = vst.msk [vmem:[%s451 + $0x34] sm:$0xf] %vm2265, %v2214
      %2280 = vst.msk [vmem:[%s451 + $0x38] sm:$0xf] %vm2265, %v2215
      %2281 = vst.msk [vmem:[%s451 + $0x3c] sm:$0xf] %vm2265, %v2216
      %2282 = vst.msk [vmem:[%s451 + $0x40] sm:$0xf] %vm2265, %v2217
      %2283 = vst.msk [vmem:[%s451 + $0x44] sm:$0xf] %vm2265, %v2218
      %2284 = vst.msk [vmem:[%s451 + $0x48] sm:$0xf] %vm2265, %v2219
      %2285 = vst.msk [vmem:[%s451 + $0x4c] sm:$0xf] %vm2265, %v2220
      %2286 = vst.msk [vmem:[%s451 + $0x50] sm:$0xf] %vm2265, %v2221
      %2287 = vst.msk [vmem:[%s451 + $0x54] sm:$0xf] %vm2265, %v2222
      %2288 = vst.msk [vmem:[%s451 + $0x58] sm:$0xf] %vm2265, %v2223
      %2289 = vst.msk [vmem:[%s451 + $0x5c] sm:$0xf] %vm2265, %v2224
      %2290 = vst.msk [vmem:[%s451 + $0x60] sm:$0xf] %vm2265, %v2225
      %2291 = vst.msk [vmem:[%s451 + $0x64] sm:$0xf] %vm2265, %v2226
      %2292 = vst.msk [vmem:[%s451 + $0x68] sm:$0xf] %vm2265, %v2227
      %2293 = vst.msk [vmem:[%s451 + $0x6c] sm:$0xf] %vm2265, %v2228
      %2294 = vst.msk [vmem:[%s451 + $0x70] sm:$0xf] %vm2265, %v2229
      %2295 = vst.msk [vmem:[%s451 + $0x74] sm:$0xf] %vm2265, %v2230
      %2296 = vst.msk [vmem:[%s451 + $0x78] sm:$0xf] %vm2265, %v2231
      %2297 = vst.msk [vmem:[%s451 + $0x7c] sm:$0xf] %vm2265, %v2232
      %v2298 = vsel %vm1380, %v2011, 0.0
      %v2299 = vsel %vm1380, %v2014, 0.0
      %v2300 = vadd.f32 %v2298, %v2299
      %v2301 = vsel %vm1380, %v2019, 0.0
      %v2302 = vadd.f32 %v2300, %v2301
      %v2303 = vsel %vm1380, %v2022, 0.0
      %v2304 = vadd.f32 %v2302, %v2303
      %v2305 = vsel %vm1380, %v2027, 0.0
      %v2306 = vadd.f32 %v2304, %v2305
      %v2307 = vsel %vm1380, %v2030, 0.0
      %v2308 = vadd.f32 %v2306, %v2307
      %v2309 = vsel %vm1380, %v2035, 0.0
      %v2310 = vadd.f32 %v2308, %v2309
      %v2311 = vsel %vm1380, %v2038, 0.0
      %v2312 = vadd.f32 %v2310, %v2311
      %v2313 = vsel %vm1380, %v2043, 0.0
      %v2314 = vadd.f32 %v2312, %v2313
      %v2315 = vsel %vm1380, %v2046, 0.0
      %v2316 = vadd.f32 %v2314, %v2315
      %v2317 = vsel %vm1380, %v2051, 0.0
      %v2318 = vadd.f32 %v2316, %v2317
      %v2319 = vsel %vm1380, %v2054, 0.0
      %v2320 = vadd.f32 %v2318, %v2319
      %v2321 = vsel %vm1380, %v2059, 0.0
      %v2322 = vadd.f32 %v2320, %v2321
      %v2323 = vsel %vm1380, %v2062, 0.0
      %v2324 = vadd.f32 %v2322, %v2323
      %v2325 = vsel %vm1380, %v2067, 0.0
      %v2326 = vadd.f32 %v2324, %v2325
      %v2327 = vsel %vm1380, %v2070, 0.0
      %v2328 = vadd.f32 %v2326, %v2327
      %v2329 = vsel %vm1380, %v2075, 0.0
      %v2330 = vadd.f32 %v2328, %v2329
      %v2331 = vsel %vm1380, %v2078, 0.0
      %v2332 = vadd.f32 %v2330, %v2331
      %v2333 = vsel %vm1380, %v2083, 0.0
      %v2334 = vadd.f32 %v2332, %v2333
      %v2335 = vsel %vm1380, %v2086, 0.0
      %v2336 = vadd.f32 %v2334, %v2335
      %v2337 = vsel %vm1380, %v2091, 0.0
      %v2338 = vadd.f32 %v2336, %v2337
      %v2339 = vsel %vm1380, %v2094, 0.0
      %v2340 = vadd.f32 %v2338, %v2339
      %v2341 = vsel %vm1380, %v2099, 0.0
      %v2342 = vadd.f32 %v2340, %v2341
      %v2343 = vsel %vm1380, %v2102, 0.0
      %v2344 = vadd.f32 %v2342, %v2343
      %v2345 = vsel %vm1380, %v2107, 0.0
      %v2346 = vadd.f32 %v2344, %v2345
      %v2347 = vsel %vm1380, %v2110, 0.0
      %v2348 = vadd.f32 %v2346, %v2347
      %v2349 = vsel %vm1380, %v2115, 0.0
      %v2350 = vadd.f32 %v2348, %v2349
      %v2351 = vsel %vm1380, %v2118, 0.0
      %v2352 = vadd.f32 %v2350, %v2351
      %v2353 = vsel %vm1380, %v2123, 0.0
      %v2354 = vadd.f32 %v2352, %v2353
      %v2355 = vsel %vm1380, %v2126, 0.0
      %v2356 = vadd.f32 %v2354, %v2355
      %v2357 = vsel %vm1380, %v2131, 0.0
      %v2358 = vadd.f32 %v2356, %v2357
      %v2359 = vsel %vm1380, %v2134, 0.0
      %v2360 = vadd.f32 %v2358, %v2359
      %v2361 = vrot.slane %v2360, 4
      %v2362 = vadd.f32 %v2360, %v2361
      %v2363 = vrot.slane %v2362, 2
      %v2364 = vadd.f32 %v2362, %v2363
      %v2365 = vrot.slane %v2364, 1
      %v2366 = vadd.f32 %v2364, %v2365
      %v2367 = vmul.f32 %v2011, %v2011
      %v2368 = vmul.f32 %v2014, %v2014
      %v2369 = vmul.f32 %v2019, %v2019
      %v2370 = vmul.f32 %v2022, %v2022
      %v2371 = vmul.f32 %v2027, %v2027
      %v2372 = vmul.f32 %v2030, %v2030
      %v2373 = vmul.f32 %v2035, %v2035
      %v2374 = vmul.f32 %v2038, %v2038
      %v2375 = vmul.f32 %v2043, %v2043
      %v2376 = vmul.f32 %v2046, %v2046
      %v2377 = vmul.f32 %v2051, %v2051
      %v2378 = vmul.f32 %v2054, %v2054
      %v2379 = vmul.f32 %v2059, %v2059
      %v2380 = vmul.f32 %v2062, %v2062
      %v2381 = vmul.f32 %v2067, %v2067
      %v2382 = vmul.f32 %v2070, %v2070
      %v2383 = vmul.f32 %v2075, %v2075
      %v2384 = vmul.f32 %v2078, %v2078
      %v2385 = vmul.f32 %v2083, %v2083
      %v2386 = vmul.f32 %v2086, %v2086
      %v2387 = vmul.f32 %v2091, %v2091
      %v2388 = vmul.f32 %v2094, %v2094
      %v2389 = vmul.f32 %v2099, %v2099
      %v2390 = vmul.f32 %v2102, %v2102
      %v2391 = vmul.f32 %v2107, %v2107
      %v2392 = vmul.f32 %v2110, %v2110
      %v2393 = vmul.f32 %v2115, %v2115
      %v2394 = vmul.f32 %v2118, %v2118
      %v2395 = vmul.f32 %v2123, %v2123
      %v2396 = vmul.f32 %v2126, %v2126
      %v2397 = vmul.f32 %v2131, %v2131
      %v2398 = vmul.f32 %v2134, %v2134
      %v2399 = vsel %vm1380, %v2367, 0.0
      %v2400 = vsel %vm1380, %v2368, 0.0
      %v2401 = vadd.f32 %v2399, %v2400
      %v2402 = vsel %vm1380, %v2369, 0.0
      %v2403 = vadd.f32 %v2401, %v2402
      %v2404 = vsel %vm1380, %v2370, 0.0
      %v2405 = vadd.f32 %v2403, %v2404
      %v2406 = vsel %vm1380, %v2371, 0.0
      %v2407 = vadd.f32 %v2405, %v2406
      %v2408 = vsel %vm1380, %v2372, 0.0
      %v2409 = vadd.f32 %v2407, %v2408
      %v2410 = vsel %vm1380, %v2373, 0.0
      %v2411 = vadd.f32 %v2409, %v2410
      %v2412 = vsel %vm1380, %v2374, 0.0
      %v2413 = vadd.f32 %v2411, %v2412
      %v2414 = vsel %vm1380, %v2375, 0.0
      %v2415 = vadd.f32 %v2413, %v2414
      %v2416 = vsel %vm1380, %v2376, 0.0
      %v2417 = vadd.f32 %v2415, %v2416
      %v2418 = vsel %vm1380, %v2377, 0.0
      %v2419 = vadd.f32 %v2417, %v2418
      %v2420 = vsel %vm1380, %v2378, 0.0
      %v2421 = vadd.f32 %v2419, %v2420
      %v2422 = vsel %vm1380, %v2379, 0.0
      %v2423 = vadd.f32 %v2421, %v2422
      %v2424 = vsel %vm1380, %v2380, 0.0
      %v2425 = vadd.f32 %v2423, %v2424
      %v2426 = vsel %vm1380, %v2381, 0.0
      %v2427 = vadd.f32 %v2425, %v2426
      %v2428 = vsel %vm1380, %v2382, 0.0
      %v2429 = vadd.f32 %v2427, %v2428
      %v2430 = vsel %vm1380, %v2383, 0.0
      %v2431 = vadd.f32 %v2429, %v2430
      %v2432 = vsel %vm1380, %v2384, 0.0
      %v2433 = vadd.f32 %v2431, %v2432
      %v2434 = vsel %vm1380, %v2385, 0.0
      %v2435 = vadd.f32 %v2433, %v2434
      %v2436 = vsel %vm1380, %v2386, 0.0
      %v2437 = vadd.f32 %v2435, %v2436
      %v2438 = vsel %vm1380, %v2387, 0.0
      %v2439 = vadd.f32 %v2437, %v2438
      %v2440 = vsel %vm1380, %v2388, 0.0
      %v2441 = vadd.f32 %v2439, %v2440
      %v2442 = vsel %vm1380, %v2389, 0.0
      %v2443 = vadd.f32 %v2441, %v2442
      %v2444 = vsel %vm1380, %v2390, 0.0
      %v2445 = vadd.f32 %v2443, %v2444
      %v2446 = vsel %vm1380, %v2391, 0.0
      %v2447 = vadd.f32 %v2445, %v2446
      %v2448 = vsel %vm1380, %v2392, 0.0
      %v2449 = vadd.f32 %v2447, %v2448
      %v2450 = vsel %vm1380, %v2393, 0.0
      %v2451 = vadd.f32 %v2449, %v2450
      %v2452 = vsel %vm1380, %v2394, 0.0
      %v2453 = vadd.f32 %v2451, %v2452
      %v2454 = vsel %vm1380, %v2395, 0.0
      %v2455 = vadd.f32 %v2453, %v2454
      %v2456 = vsel %vm1380, %v2396, 0.0
      %v2457 = vadd.f32 %v2455, %v2456
      %v2458 = vsel %vm1380, %v2397, 0.0
      %v2459 = vadd.f32 %v2457, %v2458
      %v2460 = vsel %vm1380, %v2398, 0.0
      %v2461 = vadd.f32 %v2459, %v2460
      %v2462 = vrot.slane %v2461, 4
      %v2463 = vadd.f32 %v2461, %v2462
      %v2464 = vrot.slane %v2463, 2
      %v2465 = vadd.f32 %v2463, %v2464
      %v2466 = vrot.slane %v2465, 1
      %v2467 = vadd.f32 %v2465, %v2466
      %vm2468 = vcmask 1040384
      %v2469 = vsel %vm2468, %v2366, %v2467
      %vm2470 = vcmask 254976
      %2471 = vst.msk [vmem:[%s457] sm:$0x3] %vm2470, %v2469
      %s2472 = smul.u32 16, %s24
      %p2473 = scmp.lt.s32.totalorder %s23, 1
      %s2474 = scalar_select %p2473, %s23, 1
      %p2475 = scmp.lt.s32.totalorder %s2472, 15
      %s2476 = scalar_select %p2475, %s2472, 15
      %s2477 = smul.addr %s2476, 2
      %s2478 = smul.addr %s2474, 32
      %s2479 = sadd.s32 %s2477, %s2478
      %s2480 = smul.addr %s2479, 4
      %s2481 = scalar_lea.vmem %s6, %s2480
      %s2482 = sadd.s32 %s23, %s24
      %p2483 = scmp.lt.s32.totalorder %s2482, 1
      %s2484 = scalar_select %p2483, %s2482, 1
      %s2485 = smul.addr %s2484, 2
      %s2486 = scalar_lea.vmem %s7, %s2485
      // Predicated region
      $region45: #{conv_block_forward.4} parent=43 // pred_check
        %p2487 = pneg %p210
      $region46: #{conv_block_forward.4} parent=43 // pred_check_branch
        %2489 = sbr.rel (%p2487) target = $region48
      $region47: #{conv_block_forward.4} parent=43 // pred_region
        %s2490 = smul.u32 16, %s24
      $region48: #{conv_block_forward.4} parent=43 // pred_fallthru
        _
      // Predicated region
      $region49: #{conv_block_forward.4} parent=43 // pred_check
        %p2491 = pneg %p238
      $region50: #{conv_block_forward.4} parent=43 // pred_check_branch
        %2493 = sbr.rel (%p2491) target = $region52
      $region51: #{conv_block_forward.4} parent=43 // pred_region
        %s2494 = sadd.s32 %s23, %s24
      $region52: #{conv_block_forward.4} parent=43 // pred_fallthru
        _
    $region44: #{conv_block_forward.4} parent=5 // pred_fallthru
      _
    %p2495 = scmp.le.s32.totalorder 2, %s14
    // Predicated region
    $region53: #{conv_block_forward.4} parent=5 // pred_check
      %p2496 = pneg %p2495
    $region54: #{conv_block_forward.4} parent=5 // pred_check_branch
      %2498 = sbr.rel (%p2496) target = $region56
    $region55: #{conv_block_forward.4} parent=5 // pred_region
      %s2499 = ssub.s32 %s14, 2
      // Predicated region
      $region57: #{conv_block_forward.4} parent=55 // pred_check
        %p2500 = pneg %p216
      $region58: #{conv_block_forward.4} parent=55 // pred_check_branch
        %2502 = sbr.rel (%p2500) target = $region60
      $region59: #{conv_block_forward.4} parent=55 // pred_region
        %s2503 = smul.u32 16, %s26
        %p2504 = scmp.lt.s32.totalorder %s25, 1
        %s2505 = scalar_select %p2504, %s25, 1
        %p2506 = scmp.lt.s32.totalorder %s2503, 15
        %s2507 = scalar_select %p2506, %s2503, 15
        %s2508 = smul.addr %s2507, 2
        %s2509 = smul.addr %s2505, 32
        %s2510 = sadd.s32 %s2508, %s2509
        %s2511 = smul.addr %s2510, 4
        %s2512 = scalar_lea.vmem %s6, %s2511
      $region60: #{conv_block_forward.4} parent=55 // pred_fallthru
        _
      // Predicated region
      $region61: #{conv_block_forward.4} parent=55 // pred_check
        %p2513 = pneg %p244
      $region62: #{conv_block_forward.4} parent=55 // pred_check_branch
        %2515 = sbr.rel (%p2513) target = $region64
      $region63: #{conv_block_forward.4} parent=55 // pred_region
        %s2516 = sadd.s32 %s25, %s26
        %p2517 = scmp.lt.s32.totalorder %s2516, 1
        %s2518 = scalar_select %p2517, %s2516, 1
        %s2519 = smul.addr %s2518, 2
        %s2520 = scalar_lea.vmem %s7, %s2519
      $region64: #{conv_block_forward.4} parent=55 // pred_fallthru
        _
    $region56: #{conv_block_forward.4} parent=5 // pred_fallthru
      _
  $region6: #{conv_block_forward.4} parent=0 // loop_footer
    %s18 = sadd.s32 1, %s14
  $region7: #{conv_block_forward.4} parent=0 // loop_footer_branch
    %13 = sbr.rel target = $region3
  $region8: #{conv_block_forward.4} parent=0 // loop_exit
    _

</llo_original>
